<compile_context>
chip_gen: v7x
topology: tpu7x:2x2x1
jax: 0.10.0
libtpu: 0.0.40
codegen_flags: <defaults>
</compile_context>

<pallas_src>
import functools

import jax
import jax.numpy as jnp
from jax import lax
from jax.experimental import pallas as pl
from jax.experimental.pallas import tpu as pltpu

LN_EPS = 1e-5  # torch.nn.LayerNorm default


def _silu(x, approx):
    if approx:
        # exp on the EUP, divide replaced by EUP approx reciprocal (frees VALU slots).
        return x * pl.reciprocal(1.0 + jnp.exp(-x), approx=True)
    return x * jax.nn.sigmoid(x)


def _layernorm(x, gamma, beta):
    mu = jnp.mean(x, axis=-1, keepdims=True)
    var = jnp.mean((x - mu) ** 2, axis=-1, keepdims=True)
    return (x - mu) * lax.rsqrt(var + LN_EPS) * gamma + beta


# --------------------------------------------------------------------------
# Fused kernel: grid = (node_tiles, edge_tiles), edge axis sequential.
#   every step : edge MLP on an edge tile + one-hot scatter into aggr scratch
#   last step  : node MLP on (x_tile, aggr) + residual  -> output tile
# --------------------------------------------------------------------------
def gmp_kernel(pi_ref, pj_ref, xcat_ref, jidx_ref, x_ref,
               w1d_ref, w1n_ref, w1x_ref, b1e_ref, w2e_ref, b2e_ref, ge_ref, be_ref,
               w1nx_ref, w1na_ref, b1n_ref, w2n_ref, b2n_ref, gn_ref, bn_ref,
               o_ref, aggr_ref, *, approx_silu):
    e = pl.program_id(1)
    mm = w1x_ref.dtype  # matmul operand dtype (bf16 or f32); accumulation is f32

    @pl.when(e == 0)
    def _():
        aggr_ref[...] = jnp.zeros_like(aggr_ref)

    # ---------------- edge MLP: Linear -> SiLU -> Linear -> LayerNorm ----------------
    d = pi_ref[...] - pj_ref[...]                                    # [te, P] f32 (VPU)
    nrm = jnp.sqrt(jnp.sum(d * d, axis=-1, keepdims=True))           # [te, 1]

    # K = P+1 slice of Linear-1 on the VPU (avoid a >97%-padded K=3 MXU pass).
    w1d = w1d_ref[...]                                               # [P, L]
    h = nrm * w1n_ref[...] + b1e_ref[...]                            # [te, L]
    for p in range(d.shape[-1]):                                     # static, P small
        h = h + d[:, p:p + 1] * w1d[p:p + 1, :]

    # K = 2L slice (x_i and x_j merged into one MXU matmul).
    h = h + jnp.dot(xcat_ref[...], w1x_ref[...],
                    preferred_element_type=jnp.float32)
    h = _silu(h, approx_silu)
    h = jnp.dot(h.astype(mm), w2e_ref[...],
                preferred_element_type=jnp.float32) + b2e_ref[...]
    emb = _layernorm(h, ge_ref[...], be_ref[...])                    # [te, L] f32

    # ---------------- scatter_sum into this node tile (one-hot matmul) ----------------
    te_ = jidx_ref.shape[0]
    tn_ = aggr_ref.shape[0]
    col = lax.broadcasted_iota(jnp.int32, (te_, tn_), 1) + pl.program_id(0) * tn_
    onehot = (col == jidx_ref[...]).astype(mm)                       # [te, tn] (0/1 exact)
    aggr_ref[...] += lax.dot_general(
        onehot, emb.astype(mm), (((0,), (0,)), ((), ())),
        preferred_element_type=jnp.float32)                          # [tn, L]

    # ---------------- node MLP epilogue (fused; runs once per node tile) --------------
    @pl.when(e == pl.num_programs(1) - 1)
    def _():
        xf = x_ref[...]                                              # [tn, L] f32
        hn = jnp.dot(xf.astype(mm), w1nx_ref[...],
                     preferred_element_type=jnp.float32)
        hn = hn + jnp.dot(aggr_ref[...].astype(mm), w1na_ref[...],
                          preferred_element_type=jnp.float32)
        hn = hn + b1n_ref[...]
        hn = _silu(hn, approx_silu)
        hn = jnp.dot(hn.astype(mm), w2n_ref[...],
                     preferred_element_type=jnp.float32) + b2n_ref[...]
        o_ref[...] = (_layernorm(hn, gn_ref[...], bn_ref[...]) + xf).astype(o_ref.dtype)


# --------------------------------------------------------------------------
# Wrapper (glue: gathers, padding, weight splitting / dtype casting).
# --------------------------------------------------------------------------
def gmp_forward(x, g, pos, params, *, te=512, tn=None,
                use_bf16=True, approx_silu=True):
    N, L = x.shape
    P = pos.shape[-1]
    E = g.shape[1]
    mm = jnp.bfloat16 if use_bf16 else jnp.float32

    # Node tile: full N (rounded to sublane multiple) up to 1024, else tile.
    if tn is None:
        tn = min(1024, pl.cdiv(N, 8) * 8)
    assert tn % 8 == 0
    n_pad_total = pl.cdiv(N, tn) * tn
    pad_n = n_pad_total - N

    # Edge tile: don't exceed the (sublane-rounded) edge count.
    te = min(te, pl.cdiv(E, 8) * 8)
    e_pad = pl.cdiv(E, te) * te
    pad_e = e_pad - E

    i_idx = g[0]
    j_idx = g[1]

    x32 = x.astype(jnp.float32)
    pos32 = pos.astype(jnp.float32)

    # Gathers (XLA glue).  TODO(synk): DMA-gather in-kernel for v5e.
    pi = pos32[i_idx]
    pj = pos32[j_idx]
    xcat = jnp.concatenate([x32[i_idx], x32[j_idx]], axis=-1).astype(mm)   # [E, 2L]

    # Pad edges; padded edges scatter to the out-of-range sentinel n_pad_total,
    # which never matches any node tile's global iota window -> all-zero rows.
    if pad_e:
        pi = jnp.pad(pi, ((0, pad_e), (0, 0)))
        pj = jnp.pad(pj, ((0, pad_e), (0, 0)))
        xcat = jnp.pad(xcat, ((0, pad_e), (0, 0)))
        j_scatter = jnp.pad(j_idx, (0, pad_e), constant_values=n_pad_total)
    else:
        j_scatter = j_idx
    jidx = j_scatter.astype(jnp.int32)[:, None]                            # [E_pad, 1]

    x_p = jnp.pad(x32, ((0, pad_n), (0, 0))) if pad_n else x32

    # mlp_edge first-layer weight rows match cat([dir(P), norm(1), x_i(L), x_j(L)]).
    w1e, b1e, w2e, b2e, ge, be = params["edge"]
    w1d = w1e[:P].astype(jnp.float32)            # VPU path stays f32
    w1nrm = w1e[P:P + 1].astype(jnp.float32)
    w1x = w1e[P + 1:].astype(mm)                 # [2L, L] merged x_i|x_j weight
    w2e_c = w2e.astype(mm)
    row = lambda v: v.reshape(1, L).astype(jnp.float32)
    b1e_r, b2e_r, ge_r, be_r = map(row, (b1e, b2e, ge, be))

    # mlp_node first-layer weight rows match cat([x(L), aggr(L)]).
    w1node, b1n, w2n, b2n, gn, bn = params["node"]
    w1nx = w1node[:L].astype(mm)
    w1na = w1node[L:].astype(mm)
    w2n_c = w2n.astype(mm)
    b1n_r, b2n_r, gn_r, bn_r = map(row, (b1n, b2n, gn, bn))

    grid = (n_pad_total // tn, e_pad // te)
    edge_map = lambda n, e: (e, 0)
    node_map = lambda n, e: (n, 0)
    const_map = lambda n, e: (0, 0)
    const = lambda shape: pl.BlockSpec(shape, const_map)

    out = pl.pallas_call(
        functools.partial(gmp_kernel, approx_silu=approx_silu),
        out_shape=jax.ShapeDtypeStruct((n_pad_total, L), jnp.float32),
        grid=grid,
        in_specs=[
            pl.BlockSpec((te, P), edge_map),        # pos_i
            pl.BlockSpec((te, P), edge_map),        # pos_j
            pl.BlockSpec((te, 2 * L), edge_map),    # cat(x_i, x_j)
            pl.BlockSpec((te, 1), edge_map),        # receiver indices j
            pl.BlockSpec((tn, L), node_map),        # x (node tile, resident across e)
            const((P, L)), const((1, L)), const((2 * L, L)), const((1, L)),  # edge L1
            const((L, L)), const((1, L)), const((1, L)), const((1, L)),      # edge L2+LN
            const((L, L)), const((L, L)), const((1, L)),                     # node L1
            const((L, L)), const((1, L)), const((1, L)), const((1, L)),      # node L2+LN
        ],
        out_specs=pl.BlockSpec((tn, L), node_map),
        scratch_shapes=[pltpu.VMEM((tn, L), jnp.float32)],   # per-node-tile aggr
        compiler_params=pltpu.CompilerParams(
            dimension_semantics=("parallel", "arbitrary")),
    )(pi, pj, xcat, jidx, x_p,
      w1d, w1nrm, w1x, b1e_r, w2e_c, b2e_r, ge_r, be_r,
      w1nx, w1na, b1n_r, w2n_c, b2n_r, gn_r, bn_r)

    return out[:N] if pad_n else out


# --------------------------------------------------------------------------
# Deterministic parameter init (MeshGraphMLP with hidden_layers=1).
# --------------------------------------------------------------------------
def init_params(key, latent_dim, pos_dim):
    def mlp_params(k, fin, hid, fout):
        k1, k2, k3, k4 = jax.random.split(k, 4)
        w1 = jax.random.normal(k1, (fin, hid), jnp.float32) / jnp.sqrt(fin)
        b1 = 0.01 * jax.random.normal(k2, (hid,), jnp.float32)
        w2 = jax.random.normal(k3, (hid, fout), jnp.float32) / jnp.sqrt(hid)
        b2 = 0.01 * jax.random.normal(k4, (fout,), jnp.float32)
        gamma = jnp.ones((fout,), jnp.float32)
        beta = jnp.zeros((fout,), jnp.float32)
        return (w1, b1, w2, b2, gamma, beta)

    ke, kn = jax.random.split(key)
    edge_in = 2 * latent_dim + pos_dim + 1
    node_in = 2 * latent_dim
    return {
        "edge": mlp_params(ke, edge_in, latent_dim, latent_dim),
        "node": mlp_params(kn, node_in, latent_dim, latent_dim),
    }


# --------------------------------------------------------------------------
# Pure-JAX reference (mirrors the PyTorch forward exactly).
# --------------------------------------------------------------------------
def _mlp_ref(x, p):
    w1, b1, w2, b2, g, b = p
    h = x @ w1 + b1
    h = _silu(h, approx=False)
    h = h @ w2 + b2
    return _layernorm(h, g, b)


def gmp_reference(x, g, pos, params):
    i, j = g[0], g[1]
    d = pos[i] - pos[j]
    nrm = jnp.sqrt(jnp.sum(d * d, axis=-1, keepdims=True))
    fiber = jnp.concatenate([d, nrm], axis=-1)
    tmp = jnp.concatenate([fiber, x[i], x[j]], axis=-1)
    emb = _mlp_ref(tmp, params["edge"])
    aggr = jnp.zeros((x.shape[0], emb.shape[-1]), emb.dtype).at[j].add(emb)
    tmp2 = jnp.concatenate([x, aggr], axis=-1)
    return _mlp_ref(tmp2, params["node"]) + x


if __name__ == "__main__":
    latent_dim, pos_dim = 32, 3
    N, E = 64, 200

    key = jax.random.PRNGKey(0)
    kx, kp, ki, kj, kw = jax.random.split(key, 5)
    x = jax.random.normal(kx, (N, latent_dim), jnp.float32)
    pos = jax.random.normal(kp, (N, pos_dim), jnp.float32)
    g = jnp.stack([
        jax.random.randint(ki, (E,), 0, N),
        jax.random.randint(kj, (E,), 0, N),
    ]).astype(jnp.int32)
    params = init_params(kw, latent_dim, pos_dim)

    ref = gmp_reference(x, g, pos, params)

    # Precise path (f32 MXU operands, exact sigmoid): tight correctness anchor.
    out_f32 = jax.block_until_ready(
        gmp_forward(x, g, pos, params, use_bf16=False, approx_silu=False))
    err32 = float(jnp.max(jnp.abs(out_f32 - ref)))
    assert err32 < 2e-4, f"f32 path max abs err {err32}"

    # Fast path (bf16 MXU operands + EUP approx reciprocal): relaxed tolerance.
    out_fast = jax.block_until_ready(gmp_forward(x, g, pos, params))
    err_fast = float(jnp.max(jnp.abs(out_fast - ref)))
    assert err_fast < 0.5, f"bf16 path max abs err {err_fast}"

    print("KERNEL_OK")
</pallas_src>

<mosaic_0001>
module attributes {stable_mosaic.version = 11 : i64} {
  func.func @gmp_kernel(%arg0: i32, %arg1: i32, %arg2: memref<200x3xf32, #tpu.memory_space<vmem>>, %arg3: memref<200x3xf32, #tpu.memory_space<vmem>>, %arg4: memref<200x64xf32, #tpu.memory_space<vmem>>, %arg5: memref<200x1xi32, #tpu.memory_space<vmem>>, %arg6: memref<64x32xf32, #tpu.memory_space<vmem>>, %arg7: memref<3x32xf32, #tpu.memory_space<vmem>>, %arg8: memref<1x32xf32, #tpu.memory_space<vmem>>, %arg9: memref<64x32xf32, #tpu.memory_space<vmem>>, %arg10: memref<1x32xf32, #tpu.memory_space<vmem>>, %arg11: memref<32x32xf32, #tpu.memory_space<vmem>>, %arg12: memref<1x32xf32, #tpu.memory_space<vmem>>, %arg13: memref<1x32xf32, #tpu.memory_space<vmem>>, %arg14: memref<1x32xf32, #tpu.memory_space<vmem>>, %arg15: memref<32x32xf32, #tpu.memory_space<vmem>>, %arg16: memref<32x32xf32, #tpu.memory_space<vmem>>, %arg17: memref<1x32xf32, #tpu.memory_space<vmem>>, %arg18: memref<32x32xf32, #tpu.memory_space<vmem>>, %arg19: memref<1x32xf32, #tpu.memory_space<vmem>>, %arg20: memref<1x32xf32, #tpu.memory_space<vmem>>, %arg21: memref<1x32xf32, #tpu.memory_space<vmem>>, %arg22: memref<64x32xf32, #tpu.memory_space<vmem>>, %arg23: memref<64x32xf32, #tpu.memory_space<vmem>>) attributes {dimension_semantics = [#tpu.dimension_semantics<parallel>, #tpu.dimension_semantics<arbitrary>], iteration_bounds = array<i64: 1, 1>, scalar_prefetch = 0 : i64, scratch_operands = 1 : i64, tpu.core_type = #tpu.core_type<tc>, window_params = [{transform_indices = @transform_0, window_bounds = array<i64: 200, 3>}, {transform_indices = @transform_1, window_bounds = array<i64: 200, 3>}, {transform_indices = @transform_2, window_bounds = array<i64: 200, 64>}, {transform_indices = @transform_3, window_bounds = array<i64: 200, 1>}, {transform_indices = @transform_4, window_bounds = array<i64: 64, 32>}, {pipeline_mode = #tpu.pipeline_mode<synchronous>, transform_indices = @transform_5, window_bounds = array<i64: 3, 32>}, {pipeline_mode = #tpu.pipeline_mode<synchronous>, transform_indices = @transform_6, window_bounds = array<i64: 1, 32>}, {pipeline_mode = #tpu.pipeline_mode<synchronous>, transform_indices = @transform_7, window_bounds = array<i64: 64, 32>}, {pipeline_mode = #tpu.pipeline_mode<synchronous>, transform_indices = @transform_8, window_bounds = array<i64: 1, 32>}, {pipeline_mode = #tpu.pipeline_mode<synchronous>, transform_indices = @transform_9, window_bounds = array<i64: 32, 32>}, {pipeline_mode = #tpu.pipeline_mode<synchronous>, transform_indices = @transform_10, window_bounds = array<i64: 1, 32>}, {pipeline_mode = #tpu.pipeline_mode<synchronous>, transform_indices = @transform_11, window_bounds = array<i64: 1, 32>}, {pipeline_mode = #tpu.pipeline_mode<synchronous>, transform_indices = @transform_12, window_bounds = array<i64: 1, 32>}, {pipeline_mode = #tpu.pipeline_mode<synchronous>, transform_indices = @transform_13, window_bounds = array<i64: 32, 32>}, {pipeline_mode = #tpu.pipeline_mode<synchronous>, transform_indices = @transform_14, window_bounds = array<i64: 32, 32>}, {pipeline_mode = #tpu.pipeline_mode<synchronous>, transform_indices = @transform_15, window_bounds = array<i64: 1, 32>}, {pipeline_mode = #tpu.pipeline_mode<synchronous>, transform_indices = @transform_16, window_bounds = array<i64: 32, 32>}, {pipeline_mode = #tpu.pipeline_mode<synchronous>, transform_indices = @transform_17, window_bounds = array<i64: 1, 32>}, {pipeline_mode = #tpu.pipeline_mode<synchronous>, transform_indices = @transform_18, window_bounds = array<i64: 1, 32>}, {pipeline_mode = #tpu.pipeline_mode<synchronous>, transform_indices = @transform_19, window_bounds = array<i64: 1, 32>}, {transform_indices = @transform_20, window_bounds = array<i64: 64, 32>}]} {
    %c0_i32 = arith.constant 0 : i32
    %0 = arith.cmpi eq, %arg1, %c0_i32 : i32
    %1 = arith.extui %0 : i1 to i32
    %c0_i32_0 = arith.constant 0 : i32
    %2 = arith.cmpi ne, %1, %c0_i32_0 : i32
    scf.if %2 {
      %cst_39 = arith.constant 0.000000e+00 : f32
      %91 = vector.broadcast %cst_39 : f32 to vector<64x32xf32>
      %c0_40 = arith.constant 0 : index
      %c0_41 = arith.constant 0 : index
      %92 = vector.load %arg23[%c0_40, %c0_41] : memref<64x32xf32, #tpu.memory_space<vmem>>, vector<64x32xf32>
      tpu.vector_store %arg23[%c0_40, %c0_41], %91 {strides = array<i32>} : memref<64x32xf32, #tpu.memory_space<vmem>>, vector<64x32xf32>,
    } else {
    }
    %c0 = arith.constant 0 : index
    %c0_1 = arith.constant 0 : index
    %3 = vector.load %arg2[%c0, %c0_1] : memref<200x3xf32, #tpu.memory_space<vmem>>, vector<200x3xf32>
    %c0_2 = arith.constant 0 : index
    %c0_3 = arith.constant 0 : index
    %4 = vector.load %arg3[%c0_2, %c0_3] : memref<200x3xf32, #tpu.memory_space<vmem>>, vector<200x3xf32>
    %5 = arith.subf %3, %4 : vector<200x3xf32>
    %6 = arith.mulf %5, %5 : vector<200x3xf32>
    %cst = arith.constant dense<0.000000e+00> : vector<200xf32>
    %7 = vector.multi_reduction <add>, %6, %cst [1] : vector<200x3xf32> to vector<200xf32>
    %8 = vector.shape_cast %7 : vector<200xf32> to vector<200x1xf32>
    %9 = math.sqrt %8 : vector<200x1xf32>
    %c0_4 = arith.constant 0 : index
    %c0_5 = arith.constant 0 : index
    %10 = vector.load %arg7[%c0_4, %c0_5] : memref<3x32xf32, #tpu.memory_space<vmem>>, vector<3x32xf32>
    %c0_6 = arith.constant 0 : index
    %c0_7 = arith.constant 0 : index
    %11 = vector.load %arg8[%c0_6, %c0_7] : memref<1x32xf32, #tpu.memory_space<vmem>>, vector<1x32xf32>
    %12 = vector.broadcast %9 : vector<200x1xf32> to vector<200x32xf32>
    %13 = vector.broadcast %11 : vector<1x32xf32> to vector<200x32xf32>
    %14 = arith.mulf %12, %13 : vector<200x32xf32>
    %c0_8 = arith.constant 0 : index
    %c0_9 = arith.constant 0 : index
    %15 = vector.load %arg10[%c0_8, %c0_9] : memref<1x32xf32, #tpu.memory_space<vmem>>, vector<1x32xf32>
    %16 = vector.broadcast %15 : vector<1x32xf32> to vector<200x32xf32>
    %17 = arith.addf %14, %16 : vector<200x32xf32>
    %18 = vector.extract_strided_slice %5 {offsets = [0, 0], sizes = [200, 1], strides = [1, 1]} : vector<200x3xf32> to vector<200x1xf32>
    %19 = vector.extract_strided_slice %10 {offsets = [0, 0], sizes = [1, 32], strides = [1, 1]} : vector<3x32xf32> to vector<1x32xf32>
    %20 = vector.broadcast %18 : vector<200x1xf32> to vector<200x32xf32>
    %21 = vector.broadcast %19 : vector<1x32xf32> to vector<200x32xf32>
    %22 = arith.mulf %20, %21 : vector<200x32xf32>
    %23 = arith.addf %17, %22 : vector<200x32xf32>
    %24 = vector.extract_strided_slice %5 {offsets = [0, 1], sizes = [200, 1], strides = [1, 1]} : vector<200x3xf32> to vector<200x1xf32>
    %25 = vector.extract_strided_slice %10 {offsets = [1, 0], sizes = [1, 32], strides = [1, 1]} : vector<3x32xf32> to vector<1x32xf32>
    %26 = vector.broadcast %24 : vector<200x1xf32> to vector<200x32xf32>
    %27 = vector.broadcast %25 : vector<1x32xf32> to vector<200x32xf32>
    %28 = arith.mulf %26, %27 : vector<200x32xf32>
    %29 = arith.addf %23, %28 : vector<200x32xf32>
    %30 = vector.extract_strided_slice %5 {offsets = [0, 2], sizes = [200, 1], strides = [1, 1]} : vector<200x3xf32> to vector<200x1xf32>
    %31 = vector.extract_strided_slice %10 {offsets = [2, 0], sizes = [1, 32], strides = [1, 1]} : vector<3x32xf32> to vector<1x32xf32>
    %32 = vector.broadcast %30 : vector<200x1xf32> to vector<200x32xf32>
    %33 = vector.broadcast %31 : vector<1x32xf32> to vector<200x32xf32>
    %34 = arith.mulf %32, %33 : vector<200x32xf32>
    %35 = arith.addf %29, %34 : vector<200x32xf32>
    %c0_10 = arith.constant 0 : index
    %c0_11 = arith.constant 0 : index
    %36 = vector.load %arg4[%c0_10, %c0_11] : memref<200x64xf32, #tpu.memory_space<vmem>>, vector<200x64xf32>
    %c0_12 = arith.constant 0 : index
    %c0_13 = arith.constant 0 : index
    %37 = vector.load %arg9[%c0_12, %c0_13] : memref<64x32xf32, #tpu.memory_space<vmem>>, vector<64x32xf32>
    %cst_14 = arith.constant dense<0.000000e+00> : vector<200x32xf32>
    %38 = tpu.matmul %36, %37, %cst_14 {dimension_numbers = #tpu.dot_dimension_numbers<[1], [0], [0], [1], [0, 0, 1, 1], [], []>} : vector<200x64xf32>, vector<64x32xf32>, vector<200x32xf32> -> vector<200x32xf32>
    %39 = arith.addf %35, %38 : vector<200x32xf32>
    %40 = arith.negf %39 : vector<200x32xf32>
    %41 = math.exp %40 : vector<200x32xf32>
    %cst_15 = arith.constant 1.000000e+00 : f32
    %42 = vector.broadcast %cst_15 : f32 to vector<200x32xf32>
    %43 = arith.addf %42, %41 : vector<200x32xf32>
    %44 = arith.divf %42, %43 : vector<200x32xf32>
    %45 = arith.mulf %39, %44 : vector<200x32xf32>
    %c0_16 = arith.constant 0 : index
    %c0_17 = arith.constant 0 : index
    %46 = vector.load %arg11[%c0_16, %c0_17] : memref<32x32xf32, #tpu.memory_space<vmem>>, vector<32x32xf32>
    %cst_18 = arith.constant dense<0.000000e+00> : vector<200x32xf32>
    %47 = tpu.matmul %45, %46, %cst_18 {dimension_numbers = #tpu.dot_dimension_numbers<[1], [0], [0], [1], [0, 0, 1, 1], [], []>} : vector<200x32xf32>, vector<32x32xf32>, vector<200x32xf32> -> vector<200x32xf32>
    %c0_19 = arith.constant 0 : index
    %c0_20 = arith.constant 0 : index
    %48 = vector.load %arg12[%c0_19, %c0_20] : memref<1x32xf32, #tpu.memory_space<vmem>>, vector<1x32xf32>
    %49 = vector.broadcast %48 : vector<1x32xf32> to vector<200x32xf32>
    %50 = arith.addf %47, %49 : vector<200x32xf32>
    %c0_21 = arith.constant 0 : index
    %c0_22 = arith.constant 0 : index
    %51 = vector.load %arg13[%c0_21, %c0_22] : memref<1x32xf32, #tpu.memory_space<vmem>>, vector<1x32xf32>
    %c0_23 = arith.constant 0 : index
    %c0_24 = arith.constant 0 : index
    %52 = vector.load %arg14[%c0_23, %c0_24] : memref<1x32xf32, #tpu.memory_space<vmem>>, vector<1x32xf32>
    %cst_25 = arith.constant dense<0.000000e+00> : vector<200xf32>
    %53 = vector.multi_reduction <add>, %50, %cst_25 [1] : vector<200x32xf32> to vector<200xf32>
    %54 = vector.shape_cast %53 : vector<200xf32> to vector<200x1xf32>
    %cst_26 = arith.constant 3.200000e+01 : f32
    %55 = vector.broadcast %cst_26 : f32 to vector<200x1xf32>
    %56 = arith.divf %54, %55 : vector<200x1xf32>
    %57 = vector.broadcast %56 : vector<200x1xf32> to vector<200x32xf32>
    %58 = arith.subf %50, %57 : vector<200x32xf32>
    %59 = arith.mulf %58, %58 : vector<200x32xf32>
    %cst_27 = arith.constant dense<0.000000e+00> : vector<200xf32>
    %60 = vector.multi_reduction <add>, %59, %cst_27 [1] : vector<200x32xf32> to vector<200xf32>
    %61 = vector.shape_cast %60 : vector<200xf32> to vector<200x1xf32>
    %cst_28 = arith.constant 3.200000e+01 : f32
    %62 = vector.broadcast %cst_28 : f32 to vector<200x1xf32>
    %63 = arith.divf %61, %62 : vector<200x1xf32>
    %64 = vector.broadcast %56 : vector<200x1xf32> to vector<200x32xf32>
    %65 = arith.subf %50, %64 : vector<200x32xf32>
    %cst_29 = arith.constant 9.99999974E-6 : f32
    %66 = vector.broadcast %cst_29 : f32 to vector<200x1xf32>
    %67 = arith.addf %63, %66 : vector<200x1xf32>
    %68 = math.rsqrt %67 : vector<200x1xf32>
    %69 = vector.broadcast %68 : vector<200x1xf32> to vector<200x32xf32>
    %70 = arith.mulf %65, %69 : vector<200x32xf32>
    %71 = vector.broadcast %51 : vector<1x32xf32> to vector<200x32xf32>
    %72 = arith.mulf %70, %71 : vector<200x32xf32>
    %73 = vector.broadcast %52 : vector<1x32xf32> to vector<200x32xf32>
    %74 = arith.addf %72, %73 : vector<200x32xf32>
    %75 = tpu.iota {dimensions = array<i32: 1>} : vector<200x64xi32>
    %c64_i32 = arith.constant 64 : i32
    %76 = arith.muli %arg0, %c64_i32 : i32
    %77 = vector.broadcast %76 : i32 to vector<200x64xi32>
    %78 = arith.addi %75, %77 : vector<200x64xi32>
    %c0_30 = arith.constant 0 : index
    %c0_31 = arith.constant 0 : index
    %79 = vector.load %arg5[%c0_30, %c0_31] : memref<200x1xi32, #tpu.memory_space<vmem>>, vector<200x1xi32>
    %80 = vector.broadcast %79 : vector<200x1xi32> to vector<200x64xi32>
    %81 = arith.cmpi eq, %78, %80 : vector<200x64xi32>
    %82 = arith.extui %81 : vector<200x64xi1> to vector<200x64xi32>
    %83 = arith.sitofp %82 : vector<200x64xi32> to vector<200x64xf32>
    %c0_32 = arith.constant 0 : index
    %c0_33 = arith.constant 0 : index
    %84 = vector.load %arg23[%c0_32, %c0_33] : memref<64x32xf32, #tpu.memory_space<vmem>>, vector<64x32xf32>
    %cst_34 = arith.constant dense<0.000000e+00> : vector<64x32xf32>
    %85 = tpu.matmul %83, %74, %cst_34 {dimension_numbers = #tpu.dot_dimension_numbers<[0], [0], [1], [1], [0, 1, 1, 1], [], []>} : vector<200x64xf32>, vector<200x32xf32>, vector<64x32xf32> -> vector<64x32xf32>
    %86 = arith.addf %84, %85 : vector<64x32xf32>
    %c0_35 = arith.constant 0 : index
    %c0_36 = arith.constant 0 : index
    %87 = vector.load %arg23[%c0_35, %c0_36] : memref<64x32xf32, #tpu.memory_space<vmem>>, vector<64x32xf32>
    tpu.vector_store %arg23[%c0_35, %c0_36], %86 {strides = array<i32>} : memref<64x32xf32, #tpu.memory_space<vmem>>, vector<64x32xf32>,
    %c0_i32_37 = arith.constant 0 : i32
    %88 = arith.cmpi eq, %arg1, %c0_i32_37 : i32
    %89 = arith.extui %88 : i1 to i32
    %c0_i32_38 = arith.constant 0 : i32
    %90 = arith.cmpi ne, %89, %c0_i32_38 : i32
    scf.if %90 {
      %c0_39 = arith.constant 0 : index
      %c0_40 = arith.constant 0 : index
      %91 = vector.load %arg6[%c0_39, %c0_40] : memref<64x32xf32, #tpu.memory_space<vmem>>, vector<64x32xf32>
      %c0_41 = arith.constant 0 : index
      %c0_42 = arith.constant 0 : index
      %92 = vector.load %arg15[%c0_41, %c0_42] : memref<32x32xf32, #tpu.memory_space<vmem>>, vector<32x32xf32>
      %cst_43 = arith.constant dense<0.000000e+00> : vector<64x32xf32>
      %93 = tpu.matmul %91, %92, %cst_43 {dimension_numbers = #tpu.dot_dimension_numbers<[1], [0], [0], [1], [0, 0, 1, 1], [], []>} : vector<64x32xf32>, vector<32x32xf32>, vector<64x32xf32> -> vector<64x32xf32>
      %c0_44 = arith.constant 0 : index
      %c0_45 = arith.constant 0 : index
      %94 = vector.load %arg23[%c0_44, %c0_45] : memref<64x32xf32, #tpu.memory_space<vmem>>, vector<64x32xf32>
      %c0_46 = arith.constant 0 : index
      %c0_47 = arith.constant 0 : index
      %95 = vector.load %arg16[%c0_46, %c0_47] : memref<32x32xf32, #tpu.memory_space<vmem>>, vector<32x32xf32>
      %cst_48 = arith.constant dense<0.000000e+00> : vector<64x32xf32>
      %96 = tpu.matmul %94, %95, %cst_48 {dimension_numbers = #tpu.dot_dimension_numbers<[1], [0], [0], [1], [0, 0, 1, 1], [], []>} : vector<64x32xf32>, vector<32x32xf32>, vector<64x32xf32> -> vector<64x32xf32>
      %97 = arith.addf %93, %96 : vector<64x32xf32>
      %c0_49 = arith.constant 0 : index
      %c0_50 = arith.constant 0 : index
      %98 = vector.load %arg17[%c0_49, %c0_50] : memref<1x32xf32, #tpu.memory_space<vmem>>, vector<1x32xf32>
      %99 = vector.broadcast %98 : vector<1x32xf32> to vector<64x32xf32>
      %100 = arith.addf %97, %99 : vector<64x32xf32>
      %101 = arith.negf %100 : vector<64x32xf32>
      %102 = math.exp %101 : vector<64x32xf32>
      %cst_51 = arith.constant 1.000000e+00 : f32
      %103 = vector.broadcast %cst_51 : f32 to vector<64x32xf32>
      %104 = arith.addf %103, %102 : vector<64x32xf32>
      %105 = arith.divf %103, %104 : vector<64x32xf32>
      %106 = arith.mulf %100, %105 : vector<64x32xf32>
      %c0_52 = arith.constant 0 : index
      %c0_53 = arith.constant 0 : index
      %107 = vector.load %arg18[%c0_52, %c0_53] : memref<32x32xf32, #tpu.memory_space<vmem>>, vector<32x32xf32>
      %cst_54 = arith.constant dense<0.000000e+00> : vector<64x32xf32>
      %108 = tpu.matmul %106, %107, %cst_54 {dimension_numbers = #tpu.dot_dimension_numbers<[1], [0], [0], [1], [0, 0, 1, 1], [], []>} : vector<64x32xf32>, vector<32x32xf32>, vector<64x32xf32> -> vector<64x32xf32>
      %c0_55 = arith.constant 0 : index
      %c0_56 = arith.constant 0 : index
      %109 = vector.load %arg19[%c0_55, %c0_56] : memref<1x32xf32, #tpu.memory_space<vmem>>, vector<1x32xf32>
      %110 = vector.broadcast %109 : vector<1x32xf32> to vector<64x32xf32>
      %111 = arith.addf %108, %110 : vector<64x32xf32>
      %c0_57 = arith.constant 0 : index
      %c0_58 = arith.constant 0 : index
      %112 = vector.load %arg20[%c0_57, %c0_58] : memref<1x32xf32, #tpu.memory_space<vmem>>, vector<1x32xf32>
      %c0_59 = arith.constant 0 : index
      %c0_60 = arith.constant 0 : index
      %113 = vector.load %arg21[%c0_59, %c0_60] : memref<1x32xf32, #tpu.memory_space<vmem>>, vector<1x32xf32>
      %cst_61 = arith.constant dense<0.000000e+00> : vector<64xf32>
      %114 = vector.multi_reduction <add>, %111, %cst_61 [1] : vector<64x32xf32> to vector<64xf32>
      %115 = vector.shape_cast %114 : vector<64xf32> to vector<64x1xf32>
      %cst_62 = arith.constant 3.200000e+01 : f32
      %116 = vector.broadcast %cst_62 : f32 to vector<64x1xf32>
      %117 = arith.divf %115, %116 : vector<64x1xf32>
      %118 = vector.broadcast %117 : vector<64x1xf32> to vector<64x32xf32>
      %119 = arith.subf %111, %118 : vector<64x32xf32>
      %120 = arith.mulf %119, %119 : vector<64x32xf32>
      %cst_63 = arith.constant dense<0.000000e+00> : vector<64xf32>
      %121 = vector.multi_reduction <add>, %120, %cst_63 [1] : vector<64x32xf32> to vector<64xf32>
      %122 = vector.shape_cast %121 : vector<64xf32> to vector<64x1xf32>
      %cst_64 = arith.constant 3.200000e+01 : f32
      %123 = vector.broadcast %cst_64 : f32 to vector<64x1xf32>
      %124 = arith.divf %122, %123 : vector<64x1xf32>
      %125 = vector.broadcast %117 : vector<64x1xf32> to vector<64x32xf32>
      %126 = arith.subf %111, %125 : vector<64x32xf32>
      %cst_65 = arith.constant 9.99999974E-6 : f32
      %127 = vector.broadcast %cst_65 : f32 to vector<64x1xf32>
      %128 = arith.addf %124, %127 : vector<64x1xf32>
      %129 = math.rsqrt %128 : vector<64x1xf32>
      %130 = vector.broadcast %129 : vector<64x1xf32> to vector<64x32xf32>
      %131 = arith.mulf %126, %130 : vector<64x32xf32>
      %132 = vector.broadcast %112 : vector<1x32xf32> to vector<64x32xf32>
      %133 = arith.mulf %131, %132 : vector<64x32xf32>
      %134 = vector.broadcast %113 : vector<1x32xf32> to vector<64x32xf32>
      %135 = arith.addf %133, %134 : vector<64x32xf32>
      %136 = arith.addf %135, %91 : vector<64x32xf32>
      %c0_66 = arith.constant 0 : index
      %c0_67 = arith.constant 0 : index
      %137 = vector.load %arg22[%c0_66, %c0_67] : memref<64x32xf32, #tpu.memory_space<vmem>>, vector<64x32xf32>
      tpu.vector_store %arg22[%c0_66, %c0_67], %136 {strides = array<i32>} : memref<64x32xf32, #tpu.memory_space<vmem>>, vector<64x32xf32>,
    } else {
    }
    return
  }
  func.func @transform_0(%arg0: i32, %arg1: i32) -> (i32, i32) {
    %c0_i32 = arith.constant 0 : i32
    %c0_i32_0 = arith.constant 0 : i32
    return %arg1, %c0_i32 : i32, i32
  }
  func.func @transform_1(%arg0: i32, %arg1: i32) -> (i32, i32) {
    %c0_i32 = arith.constant 0 : i32
    %c0_i32_0 = arith.constant 0 : i32
    return %arg1, %c0_i32 : i32, i32
  }
  func.func @transform_2(%arg0: i32, %arg1: i32) -> (i32, i32) {
    %c0_i32 = arith.constant 0 : i32
    %c0_i32_0 = arith.constant 0 : i32
    return %arg1, %c0_i32 : i32, i32
  }
  func.func @transform_3(%arg0: i32, %arg1: i32) -> (i32, i32) {
    %c0_i32 = arith.constant 0 : i32
    %c0_i32_0 = arith.constant 0 : i32
    return %arg1, %c0_i32 : i32, i32
  }
  func.func @transform_4(%arg0: i32, %arg1: i32) -> (i32, i32) {
    %c0_i32 = arith.constant 0 : i32
    %c0_i32_0 = arith.constant 0 : i32
    return %arg0, %c0_i32 : i32, i32
  }
  func.func @transform_5(%arg0: i32, %arg1: i32) -> (i32, i32) {
    %c0_i32 = arith.constant 0 : i32
    %c0_i32_0 = arith.constant 0 : i32
    %c0_i32_1 = arith.constant 0 : i32
    return %c0_i32, %c0_i32_0 : i32, i32
  }
  func.func @transform_6(%arg0: i32, %arg1: i32) -> (i32, i32) {
    %c0_i32 = arith.constant 0 : i32
    %c0_i32_0 = arith.constant 0 : i32
    %c0_i32_1 = arith.constant 0 : i32
    return %c0_i32, %c0_i32_0 : i32, i32
  }
  func.func @transform_7(%arg0: i32, %arg1: i32) -> (i32, i32) {
    %c0_i32 = arith.constant 0 : i32
    %c0_i32_0 = arith.constant 0 : i32
    %c0_i32_1 = arith.constant 0 : i32
    return %c0_i32, %c0_i32_0 : i32, i32
  }
  func.func @transform_8(%arg0: i32, %arg1: i32) -> (i32, i32) {
    %c0_i32 = arith.constant 0 : i32
    %c0_i32_0 = arith.constant 0 : i32
    %c0_i32_1 = arith.constant 0 : i32
    return %c0_i32, %c0_i32_0 : i32, i32
  }
  func.func @transform_9(%arg0: i32, %arg1: i32) -> (i32, i32) {
    %c0_i32 = arith.constant 0 : i32
    %c0_i32_0 = arith.constant 0 : i32
    %c0_i32_1 = arith.constant 0 : i32
    return %c0_i32, %c0_i32_0 : i32, i32
  }
  func.func @transform_10(%arg0: i32, %arg1: i32) -> (i32, i32) {
    %c0_i32 = arith.constant 0 : i32
    %c0_i32_0 = arith.constant 0 : i32
    %c0_i32_1 = arith.constant 0 : i32
    return %c0_i32, %c0_i32_0 : i32, i32
  }
  func.func @transform_11(%arg0: i32, %arg1: i32) -> (i32, i32) {
    %c0_i32 = arith.constant 0 : i32
    %c0_i32_0 = arith.constant 0 : i32
    %c0_i32_1 = arith.constant 0 : i32
    return %c0_i32, %c0_i32_0 : i32, i32
  }
  func.func @transform_12(%arg0: i32, %arg1: i32) -> (i32, i32) {
    %c0_i32 = arith.constant 0 : i32
    %c0_i32_0 = arith.constant 0 : i32
    %c0_i32_1 = arith.constant 0 : i32
    return %c0_i32, %c0_i32_0 : i32, i32
  }
  func.func @transform_13(%arg0: i32, %arg1: i32) -> (i32, i32) {
    %c0_i32 = arith.constant 0 : i32
    %c0_i32_0 = arith.constant 0 : i32
    %c0_i32_1 = arith.constant 0 : i32
    return %c0_i32, %c0_i32_0 : i32, i32
  }
  func.func @transform_14(%arg0: i32, %arg1: i32) -> (i32, i32) {
    %c0_i32 = arith.constant 0 : i32
    %c0_i32_0 = arith.constant 0 : i32
    %c0_i32_1 = arith.constant 0 : i32
    return %c0_i32, %c0_i32_0 : i32, i32
  }
  func.func @transform_15(%arg0: i32, %arg1: i32) -> (i32, i32) {
    %c0_i32 = arith.constant 0 : i32
    %c0_i32_0 = arith.constant 0 : i32
    %c0_i32_1 = arith.constant 0 : i32
    return %c0_i32, %c0_i32_0 : i32, i32
  }
  func.func @transform_16(%arg0: i32, %arg1: i32) -> (i32, i32) {
    %c0_i32 = arith.constant 0 : i32
    %c0_i32_0 = arith.constant 0 : i32
    %c0_i32_1 = arith.constant 0 : i32
    return %c0_i32, %c0_i32_0 : i32, i32
  }
  func.func @transform_17(%arg0: i32, %arg1: i32) -> (i32, i32) {
    %c0_i32 = arith.constant 0 : i32
    %c0_i32_0 = arith.constant 0 : i32
    %c0_i32_1 = arith.constant 0 : i32
    return %c0_i32, %c0_i32_0 : i32, i32
  }
  func.func @transform_18(%arg0: i32, %arg1: i32) -> (i32, i32) {
    %c0_i32 = arith.constant 0 : i32
    %c0_i32_0 = arith.constant 0 : i32
    %c0_i32_1 = arith.constant 0 : i32
    return %c0_i32, %c0_i32_0 : i32, i32
  }
  func.func @transform_19(%arg0: i32, %arg1: i32) -> (i32, i32) {
    %c0_i32 = arith.constant 0 : i32
    %c0_i32_0 = arith.constant 0 : i32
    %c0_i32_1 = arith.constant 0 : i32
    return %c0_i32, %c0_i32_0 : i32, i32
  }
  func.func @transform_20(%arg0: i32, %arg1: i32) -> (i32, i32) {
    %c0_i32 = arith.constant 0 : i32
    %c0_i32_0 = arith.constant 0 : i32
    return %arg0, %c0_i32 : i32, i32
  }
}

</mosaic_0001>

<llo_original>
// kernel: tpu_custom_call.1
$region0: #{tpu_custom_call.1}
  #allocation0 [shape = 'u32[]', space=smem, size = 0x4, offset = 0x4, fixed_abs, tag = 'smem constant byte address 0x4 - core index']
  #allocation1 [shape = 'u32[144,128]{1,0:T(1,128)}', space=vmem, size = 0x12000, scoped, tag = 'internal scratch']
  #allocation2 [shape = 'f32[64,32]{1,0:T(8,128)}', space=vmem, size = 0x8000, scoped, tag = 'scratch operand']
  %s0 = inlined_call_operand.vmem [shape: f32[200,3], index: 0, kind: input, shape index: {}]
  %s1 = inlined_call_operand.vmem [shape: f32[200,3], index: 1, kind: input, shape index: {}]
  %s2 = inlined_call_operand.vmem [shape: f32[200,64], index: 2, kind: input, shape index: {}]
  %s3 = inlined_call_operand.vmem [shape: s32[200,1], index: 3, kind: input, shape index: {}]
  %s4 = inlined_call_operand.vmem [shape: f32[64,32], index: 4, kind: input, shape index: {}]
  %s5 = inlined_call_operand.vmem [shape: f32[3,32], index: 5, kind: input, shape index: {}]
  %s6 = inlined_call_operand.vmem [shape: f32[1,32], index: 6, kind: input, shape index: {}]
  %s7 = inlined_call_operand.vmem [shape: f32[64,32], index: 7, kind: input, shape index: {}]
  %s8 = inlined_call_operand.vmem [shape: f32[1,32], index: 8, kind: input, shape index: {}]
  %s9 = inlined_call_operand.vmem [shape: f32[32,32], index: 9, kind: input, shape index: {}]
  %s10 = inlined_call_operand.vmem [shape: f32[1,32], index: 10, kind: input, shape index: {}]
  %s11 = inlined_call_operand.vmem [shape: f32[1,32], index: 11, kind: input, shape index: {}]
  %s12 = inlined_call_operand.vmem [shape: f32[1,32], index: 12, kind: input, shape index: {}]
  %s13 = inlined_call_operand.vmem [shape: f32[32,32], index: 13, kind: input, shape index: {}]
  %s14 = inlined_call_operand.vmem [shape: f32[32,32], index: 14, kind: input, shape index: {}]
  %s15 = inlined_call_operand.vmem [shape: f32[1,32], index: 15, kind: input, shape index: {}]
  %s16 = inlined_call_operand.vmem [shape: f32[32,32], index: 16, kind: input, shape index: {}]
  %s17 = inlined_call_operand.vmem [shape: f32[1,32], index: 17, kind: input, shape index: {}]
  %s18 = inlined_call_operand.vmem [shape: f32[1,32], index: 18, kind: input, shape index: {}]
  %s19 = inlined_call_operand.vmem [shape: f32[1,32], index: 19, kind: input, shape index: {}]
  %s20 = inlined_call_operand.vmem [shape: f32[64,32], index: 20, kind: output, shape index: {}]
  %s21 = sld [smem:[#allocation0]]
  $region98: #{tpu_custom_call.1} parent=0
    _
  %s23 = ssub.s32 1, %s21
  %s24 = scalar_select 0, %s23, %s21
  // Predicated region
  $region2: #{tpu_custom_call.1} parent=0 // pred_check
    _
  $region3: #{tpu_custom_call.1} parent=0 // pred_check_branch
    %26 = sbr.rel (0) target = $region5
  $region4: #{tpu_custom_call.1} parent=0 // pred_region
    _
  $region5: #{tpu_custom_call.1} parent=0 // pred_fallthru
    _
  // Predicated region
  $region6: #{tpu_custom_call.1} parent=0 // pred_check
    _
  $region7: #{tpu_custom_call.1} parent=0 // pred_check_branch
    %28 = sbr.rel (0) target = $region9
  $region8: #{tpu_custom_call.1} parent=0 // pred_region
    _
  $region9: #{tpu_custom_call.1} parent=0 // pred_fallthru
    _
  // Predicated region
  $region10: #{tpu_custom_call.1} parent=0 // pred_check
    _
  $region11: #{tpu_custom_call.1} parent=0 // pred_check_branch
    %30 = sbr.rel (0) target = $region13
  $region12: #{tpu_custom_call.1} parent=0 // pred_region
    _
  $region13: #{tpu_custom_call.1} parent=0 // pred_fallthru
    _
  // Predicated region
  $region14: #{tpu_custom_call.1} parent=0 // pred_check
    _
  $region15: #{tpu_custom_call.1} parent=0 // pred_check_branch
    %32 = sbr.rel (0) target = $region17
  $region16: #{tpu_custom_call.1} parent=0 // pred_region
    _
  $region17: #{tpu_custom_call.1} parent=0 // pred_fallthru
    _
  // Predicated region
  $region18: #{tpu_custom_call.1} parent=0 // pred_check
    _
  $region19: #{tpu_custom_call.1} parent=0 // pred_check_branch
    %34 = sbr.rel (0) target = $region21
  $region20: #{tpu_custom_call.1} parent=0 // pred_region
    _
  $region21: #{tpu_custom_call.1} parent=0 // pred_fallthru
    _
  // Predicated region
  $region22: #{tpu_custom_call.1} parent=0 // pred_check
    _
  $region23: #{tpu_custom_call.1} parent=0 // pred_check_branch
    %36 = sbr.rel (0) target = $region25
  $region24: #{tpu_custom_call.1} parent=0 // pred_region
    _
  $region25: #{tpu_custom_call.1} parent=0 // pred_fallthru
    _
  // Predicated region
  $region26: #{tpu_custom_call.1} parent=0 // pred_check
    _
  $region27: #{tpu_custom_call.1} parent=0 // pred_check_branch
    %38 = sbr.rel (0) target = $region29
  $region28: #{tpu_custom_call.1} parent=0 // pred_region
    _
  $region29: #{tpu_custom_call.1} parent=0 // pred_fallthru
    _
  // Predicated region
  $region30: #{tpu_custom_call.1} parent=0 // pred_check
    _
  $region31: #{tpu_custom_call.1} parent=0 // pred_check_branch
    %40 = sbr.rel (0) target = $region33
  $region32: #{tpu_custom_call.1} parent=0 // pred_region
    _
  $region33: #{tpu_custom_call.1} parent=0 // pred_fallthru
    _
  // Predicated region
  $region34: #{tpu_custom_call.1} parent=0 // pred_check
    _
  $region35: #{tpu_custom_call.1} parent=0 // pred_check_branch
    %42 = sbr.rel (0) target = $region37
  $region36: #{tpu_custom_call.1} parent=0 // pred_region
    _
  $region37: #{tpu_custom_call.1} parent=0 // pred_fallthru
    _
  // Predicated region
  $region38: #{tpu_custom_call.1} parent=0 // pred_check
    _
  $region39: #{tpu_custom_call.1} parent=0 // pred_check_branch
    %44 = sbr.rel (0) target = $region41
  $region40: #{tpu_custom_call.1} parent=0 // pred_region
    _
  $region41: #{tpu_custom_call.1} parent=0 // pred_fallthru
    _
  // Predicated region
  $region42: #{tpu_custom_call.1} parent=0 // pred_check
    _
  $region43: #{tpu_custom_call.1} parent=0 // pred_check_branch
    %46 = sbr.rel (0) target = $region45
  $region44: #{tpu_custom_call.1} parent=0 // pred_region
    _
  $region45: #{tpu_custom_call.1} parent=0 // pred_fallthru
    _
  // Predicated region
  $region46: #{tpu_custom_call.1} parent=0 // pred_check
    _
  $region47: #{tpu_custom_call.1} parent=0 // pred_check_branch
    %48 = sbr.rel (0) target = $region49
  $region48: #{tpu_custom_call.1} parent=0 // pred_region
    _
  $region49: #{tpu_custom_call.1} parent=0 // pred_fallthru
    _
  // Predicated region
  $region50: #{tpu_custom_call.1} parent=0 // pred_check
    _
  $region51: #{tpu_custom_call.1} parent=0 // pred_check_branch
    %50 = sbr.rel (0) target = $region53
  $region52: #{tpu_custom_call.1} parent=0 // pred_region
    _
  $region53: #{tpu_custom_call.1} parent=0 // pred_fallthru
    _
  // Predicated region
  $region54: #{tpu_custom_call.1} parent=0 // pred_check
    _
  $region55: #{tpu_custom_call.1} parent=0 // pred_check_branch
    %52 = sbr.rel (0) target = $region57
  $region56: #{tpu_custom_call.1} parent=0 // pred_region
    _
  $region57: #{tpu_custom_call.1} parent=0 // pred_fallthru
    _
  // Predicated region
  $region58: #{tpu_custom_call.1} parent=0 // pred_check
    _
  $region59: #{tpu_custom_call.1} parent=0 // pred_check_branch
    %54 = sbr.rel (0) target = $region61
  $region60: #{tpu_custom_call.1} parent=0 // pred_region
    _
  $region61: #{tpu_custom_call.1} parent=0 // pred_fallthru
    _
  // Predicated region
  $region62: #{tpu_custom_call.1} parent=0 // pred_check
    _
  $region63: #{tpu_custom_call.1} parent=0 // pred_check_branch
    %56 = sbr.rel (0) target = $region65
  $region64: #{tpu_custom_call.1} parent=0 // pred_region
    _
  $region65: #{tpu_custom_call.1} parent=0 // pred_fallthru
    _
  // Predicated region
  $region66: #{tpu_custom_call.1} parent=0 // pred_check
    _
  $region67: #{tpu_custom_call.1} parent=0 // pred_check_branch
    %58 = sbr.rel (0) target = $region69
  $region68: #{tpu_custom_call.1} parent=0 // pred_region
    _
  $region69: #{tpu_custom_call.1} parent=0 // pred_fallthru
    _
  // Predicated region
  $region70: #{tpu_custom_call.1} parent=0 // pred_check
    _
  $region71: #{tpu_custom_call.1} parent=0 // pred_check_branch
    %60 = sbr.rel (0) target = $region73
  $region72: #{tpu_custom_call.1} parent=0 // pred_region
    _
  $region73: #{tpu_custom_call.1} parent=0 // pred_fallthru
    _
  // Predicated region
  $region74: #{tpu_custom_call.1} parent=0 // pred_check
    _
  $region75: #{tpu_custom_call.1} parent=0 // pred_check_branch
    %62 = sbr.rel (0) target = $region77
  $region76: #{tpu_custom_call.1} parent=0 // pred_region
    _
  $region77: #{tpu_custom_call.1} parent=0 // pred_fallthru
    _
  // Predicated region
  $region78: #{tpu_custom_call.1} parent=0 // pred_check
    _
  $region79: #{tpu_custom_call.1} parent=0 // pred_check_branch
    %64 = sbr.rel (0) target = $region81
  $region80: #{tpu_custom_call.1} parent=0 // pred_region
    _
  $region81: #{tpu_custom_call.1} parent=0 // pred_fallthru
    _
  %p65 = scmp.eq.s32.totalorder 0, 0
  // Predicated region
  $region82: #{tpu_custom_call.1} parent=0 // pred_check
    %p66 = pneg %p65
  $region83: #{tpu_custom_call.1} parent=0 // pred_check_branch
    %68 = sbr.rel (%p66) target = $region85
  $region84: #{tpu_custom_call.1} parent=0 // pred_region
    %vm69 = vcmask 261120
    %70 = vst.msk [vmem:[#allocation2] sm:$0xff] %vm69, 0.0
    %71 = vst.msk [vmem:[#allocation2 + $0x8] sm:$0xff] %vm69, 0.0
    %72 = vst.msk [vmem:[#allocation2 + $0x10] sm:$0xff] %vm69, 0.0
    %73 = vst.msk [vmem:[#allocation2 + $0x18] sm:$0xff] %vm69, 0.0
    %74 = vst.msk [vmem:[#allocation2 + $0x20] sm:$0xff] %vm69, 0.0
    %75 = vst.msk [vmem:[#allocation2 + $0x28] sm:$0xff] %vm69, 0.0
    %76 = vst.msk [vmem:[#allocation2 + $0x30] sm:$0xff] %vm69, 0.0
    %77 = vst.msk [vmem:[#allocation2 + $0x38] sm:$0xff] %vm69, 0.0
  $region85: #{tpu_custom_call.1} parent=0 // pred_fallthru
    _
  %v78 = vld [vmem:[%s0] sm:$0xff]
  %v79 = vld [vmem:[%s0 + $0x8] sm:$0xff]
  %v80 = vld [vmem:[%s0 + $0x10] sm:$0xff]
  %v81 = vld [vmem:[%s0 + $0x18] sm:$0xff]
  %v82 = vld [vmem:[%s0 + $0x20] sm:$0xff]
  %v83 = vld [vmem:[%s0 + $0x28] sm:$0xff]
  %v84 = vld [vmem:[%s0 + $0x30] sm:$0xff]
  %v85 = vld [vmem:[%s0 + $0x38] sm:$0xff]
  %v86 = vld [vmem:[%s0 + $0x40] sm:$0xff]
  %v87 = vld [vmem:[%s0 + $0x48] sm:$0xff]
  %v88 = vld [vmem:[%s0 + $0x50] sm:$0xff]
  %v89 = vld [vmem:[%s0 + $0x58] sm:$0xff]
  %v90 = vld [vmem:[%s0 + $0x60] sm:$0xff]
  %v91 = vld [vmem:[%s0 + $0x68] sm:$0xff]
  %v92 = vld [vmem:[%s0 + $0x70] sm:$0xff]
  %v93 = vld [vmem:[%s0 + $0x78] sm:$0xff]
  %v94 = vld [vmem:[%s0 + $0x80] sm:$0xff]
  %v95 = vld [vmem:[%s0 + $0x88] sm:$0xff]
  %v96 = vld [vmem:[%s0 + $0x90] sm:$0xff]
  %v97 = vld [vmem:[%s0 + $0x98] sm:$0xff]
  %v98 = vld [vmem:[%s0 + $0xa0] sm:$0xff]
  %v99 = vld [vmem:[%s0 + $0xa8] sm:$0xff]
  %v100 = vld [vmem:[%s0 + $0xb0] sm:$0xff]
  %v101 = vld [vmem:[%s0 + $0xb8] sm:$0xff]
  %v102 = vld [vmem:[%s0 + $0xc0] sm:$0xff]
  %v103 = vld [vmem:[%s1] sm:$0xff]
  %v104 = vld [vmem:[%s1 + $0x8] sm:$0xff]
  %v105 = vld [vmem:[%s1 + $0x10] sm:$0xff]
  %v106 = vld [vmem:[%s1 + $0x18] sm:$0xff]
  %v107 = vld [vmem:[%s1 + $0x20] sm:$0xff]
  %v108 = vld [vmem:[%s1 + $0x28] sm:$0xff]
  %v109 = vld [vmem:[%s1 + $0x30] sm:$0xff]
  %v110 = vld [vmem:[%s1 + $0x38] sm:$0xff]
  %v111 = vld [vmem:[%s1 + $0x40] sm:$0xff]
  %v112 = vld [vmem:[%s1 + $0x48] sm:$0xff]
  %v113 = vld [vmem:[%s1 + $0x50] sm:$0xff]
  %v114 = vld [vmem:[%s1 + $0x58] sm:$0xff]
  %v115 = vld [vmem:[%s1 + $0x60] sm:$0xff]
  %v116 = vld [vmem:[%s1 + $0x68] sm:$0xff]
  %v117 = vld [vmem:[%s1 + $0x70] sm:$0xff]
  %v118 = vld [vmem:[%s1 + $0x78] sm:$0xff]
  %v119 = vld [vmem:[%s1 + $0x80] sm:$0xff]
  %v120 = vld [vmem:[%s1 + $0x88] sm:$0xff]
  %v121 = vld [vmem:[%s1 + $0x90] sm:$0xff]
  %v122 = vld [vmem:[%s1 + $0x98] sm:$0xff]
  %v123 = vld [vmem:[%s1 + $0xa0] sm:$0xff]
  %v124 = vld [vmem:[%s1 + $0xa8] sm:$0xff]
  %v125 = vld [vmem:[%s1 + $0xb0] sm:$0xff]
  %v126 = vld [vmem:[%s1 + $0xb8] sm:$0xff]
  %v127 = vld [vmem:[%s1 + $0xc0] sm:$0xff]
  %v128 = vsub.f32 %v78, %v103
  %v129 = vsub.f32 %v79, %v104
  %v130 = vsub.f32 %v80, %v105
  %v131 = vsub.f32 %v81, %v106
  %v132 = vsub.f32 %v82, %v107
  %v133 = vsub.f32 %v83, %v108
  %v134 = vsub.f32 %v84, %v109
  %v135 = vsub.f32 %v85, %v110
  %v136 = vsub.f32 %v86, %v111
  %v137 = vsub.f32 %v87, %v112
  %v138 = vsub.f32 %v88, %v113
  %v139 = vsub.f32 %v89, %v114
  %v140 = vsub.f32 %v90, %v115
  %v141 = vsub.f32 %v91, %v116
  %v142 = vsub.f32 %v92, %v117
  %v143 = vsub.f32 %v93, %v118
  %v144 = vsub.f32 %v94, %v119
  %v145 = vsub.f32 %v95, %v120
  %v146 = vsub.f32 %v96, %v121
  %v147 = vsub.f32 %v97, %v122
  %v148 = vsub.f32 %v98, %v123
  %v149 = vsub.f32 %v99, %v124
  %v150 = vsub.f32 %v100, %v125
  %v151 = vsub.f32 %v101, %v126
  %v152 = vsub.f32 %v102, %v127
  %v153 = vmul.f32 %v128, %v128
  %v154 = vmul.f32 %v129, %v129
  %v155 = vmul.f32 %v130, %v130
  %v156 = vmul.f32 %v131, %v131
  %v157 = vmul.f32 %v132, %v132
  %v158 = vmul.f32 %v133, %v133
  %v159 = vmul.f32 %v134, %v134
  %v160 = vmul.f32 %v135, %v135
  %v161 = vmul.f32 %v136, %v136
  %v162 = vmul.f32 %v137, %v137
  %v163 = vmul.f32 %v138, %v138
  %v164 = vmul.f32 %v139, %v139
  %v165 = vmul.f32 %v140, %v140
  %v166 = vmul.f32 %v141, %v141
  %v167 = vmul.f32 %v142, %v142
  %v168 = vmul.f32 %v143, %v143
  %v169 = vmul.f32 %v144, %v144
  %v170 = vmul.f32 %v145, %v145
  %v171 = vmul.f32 %v146, %v146
  %v172 = vmul.f32 %v147, %v147
  %v173 = vmul.f32 %v148, %v148
  %v174 = vmul.f32 %v149, %v149
  %v175 = vmul.f32 %v150, %v150
  %v176 = vmul.f32 %v151, %v151
  %v177 = vmul.f32 %v152, %v152
  %vm178 = vcmask 23552
  %v179 = vsel %vm178, %v153, 0.0
  %180 = vadd.xlane.f32.xlu0 %v179
  %v181 = vpop.xlane.xlu0 %180
  %v182 = vsel %vm178, %v154, 0.0
  %183 = vadd.xlane.f32.xlu0 %v182
  %v184 = vpop.xlane.xlu0 %183
  %v185 = vsel %vm178, %v155, 0.0
  %186 = vadd.xlane.f32.xlu0 %v185
  %v187 = vpop.xlane.xlu0 %186
  %v188 = vsel %vm178, %v156, 0.0
  %189 = vadd.xlane.f32.xlu0 %v188
  %v190 = vpop.xlane.xlu0 %189
  %v191 = vsel %vm178, %v157, 0.0
  %192 = vadd.xlane.f32.xlu0 %v191
  %v193 = vpop.xlane.xlu0 %192
  %v194 = vsel %vm178, %v158, 0.0
  %195 = vadd.xlane.f32.xlu0 %v194
  %v196 = vpop.xlane.xlu0 %195
  %v197 = vsel %vm178, %v159, 0.0
  %198 = vadd.xlane.f32.xlu0 %v197
  %v199 = vpop.xlane.xlu0 %198
  %v200 = vsel %vm178, %v160, 0.0
  %201 = vadd.xlane.f32.xlu0 %v200
  %v202 = vpop.xlane.xlu0 %201
  %v203 = vsel %vm178, %v161, 0.0
  %204 = vadd.xlane.f32.xlu0 %v203
  %v205 = vpop.xlane.xlu0 %204
  %v206 = vsel %vm178, %v162, 0.0
  %207 = vadd.xlane.f32.xlu0 %v206
  %v208 = vpop.xlane.xlu0 %207
  %v209 = vsel %vm178, %v163, 0.0
  %210 = vadd.xlane.f32.xlu0 %v209
  %v211 = vpop.xlane.xlu0 %210
  %v212 = vsel %vm178, %v164, 0.0
  %213 = vadd.xlane.f32.xlu0 %v212
  %v214 = vpop.xlane.xlu0 %213
  %v215 = vsel %vm178, %v165, 0.0
  %216 = vadd.xlane.f32.xlu0 %v215
  %v217 = vpop.xlane.xlu0 %216
  %v218 = vsel %vm178, %v166, 0.0
  %219 = vadd.xlane.f32.xlu0 %v218
  %v220 = vpop.xlane.xlu0 %219
  %v221 = vsel %vm178, %v167, 0.0
  %222 = vadd.xlane.f32.xlu0 %v221
  %v223 = vpop.xlane.xlu0 %222
  %v224 = vsel %vm178, %v168, 0.0
  %225 = vadd.xlane.f32.xlu0 %v224
  %v226 = vpop.xlane.xlu0 %225
  %v227 = vsel %vm178, %v169, 0.0
  %228 = vadd.xlane.f32.xlu0 %v227
  %v229 = vpop.xlane.xlu0 %228
  %v230 = vsel %vm178, %v170, 0.0
  %231 = vadd.xlane.f32.xlu0 %v230
  %v232 = vpop.xlane.xlu0 %231
  %v233 = vsel %vm178, %v171, 0.0
  %234 = vadd.xlane.f32.xlu0 %v233
  %v235 = vpop.xlane.xlu0 %234
  %v236 = vsel %vm178, %v172, 0.0
  %237 = vadd.xlane.f32.xlu0 %v236
  %v238 = vpop.xlane.xlu0 %237
  %v239 = vsel %vm178, %v173, 0.0
  %240 = vadd.xlane.f32.xlu0 %v239
  %v241 = vpop.xlane.xlu0 %240
  %v242 = vsel %vm178, %v174, 0.0
  %243 = vadd.xlane.f32.xlu0 %v242
  %v244 = vpop.xlane.xlu0 %243
  %v245 = vsel %vm178, %v175, 0.0
  %246 = vadd.xlane.f32.xlu0 %v245
  %v247 = vpop.xlane.xlu0 %246
  %v248 = vsel %vm178, %v176, 0.0
  %249 = vadd.xlane.f32.xlu0 %v248
  %v250 = vpop.xlane.xlu0 %249
  %v251 = vsel %vm178, %v177, 0.0
  %252 = vadd.xlane.f32.xlu0 %v251
  %v253 = vpop.xlane.xlu0 %252
  %v254 = vrsqrt.pop %v181
  %v255 = vmul.f32 %v181, %v254
  %vm256 = vcmp.eq.f32.partialorder %v181, inf
  %v257 = vsel %vm256, %v181, %v255
  %vm258 = vcmp.eq.f32.partialorder %v181, 0.0
  %v259 = vand.u32 %v181, 2147483648
  %v260 = vsel %vm258, %v259, %v257
  %v261 = vrsqrt.pop %v184
  %v262 = vmul.f32 %v184, %v261
  %vm263 = vcmp.eq.f32.partialorder %v184, inf
  %v264 = vsel %vm263, %v184, %v262
  %vm265 = vcmp.eq.f32.partialorder %v184, 0.0
  %v266 = vand.u32 %v184, 2147483648
  %v267 = vsel %vm265, %v266, %v264
  %v268 = vrsqrt.pop %v187
  %v269 = vmul.f32 %v187, %v268
  %vm270 = vcmp.eq.f32.partialorder %v187, inf
  %v271 = vsel %vm270, %v187, %v269
  %vm272 = vcmp.eq.f32.partialorder %v187, 0.0
  %v273 = vand.u32 %v187, 2147483648
  %v274 = vsel %vm272, %v273, %v271
  %v275 = vrsqrt.pop %v190
  %v276 = vmul.f32 %v190, %v275
  %vm277 = vcmp.eq.f32.partialorder %v190, inf
  %v278 = vsel %vm277, %v190, %v276
  %vm279 = vcmp.eq.f32.partialorder %v190, 0.0
  %v280 = vand.u32 %v190, 2147483648
  %v281 = vsel %vm279, %v280, %v278
  %v282 = vrsqrt.pop %v193
  %v283 = vmul.f32 %v193, %v282
  %vm284 = vcmp.eq.f32.partialorder %v193, inf
  %v285 = vsel %vm284, %v193, %v283
  %vm286 = vcmp.eq.f32.partialorder %v193, 0.0
  %v287 = vand.u32 %v193, 2147483648
  %v288 = vsel %vm286, %v287, %v285
  %v289 = vrsqrt.pop %v196
  %v290 = vmul.f32 %v196, %v289
  %vm291 = vcmp.eq.f32.partialorder %v196, inf
  %v292 = vsel %vm291, %v196, %v290
  %vm293 = vcmp.eq.f32.partialorder %v196, 0.0
  %v294 = vand.u32 %v196, 2147483648
  %v295 = vsel %vm293, %v294, %v292
  %v296 = vrsqrt.pop %v199
  %v297 = vmul.f32 %v199, %v296
  %vm298 = vcmp.eq.f32.partialorder %v199, inf
  %v299 = vsel %vm298, %v199, %v297
  %vm300 = vcmp.eq.f32.partialorder %v199, 0.0
  %v301 = vand.u32 %v199, 2147483648
  %v302 = vsel %vm300, %v301, %v299
  %v303 = vrsqrt.pop %v202
  %v304 = vmul.f32 %v202, %v303
  %vm305 = vcmp.eq.f32.partialorder %v202, inf
  %v306 = vsel %vm305, %v202, %v304
  %vm307 = vcmp.eq.f32.partialorder %v202, 0.0
  %v308 = vand.u32 %v202, 2147483648
  %v309 = vsel %vm307, %v308, %v306
  %v310 = vrsqrt.pop %v205
  %v311 = vmul.f32 %v205, %v310
  %vm312 = vcmp.eq.f32.partialorder %v205, inf
  %v313 = vsel %vm312, %v205, %v311
  %vm314 = vcmp.eq.f32.partialorder %v205, 0.0
  %v315 = vand.u32 %v205, 2147483648
  %v316 = vsel %vm314, %v315, %v313
  %v317 = vrsqrt.pop %v208
  %v318 = vmul.f32 %v208, %v317
  %vm319 = vcmp.eq.f32.partialorder %v208, inf
  %v320 = vsel %vm319, %v208, %v318
  %vm321 = vcmp.eq.f32.partialorder %v208, 0.0
  %v322 = vand.u32 %v208, 2147483648
  %v323 = vsel %vm321, %v322, %v320
  %v324 = vrsqrt.pop %v211
  %v325 = vmul.f32 %v211, %v324
  %vm326 = vcmp.eq.f32.partialorder %v211, inf
  %v327 = vsel %vm326, %v211, %v325
  %vm328 = vcmp.eq.f32.partialorder %v211, 0.0
  %v329 = vand.u32 %v211, 2147483648
  %v330 = vsel %vm328, %v329, %v327
  %v331 = vrsqrt.pop %v214
  %v332 = vmul.f32 %v214, %v331
  %vm333 = vcmp.eq.f32.partialorder %v214, inf
  %v334 = vsel %vm333, %v214, %v332
  %vm335 = vcmp.eq.f32.partialorder %v214, 0.0
  %v336 = vand.u32 %v214, 2147483648
  %v337 = vsel %vm335, %v336, %v334
  %v338 = vrsqrt.pop %v217
  %v339 = vmul.f32 %v217, %v338
  %vm340 = vcmp.eq.f32.partialorder %v217, inf
  %v341 = vsel %vm340, %v217, %v339
  %vm342 = vcmp.eq.f32.partialorder %v217, 0.0
  %v343 = vand.u32 %v217, 2147483648
  %v344 = vsel %vm342, %v343, %v341
  %v345 = vrsqrt.pop %v220
  %v346 = vmul.f32 %v220, %v345
  %vm347 = vcmp.eq.f32.partialorder %v220, inf
  %v348 = vsel %vm347, %v220, %v346
  %vm349 = vcmp.eq.f32.partialorder %v220, 0.0
  %v350 = vand.u32 %v220, 2147483648
  %v351 = vsel %vm349, %v350, %v348
  %v352 = vrsqrt.pop %v223
  %v353 = vmul.f32 %v223, %v352
  %vm354 = vcmp.eq.f32.partialorder %v223, inf
  %v355 = vsel %vm354, %v223, %v353
  %vm356 = vcmp.eq.f32.partialorder %v223, 0.0
  %v357 = vand.u32 %v223, 2147483648
  %v358 = vsel %vm356, %v357, %v355
  %v359 = vrsqrt.pop %v226
  %v360 = vmul.f32 %v226, %v359
  %vm361 = vcmp.eq.f32.partialorder %v226, inf
  %v362 = vsel %vm361, %v226, %v360
  %vm363 = vcmp.eq.f32.partialorder %v226, 0.0
  %v364 = vand.u32 %v226, 2147483648
  %v365 = vsel %vm363, %v364, %v362
  %v366 = vrsqrt.pop %v229
  %v367 = vmul.f32 %v229, %v366
  %vm368 = vcmp.eq.f32.partialorder %v229, inf
  %v369 = vsel %vm368, %v229, %v367
  %vm370 = vcmp.eq.f32.partialorder %v229, 0.0
  %v371 = vand.u32 %v229, 2147483648
  %v372 = vsel %vm370, %v371, %v369
  %v373 = vrsqrt.pop %v232
  %v374 = vmul.f32 %v232, %v373
  %vm375 = vcmp.eq.f32.partialorder %v232, inf
  %v376 = vsel %vm375, %v232, %v374
  %vm377 = vcmp.eq.f32.partialorder %v232, 0.0
  %v378 = vand.u32 %v232, 2147483648
  %v379 = vsel %vm377, %v378, %v376
  %v380 = vrsqrt.pop %v235
  %v381 = vmul.f32 %v235, %v380
  %vm382 = vcmp.eq.f32.partialorder %v235, inf
  %v383 = vsel %vm382, %v235, %v381
  %vm384 = vcmp.eq.f32.partialorder %v235, 0.0
  %v385 = vand.u32 %v235, 2147483648
  %v386 = vsel %vm384, %v385, %v383
  %v387 = vrsqrt.pop %v238
  %v388 = vmul.f32 %v238, %v387
  %vm389 = vcmp.eq.f32.partialorder %v238, inf
  %v390 = vsel %vm389, %v238, %v388
  %vm391 = vcmp.eq.f32.partialorder %v238, 0.0
  %v392 = vand.u32 %v238, 2147483648
  %v393 = vsel %vm391, %v392, %v390
  %v394 = vrsqrt.pop %v241
  %v395 = vmul.f32 %v241, %v394
  %vm396 = vcmp.eq.f32.partialorder %v241, inf
  %v397 = vsel %vm396, %v241, %v395
  %vm398 = vcmp.eq.f32.partialorder %v241, 0.0
  %v399 = vand.u32 %v241, 2147483648
  %v400 = vsel %vm398, %v399, %v397
  %v401 = vrsqrt.pop %v244
  %v402 = vmul.f32 %v244, %v401
  %vm403 = vcmp.eq.f32.partialorder %v244, inf
  %v404 = vsel %vm403, %v244, %v402
  %vm405 = vcmp.eq.f32.partialorder %v244, 0.0
  %v406 = vand.u32 %v244, 2147483648
  %v407 = vsel %vm405, %v406, %v404
  %v408 = vrsqrt.pop %v247
  %v409 = vmul.f32 %v247, %v408
  %vm410 = vcmp.eq.f32.partialorder %v247, inf
  %v411 = vsel %vm410, %v247, %v409
  %vm412 = vcmp.eq.f32.partialorder %v247, 0.0
  %v413 = vand.u32 %v247, 2147483648
  %v414 = vsel %vm412, %v413, %v411
  %v415 = vrsqrt.pop %v250
  %v416 = vmul.f32 %v250, %v415
  %vm417 = vcmp.eq.f32.partialorder %v250, inf
  %v418 = vsel %vm417, %v250, %v416
  %vm419 = vcmp.eq.f32.partialorder %v250, 0.0
  %v420 = vand.u32 %v250, 2147483648
  %v421 = vsel %vm419, %v420, %v418
  %v422 = vrsqrt.pop %v253
  %v423 = vmul.f32 %v253, %v422
  %vm424 = vcmp.eq.f32.partialorder %v253, inf
  %v425 = vsel %vm424, %v253, %v423
  %vm426 = vcmp.eq.f32.partialorder %v253, 0.0
  %v427 = vand.u32 %v253, 2147483648
  %v428 = vsel %vm426, %v427, %v425
  %v429 = vld [vmem:[%s5] sm:$0x7]
  %v430 = vld [vmem:[%s6] sm:$0x1]
  %v432 = vlaneseq
  %v433 = vshrl.u32 %v432, 7
  %v434 = vsub.s32 0, %v433
  %v435 = vrot.slane %v430, %v434
  %v437 = vmul.f32 %v260, %v435
  %v438 = vmul.f32 %v267, %v435
  %v439 = vmul.f32 %v274, %v435
  %v440 = vmul.f32 %v281, %v435
  %v441 = vmul.f32 %v288, %v435
  %v442 = vmul.f32 %v295, %v435
  %v443 = vmul.f32 %v302, %v435
  %v444 = vmul.f32 %v309, %v435
  %v445 = vmul.f32 %v316, %v435
  %v446 = vmul.f32 %v323, %v435
  %v447 = vmul.f32 %v330, %v435
  %v448 = vmul.f32 %v337, %v435
  %v449 = vmul.f32 %v344, %v435
  %v450 = vmul.f32 %v351, %v435
  %v451 = vmul.f32 %v358, %v435
  %v452 = vmul.f32 %v365, %v435
  %v453 = vmul.f32 %v372, %v435
  %v454 = vmul.f32 %v379, %v435
  %v455 = vmul.f32 %v386, %v435
  %v456 = vmul.f32 %v393, %v435
  %v457 = vmul.f32 %v400, %v435
  %v458 = vmul.f32 %v407, %v435
  %v459 = vmul.f32 %v414, %v435
  %v460 = vmul.f32 %v421, %v435
  %v461 = vmul.f32 %v428, %v435
  %v462 = vld [vmem:[%s8] sm:$0x1]
  %v464 = vlaneseq
  %v465 = vshrl.u32 %v464, 7
  %v466 = vsub.s32 0, %v465
  %v467 = vrot.slane %v462, %v466
  %v469 = vadd.f32 %v437, %v467
  %v470 = vadd.f32 %v438, %v467
  %v471 = vadd.f32 %v439, %v467
  %v472 = vadd.f32 %v440, %v467
  %v473 = vadd.f32 %v441, %v467
  %v474 = vadd.f32 %v442, %v467
  %v475 = vadd.f32 %v443, %v467
  %v476 = vadd.f32 %v444, %v467
  %v477 = vadd.f32 %v445, %v467
  %v478 = vadd.f32 %v446, %v467
  %v479 = vadd.f32 %v447, %v467
  %v480 = vadd.f32 %v448, %v467
  %v481 = vadd.f32 %v449, %v467
  %v482 = vadd.f32 %v450, %v467
  %v483 = vadd.f32 %v451, %v467
  %v484 = vadd.f32 %v452, %v467
  %v485 = vadd.f32 %v453, %v467
  %v486 = vadd.f32 %v454, %v467
  %v487 = vadd.f32 %v455, %v467
  %v488 = vadd.f32 %v456, %v467
  %v489 = vadd.f32 %v457, %v467
  %v490 = vadd.f32 %v458, %v467
  %v491 = vadd.f32 %v459, %v467
  %v492 = vadd.f32 %v460, %v467
  %v493 = vadd.f32 %v461, %v467
  %495 = vset.pattern.permute.xlu0 0
  %496 = vperm.xlu0 %495, %v128
  %v497 = vpop.permute.xlu0 %496
  %500 = vset.pattern.permute.xlu0 0
  %501 = vperm.xlu0 %500, %v129
  %v502 = vpop.permute.xlu0 %501
  %505 = vset.pattern.permute.xlu0 0
  %506 = vperm.xlu0 %505, %v130
  %v507 = vpop.permute.xlu0 %506
  %510 = vset.pattern.permute.xlu0 0
  %511 = vperm.xlu0 %510, %v131
  %v512 = vpop.permute.xlu0 %511
  %515 = vset.pattern.permute.xlu0 0
  %516 = vperm.xlu0 %515, %v132
  %v517 = vpop.permute.xlu0 %516
  %520 = vset.pattern.permute.xlu0 0
  %521 = vperm.xlu0 %520, %v133
  %v522 = vpop.permute.xlu0 %521
  %525 = vset.pattern.permute.xlu0 0
  %526 = vperm.xlu0 %525, %v134
  %v527 = vpop.permute.xlu0 %526
  %530 = vset.pattern.permute.xlu0 0
  %531 = vperm.xlu0 %530, %v135
  %v532 = vpop.permute.xlu0 %531
  %535 = vset.pattern.permute.xlu0 0
  %536 = vperm.xlu0 %535, %v136
  %v537 = vpop.permute.xlu0 %536
  %540 = vset.pattern.permute.xlu0 0
  %541 = vperm.xlu0 %540, %v137
  %v542 = vpop.permute.xlu0 %541
  %545 = vset.pattern.permute.xlu0 0
  %546 = vperm.xlu0 %545, %v138
  %v547 = vpop.permute.xlu0 %546
  %550 = vset.pattern.permute.xlu0 0
  %551 = vperm.xlu0 %550, %v139
  %v552 = vpop.permute.xlu0 %551
  %555 = vset.pattern.permute.xlu0 0
  %556 = vperm.xlu0 %555, %v140
  %v557 = vpop.permute.xlu0 %556
  %560 = vset.pattern.permute.xlu0 0
  %561 = vperm.xlu0 %560, %v141
  %v562 = vpop.permute.xlu0 %561
  %565 = vset.pattern.permute.xlu0 0
  %566 = vperm.xlu0 %565, %v142
  %v567 = vpop.permute.xlu0 %566
  %570 = vset.pattern.permute.xlu0 0
  %571 = vperm.xlu0 %570, %v143
  %v572 = vpop.permute.xlu0 %571
  %575 = vset.pattern.permute.xlu0 0
  %576 = vperm.xlu0 %575, %v144
  %v577 = vpop.permute.xlu0 %576
  %580 = vset.pattern.permute.xlu0 0
  %581 = vperm.xlu0 %580, %v145
  %v582 = vpop.permute.xlu0 %581
  %585 = vset.pattern.permute.xlu0 0
  %586 = vperm.xlu0 %585, %v146
  %v587 = vpop.permute.xlu0 %586
  %590 = vset.pattern.permute.xlu0 0
  %591 = vperm.xlu0 %590, %v147
  %v592 = vpop.permute.xlu0 %591
  %595 = vset.pattern.permute.xlu0 0
  %596 = vperm.xlu0 %595, %v148
  %v597 = vpop.permute.xlu0 %596
  %600 = vset.pattern.permute.xlu0 0
  %601 = vperm.xlu0 %600, %v149
  %v602 = vpop.permute.xlu0 %601
  %605 = vset.pattern.permute.xlu0 0
  %606 = vperm.xlu0 %605, %v150
  %v607 = vpop.permute.xlu0 %606
  %610 = vset.pattern.permute.xlu0 0
  %611 = vperm.xlu0 %610, %v151
  %v612 = vpop.permute.xlu0 %611
  %615 = vset.pattern.permute.xlu0 0
  %616 = vperm.xlu0 %615, %v152
  %v617 = vpop.permute.xlu0 %616
  %v619 = vlaneseq
  %v620 = vshrl.u32 %v619, 7
  %v621 = vsub.s32 0, %v620
  %v622 = vrot.slane %v429, %v621
  %v623 = vmul.f32 %v497, %v622
  %v624 = vmul.f32 %v502, %v622
  %v625 = vmul.f32 %v507, %v622
  %v626 = vmul.f32 %v512, %v622
  %v627 = vmul.f32 %v517, %v622
  %v628 = vmul.f32 %v522, %v622
  %v629 = vmul.f32 %v527, %v622
  %v630 = vmul.f32 %v532, %v622
  %v631 = vmul.f32 %v537, %v622
  %v632 = vmul.f32 %v542, %v622
  %v633 = vmul.f32 %v547, %v622
  %v634 = vmul.f32 %v552, %v622
  %v635 = vmul.f32 %v557, %v622
  %v636 = vmul.f32 %v562, %v622
  %v637 = vmul.f32 %v567, %v622
  %v638 = vmul.f32 %v572, %v622
  %v639 = vmul.f32 %v577, %v622
  %v640 = vmul.f32 %v582, %v622
  %v641 = vmul.f32 %v587, %v622
  %v642 = vmul.f32 %v592, %v622
  %v643 = vmul.f32 %v597, %v622
  %v644 = vmul.f32 %v602, %v622
  %v645 = vmul.f32 %v607, %v622
  %v646 = vmul.f32 %v612, %v622
  %v647 = vmul.f32 %v617, %v622
  %v648 = vadd.f32 %v469, %v623
  %v649 = vadd.f32 %v470, %v624
  %v650 = vadd.f32 %v471, %v625
  %v651 = vadd.f32 %v472, %v626
  %v652 = vadd.f32 %v473, %v627
  %v653 = vadd.f32 %v474, %v628
  %v654 = vadd.f32 %v475, %v629
  %v655 = vadd.f32 %v476, %v630
  %v656 = vadd.f32 %v477, %v631
  %v657 = vadd.f32 %v478, %v632
  %v658 = vadd.f32 %v479, %v633
  %v659 = vadd.f32 %v480, %v634
  %v660 = vadd.f32 %v481, %v635
  %v661 = vadd.f32 %v482, %v636
  %v662 = vadd.f32 %v483, %v637
  %v663 = vadd.f32 %v484, %v638
  %v664 = vadd.f32 %v485, %v639
  %v665 = vadd.f32 %v486, %v640
  %v666 = vadd.f32 %v487, %v641
  %v667 = vadd.f32 %v488, %v642
  %v668 = vadd.f32 %v489, %v643
  %v669 = vadd.f32 %v490, %v644
  %v670 = vadd.f32 %v491, %v645
  %v671 = vadd.f32 %v492, %v646
  %v672 = vadd.f32 %v493, %v647
  %673 = vset.pattern.permute.xlu0 1
  %674 = vperm.xlu0 %673, %v128
  %v675 = vpop.permute.xlu0 %674
  %677 = vset.pattern.permute.xlu0 1
  %678 = vperm.xlu0 %677, %v129
  %v679 = vpop.permute.xlu0 %678
  %681 = vset.pattern.permute.xlu0 1
  %682 = vperm.xlu0 %681, %v130
  %v683 = vpop.permute.xlu0 %682
  %685 = vset.pattern.permute.xlu0 1
  %686 = vperm.xlu0 %685, %v131
  %v687 = vpop.permute.xlu0 %686
  %689 = vset.pattern.permute.xlu0 1
  %690 = vperm.xlu0 %689, %v132
  %v691 = vpop.permute.xlu0 %690
  %693 = vset.pattern.permute.xlu0 1
  %694 = vperm.xlu0 %693, %v133
  %v695 = vpop.permute.xlu0 %694
  %697 = vset.pattern.permute.xlu0 1
  %698 = vperm.xlu0 %697, %v134
  %v699 = vpop.permute.xlu0 %698
  %701 = vset.pattern.permute.xlu0 1
  %702 = vperm.xlu0 %701, %v135
  %v703 = vpop.permute.xlu0 %702
  %705 = vset.pattern.permute.xlu0 1
  %706 = vperm.xlu0 %705, %v136
  %v707 = vpop.permute.xlu0 %706
  %709 = vset.pattern.permute.xlu0 1
  %710 = vperm.xlu0 %709, %v137
  %v711 = vpop.permute.xlu0 %710
  %713 = vset.pattern.permute.xlu0 1
  %714 = vperm.xlu0 %713, %v138
  %v715 = vpop.permute.xlu0 %714
  %717 = vset.pattern.permute.xlu0 1
  %718 = vperm.xlu0 %717, %v139
  %v719 = vpop.permute.xlu0 %718
  %721 = vset.pattern.permute.xlu0 1
  %722 = vperm.xlu0 %721, %v140
  %v723 = vpop.permute.xlu0 %722
  %725 = vset.pattern.permute.xlu0 1
  %726 = vperm.xlu0 %725, %v141
  %v727 = vpop.permute.xlu0 %726
  %729 = vset.pattern.permute.xlu0 1
  %730 = vperm.xlu0 %729, %v142
  %v731 = vpop.permute.xlu0 %730
  %733 = vset.pattern.permute.xlu0 1
  %734 = vperm.xlu0 %733, %v143
  %v735 = vpop.permute.xlu0 %734
  %737 = vset.pattern.permute.xlu0 1
  %738 = vperm.xlu0 %737, %v144
  %v739 = vpop.permute.xlu0 %738
  %741 = vset.pattern.permute.xlu0 1
  %742 = vperm.xlu0 %741, %v145
  %v743 = vpop.permute.xlu0 %742
  %745 = vset.pattern.permute.xlu0 1
  %746 = vperm.xlu0 %745, %v146
  %v747 = vpop.permute.xlu0 %746
  %749 = vset.pattern.permute.xlu0 1
  %750 = vperm.xlu0 %749, %v147
  %v751 = vpop.permute.xlu0 %750
  %753 = vset.pattern.permute.xlu0 1
  %754 = vperm.xlu0 %753, %v148
  %v755 = vpop.permute.xlu0 %754
  %757 = vset.pattern.permute.xlu0 1
  %758 = vperm.xlu0 %757, %v149
  %v759 = vpop.permute.xlu0 %758
  %761 = vset.pattern.permute.xlu0 1
  %762 = vperm.xlu0 %761, %v150
  %v763 = vpop.permute.xlu0 %762
  %765 = vset.pattern.permute.xlu0 1
  %766 = vperm.xlu0 %765, %v151
  %v767 = vpop.permute.xlu0 %766
  %769 = vset.pattern.permute.xlu0 1
  %770 = vperm.xlu0 %769, %v152
  %v771 = vpop.permute.xlu0 %770
  %v773 = vlaneseq
  %v774 = vshrl.u32 %v773, 7
  %v775 = vsub.s32 1, %v774
  %v776 = vrot.slane %v429, %v775
  %v777 = vmul.f32 %v675, %v776
  %v778 = vmul.f32 %v679, %v776
  %v779 = vmul.f32 %v683, %v776
  %v780 = vmul.f32 %v687, %v776
  %v781 = vmul.f32 %v691, %v776
  %v782 = vmul.f32 %v695, %v776
  %v783 = vmul.f32 %v699, %v776
  %v784 = vmul.f32 %v703, %v776
  %v785 = vmul.f32 %v707, %v776
  %v786 = vmul.f32 %v711, %v776
  %v787 = vmul.f32 %v715, %v776
  %v788 = vmul.f32 %v719, %v776
  %v789 = vmul.f32 %v723, %v776
  %v790 = vmul.f32 %v727, %v776
  %v791 = vmul.f32 %v731, %v776
  %v792 = vmul.f32 %v735, %v776
  %v793 = vmul.f32 %v739, %v776
  %v794 = vmul.f32 %v743, %v776
  %v795 = vmul.f32 %v747, %v776
  %v796 = vmul.f32 %v751, %v776
  %v797 = vmul.f32 %v755, %v776
  %v798 = vmul.f32 %v759, %v776
  %v799 = vmul.f32 %v763, %v776
  %v800 = vmul.f32 %v767, %v776
  %v801 = vmul.f32 %v771, %v776
  %v802 = vadd.f32 %v648, %v777
  %v803 = vadd.f32 %v649, %v778
  %v804 = vadd.f32 %v650, %v779
  %v805 = vadd.f32 %v651, %v780
  %v806 = vadd.f32 %v652, %v781
  %v807 = vadd.f32 %v653, %v782
  %v808 = vadd.f32 %v654, %v783
  %v809 = vadd.f32 %v655, %v784
  %v810 = vadd.f32 %v656, %v785
  %v811 = vadd.f32 %v657, %v786
  %v812 = vadd.f32 %v658, %v787
  %v813 = vadd.f32 %v659, %v788
  %v814 = vadd.f32 %v660, %v789
  %v815 = vadd.f32 %v661, %v790
  %v816 = vadd.f32 %v662, %v791
  %v817 = vadd.f32 %v663, %v792
  %v818 = vadd.f32 %v664, %v793
  %v819 = vadd.f32 %v665, %v794
  %v820 = vadd.f32 %v666, %v795
  %v821 = vadd.f32 %v667, %v796
  %v822 = vadd.f32 %v668, %v797
  %v823 = vadd.f32 %v669, %v798
  %v824 = vadd.f32 %v670, %v799
  %v825 = vadd.f32 %v671, %v800
  %v826 = vadd.f32 %v672, %v801
  %827 = vset.pattern.permute.xlu0 2
  %828 = vperm.xlu0 %827, %v128
  %v829 = vpop.permute.xlu0 %828
  %831 = vset.pattern.permute.xlu0 2
  %832 = vperm.xlu0 %831, %v129
  %v833 = vpop.permute.xlu0 %832
  %835 = vset.pattern.permute.xlu0 2
  %836 = vperm.xlu0 %835, %v130
  %v837 = vpop.permute.xlu0 %836
  %839 = vset.pattern.permute.xlu0 2
  %840 = vperm.xlu0 %839, %v131
  %v841 = vpop.permute.xlu0 %840
  %843 = vset.pattern.permute.xlu0 2
  %844 = vperm.xlu0 %843, %v132
  %v845 = vpop.permute.xlu0 %844
  %847 = vset.pattern.permute.xlu0 2
  %848 = vperm.xlu0 %847, %v133
  %v849 = vpop.permute.xlu0 %848
  %851 = vset.pattern.permute.xlu0 2
  %852 = vperm.xlu0 %851, %v134
  %v853 = vpop.permute.xlu0 %852
  %855 = vset.pattern.permute.xlu0 2
  %856 = vperm.xlu0 %855, %v135
  %v857 = vpop.permute.xlu0 %856
  %859 = vset.pattern.permute.xlu0 2
  %860 = vperm.xlu0 %859, %v136
  %v861 = vpop.permute.xlu0 %860
  %863 = vset.pattern.permute.xlu0 2
  %864 = vperm.xlu0 %863, %v137
  %v865 = vpop.permute.xlu0 %864
  %867 = vset.pattern.permute.xlu0 2
  %868 = vperm.xlu0 %867, %v138
  %v869 = vpop.permute.xlu0 %868
  %871 = vset.pattern.permute.xlu0 2
  %872 = vperm.xlu0 %871, %v139
  %v873 = vpop.permute.xlu0 %872
  %875 = vset.pattern.permute.xlu0 2
  %876 = vperm.xlu0 %875, %v140
  %v877 = vpop.permute.xlu0 %876
  %879 = vset.pattern.permute.xlu0 2
  %880 = vperm.xlu0 %879, %v141
  %v881 = vpop.permute.xlu0 %880
  %883 = vset.pattern.permute.xlu0 2
  %884 = vperm.xlu0 %883, %v142
  %v885 = vpop.permute.xlu0 %884
  %887 = vset.pattern.permute.xlu0 2
  %888 = vperm.xlu0 %887, %v143
  %v889 = vpop.permute.xlu0 %888
  %891 = vset.pattern.permute.xlu0 2
  %892 = vperm.xlu0 %891, %v144
  %v893 = vpop.permute.xlu0 %892
  %895 = vset.pattern.permute.xlu0 2
  %896 = vperm.xlu0 %895, %v145
  %v897 = vpop.permute.xlu0 %896
  %899 = vset.pattern.permute.xlu0 2
  %900 = vperm.xlu0 %899, %v146
  %v901 = vpop.permute.xlu0 %900
  %903 = vset.pattern.permute.xlu0 2
  %904 = vperm.xlu0 %903, %v147
  %v905 = vpop.permute.xlu0 %904
  %907 = vset.pattern.permute.xlu0 2
  %908 = vperm.xlu0 %907, %v148
  %v909 = vpop.permute.xlu0 %908
  %911 = vset.pattern.permute.xlu0 2
  %912 = vperm.xlu0 %911, %v149
  %v913 = vpop.permute.xlu0 %912
  %915 = vset.pattern.permute.xlu0 2
  %916 = vperm.xlu0 %915, %v150
  %v917 = vpop.permute.xlu0 %916
  %919 = vset.pattern.permute.xlu0 2
  %920 = vperm.xlu0 %919, %v151
  %v921 = vpop.permute.xlu0 %920
  %923 = vset.pattern.permute.xlu0 2
  %924 = vperm.xlu0 %923, %v152
  %v925 = vpop.permute.xlu0 %924
  %v927 = vlaneseq
  %v928 = vshrl.u32 %v927, 7
  %v929 = vsub.s32 2, %v928
  %v930 = vrot.slane %v429, %v929
  %v931 = vmul.f32 %v829, %v930
  %v932 = vmul.f32 %v833, %v930
  %v933 = vmul.f32 %v837, %v930
  %v934 = vmul.f32 %v841, %v930
  %v935 = vmul.f32 %v845, %v930
  %v936 = vmul.f32 %v849, %v930
  %v937 = vmul.f32 %v853, %v930
  %v938 = vmul.f32 %v857, %v930
  %v939 = vmul.f32 %v861, %v930
  %v940 = vmul.f32 %v865, %v930
  %v941 = vmul.f32 %v869, %v930
  %v942 = vmul.f32 %v873, %v930
  %v943 = vmul.f32 %v877, %v930
  %v944 = vmul.f32 %v881, %v930
  %v945 = vmul.f32 %v885, %v930
  %v946 = vmul.f32 %v889, %v930
  %v947 = vmul.f32 %v893, %v930
  %v948 = vmul.f32 %v897, %v930
  %v949 = vmul.f32 %v901, %v930
  %v950 = vmul.f32 %v905, %v930
  %v951 = vmul.f32 %v909, %v930
  %v952 = vmul.f32 %v913, %v930
  %v953 = vmul.f32 %v917, %v930
  %v954 = vmul.f32 %v921, %v930
  %v955 = vmul.f32 %v925, %v930
  %v956 = vadd.f32 %v802, %v931
  %v957 = vadd.f32 %v803, %v932
  %v958 = vadd.f32 %v804, %v933
  %v959 = vadd.f32 %v805, %v934
  %v960 = vadd.f32 %v806, %v935
  %v961 = vadd.f32 %v807, %v936
  %v962 = vadd.f32 %v808, %v937
  %v963 = vadd.f32 %v809, %v938
  %v964 = vadd.f32 %v810, %v939
  %v965 = vadd.f32 %v811, %v940
  %v966 = vadd.f32 %v812, %v941
  %v967 = vadd.f32 %v813, %v942
  %v968 = vadd.f32 %v814, %v943
  %v969 = vadd.f32 %v815, %v944
  %v970 = vadd.f32 %v816, %v945
  %v971 = vadd.f32 %v817, %v946
  %v972 = vadd.f32 %v818, %v947
  %v973 = vadd.f32 %v819, %v948
  %v974 = vadd.f32 %v820, %v949
  %v975 = vadd.f32 %v821, %v950
  %v976 = vadd.f32 %v822, %v951
  %v977 = vadd.f32 %v823, %v952
  %v978 = vadd.f32 %v824, %v953
  %v979 = vadd.f32 %v825, %v954
  %v980 = vadd.f32 %v826, %v955
  %v981 = vld [vmem:[%s2] sm:$0xff]
  %v982 = vld [vmem:[%s2 + $0x8] sm:$0xff]
  %v983 = vld [vmem:[%s2 + $0x10] sm:$0xff]
  %v984 = vld [vmem:[%s2 + $0x18] sm:$0xff]
  %v985 = vld [vmem:[%s2 + $0x20] sm:$0xff]
  %v986 = vld [vmem:[%s2 + $0x28] sm:$0xff]
  %v987 = vld [vmem:[%s2 + $0x30] sm:$0xff]
  %v988 = vld [vmem:[%s2 + $0x38] sm:$0xff]
  %v989 = vld [vmem:[%s2 + $0x40] sm:$0xff]
  %v990 = vld [vmem:[%s2 + $0x48] sm:$0xff]
  %v991 = vld [vmem:[%s2 + $0x50] sm:$0xff]
  %v992 = vld [vmem:[%s2 + $0x58] sm:$0xff]
  %v993 = vld [vmem:[%s2 + $0x60] sm:$0xff]
  %v994 = vld [vmem:[%s2 + $0x68] sm:$0xff]
  %v995 = vld [vmem:[%s2 + $0x70] sm:$0xff]
  %v996 = vld [vmem:[%s2 + $0x78] sm:$0xff]
  %v997 = vld [vmem:[%s2 + $0x80] sm:$0xff]
  %v998 = vld [vmem:[%s2 + $0x88] sm:$0xff]
  %v999 = vld [vmem:[%s2 + $0x90] sm:$0xff]
  %v1000 = vld [vmem:[%s2 + $0x98] sm:$0xff]
  %v1001 = vld [vmem:[%s2 + $0xa0] sm:$0xff]
  %v1002 = vld [vmem:[%s2 + $0xa8] sm:$0xff]
  %v1003 = vld [vmem:[%s2 + $0xb0] sm:$0xff]
  %v1004 = vld [vmem:[%s2 + $0xb8] sm:$0xff]
  %v1005 = vld [vmem:[%s2 + $0xc0] sm:$0xff]
  %v1006 = vld [vmem:[%s7] sm:$0xff]
  %v1007 = vld [vmem:[%s7 + $0x8] sm:$0xff]
  %v1008 = vld [vmem:[%s7 + $0x10] sm:$0xff]
  %v1009 = vld [vmem:[%s7 + $0x18] sm:$0xff]
  %v1010 = vld [vmem:[%s7 + $0x20] sm:$0xff]
  %v1011 = vld [vmem:[%s7 + $0x28] sm:$0xff]
  %v1012 = vld [vmem:[%s7 + $0x30] sm:$0xff]
  %v1013 = vld [vmem:[%s7 + $0x38] sm:$0xff]
  %vm1014 = vcmask 523264
  %v1016 = vsel %vm1014, %v981, 0
  %v1019 = vsel %vm1014, %v982, 0
  %v1022 = vsel %vm1014, %v983, 0
  %v1025 = vsel %vm1014, %v984, 0
  %v1028 = vsel %vm1014, %v985, 0
  %v1031 = vsel %vm1014, %v986, 0
  %v1034 = vsel %vm1014, %v987, 0
  %v1037 = vsel %vm1014, %v988, 0
  %v1040 = vsel %vm1014, %v989, 0
  %v1043 = vsel %vm1014, %v990, 0
  %v1046 = vsel %vm1014, %v991, 0
  %v1049 = vsel %vm1014, %v992, 0
  %v1052 = vsel %vm1014, %v993, 0
  %v1055 = vsel %vm1014, %v994, 0
  %v1058 = vsel %vm1014, %v995, 0
  %v1061 = vsel %vm1014, %v996, 0
  %v1064 = vsel %vm1014, %v997, 0
  %v1067 = vsel %vm1014, %v998, 0
  %v1070 = vsel %vm1014, %v999, 0
  %v1073 = vsel %vm1014, %v1000, 0
  %v1076 = vsel %vm1014, %v1001, 0
  %v1079 = vsel %vm1014, %v1002, 0
  %v1082 = vsel %vm1014, %v1003, 0
  %v1085 = vsel %vm1014, %v1004, 0
  %v1088 = vsel %vm1014, %v1005, 0
  %1090 = vmatprep.subr.mxu0 0.0
  %1091 = vmatpush1.msra.mxu0 %v1006
  %1092 = vmatprep.subr.mxu0 0.0
  %1093 = vmatpush1.msra.mxu0 %v1007
  %1094 = vmatprep.subr.mxu0 0.0
  %1095 = vmatpush1.msra.mxu0 %v1008
  %1096 = vmatprep.subr.mxu0 0.0
  %1097 = vmatpush1.msra.mxu0 %v1009
  %1098 = vmatprep.subr.mxu0 0.0
  %1099 = vmatpush1.msra.mxu0 %v1010
  %1100 = vmatprep.subr.mxu0 0.0
  %1101 = vmatpush1.msra.mxu0 %v1011
  %1102 = vmatprep.subr.mxu0 0.0
  %1103 = vmatpush1.msra.mxu0 %v1012
  %1104 = vmatprep.subr.mxu0 0.0
  %1105 = vmatpush1.msra.mxu0 %v1013
  %1106 = vmatprep.subr.mxu0 0.0
  %1107 = vmatpush1.msra.mxu0 0.0
  %1108 = vmatprep.subr.mxu0 0.0
  %1109 = vmatpush1.msra.mxu0 0.0
  %1110 = vmatprep.subr.mxu0 0.0
  %1111 = vmatpush1.msra.mxu0 0.0
  %1112 = vmatprep.subr.mxu0 0.0
  %1113 = vmatpush1.msra.mxu0 0.0
  %1114 = vmatprep.subr.mxu0 0.0
  %1115 = vmatpush1.msra.mxu0 0.0
  %1116 = vmatprep.subr.mxu0 0.0
  %1117 = vmatpush1.msra.mxu0 0.0
  %1118 = vmatprep.subr.mxu0 0.0
  %1119 = vmatpush1.msra.mxu0 0.0
  %1120 = vmatprep.subr.mxu0 0.0
  %1121 = vmatpush1.msra.mxu0 0.0
  %1122 = vmatprep.subr.mxu0 0.0
  %1123 = vmatpush1.msra.mxu0 0.0
  %1124 = vmatprep.subr.mxu0 0.0
  %1125 = vmatpush1.msra.mxu0 0.0
  %1126 = vmatprep.subr.mxu0 0.0
  %1127 = vmatpush1.msra.mxu0 0.0
  %1128 = vmatprep.subr.mxu0 0.0
  %1129 = vmatpush1.msra.mxu0 0.0
  %1130 = vmatprep.subr.mxu0 0.0
  %1131 = vmatpush1.msra.mxu0 0.0
  %1132 = vmatprep.subr.mxu0 0.0
  %1133 = vmatpush1.msra.mxu0 0.0
  %1134 = vmatprep.subr.mxu0 0.0
  %1135 = vmatpush1.msra.mxu0 0.0
  %1136 = vmatprep.subr.mxu0 0.0
  %1137 = vmatpush1.msra.mxu0 0.0
  %1138 = vmatprep.subr.mxu0 0.0
  %1139 = vmatpush1.msra.mxu0 0.0
  %1140 = vmatprep.subr.mxu0 0.0
  %1141 = vmatpush1.msra.mxu0 0.0
  %1142 = vmatprep.subr.mxu0 0.0
  %1143 = vmatpush1.msra.mxu0 0.0
  %1144 = vmatprep.subr.mxu0 0.0
  %1145 = vmatpush1.msra.mxu0 0.0
  %1146 = vmatprep.subr.mxu0 0.0
  %1147 = vmatpush1.msra.mxu0 0.0
  %1148 = vmatprep.subr.mxu0 0.0
  %1149 = vmatpush1.msra.mxu0 0.0
  %1150 = vmatprep.subr.mxu0 0.0
  %1151 = vmatpush1.msra.mxu0 0.0
  %1152 = vmatprep.subr.mxu0 0.0
  %1153 = vmatpush1.msra.mxu0 0.0
  %1154 = vmatprep.mubr.f32.mxu0 0.0
  %1155 = vmatmul.mubr.f32.gmra.mrb[0].mxu0 %v1016
  %v1156 = vpop.f32.mrb[0].mxu0
  %v1157 = vadd.f32 0.0, %v1156
  %v1158 = vpop.f32.mrb[0].mxu0
  %1159 = vmatprep.mubr.f32.mxu0 0.0
  %1160 = vmatmul.mubr.f32.gmra.mrb[0].mxu0 %v1019
  %v1161 = vpop.f32.mrb[0].mxu0
  %v1162 = vadd.f32 0.0, %v1161
  %v1163 = vpop.f32.mrb[0].mxu0
  %1164 = vmatprep.mubr.f32.mxu0 0.0
  %1165 = vmatmul.mubr.f32.gmra.mrb[0].mxu0 %v1022
  %v1166 = vpop.f32.mrb[0].mxu0
  %v1167 = vadd.f32 0.0, %v1166
  %v1168 = vpop.f32.mrb[0].mxu0
  %1169 = vmatprep.mubr.f32.mxu0 0.0
  %1170 = vmatmul.mubr.f32.gmra.mrb[0].mxu0 %v1025
  %v1171 = vpop.f32.mrb[0].mxu0
  %v1172 = vadd.f32 0.0, %v1171
  %v1173 = vpop.f32.mrb[0].mxu0
  %1174 = vmatprep.mubr.f32.mxu0 0.0
  %1175 = vmatmul.mubr.f32.gmra.mrb[0].mxu0 %v1028
  %v1176 = vpop.f32.mrb[0].mxu0
  %v1177 = vadd.f32 0.0, %v1176
  %v1178 = vpop.f32.mrb[0].mxu0
  %1179 = vmatprep.mubr.f32.mxu0 0.0
  %1180 = vmatmul.mubr.f32.gmra.mrb[0].mxu0 %v1031
  %v1181 = vpop.f32.mrb[0].mxu0
  %v1182 = vadd.f32 0.0, %v1181
  %v1183 = vpop.f32.mrb[0].mxu0
  %1184 = vmatprep.mubr.f32.mxu0 0.0
  %1185 = vmatmul.mubr.f32.gmra.mrb[0].mxu0 %v1034
  %v1186 = vpop.f32.mrb[0].mxu0
  %v1187 = vadd.f32 0.0, %v1186
  %v1188 = vpop.f32.mrb[0].mxu0
  %1189 = vmatprep.mubr.f32.mxu0 0.0
  %1190 = vmatmul.mubr.f32.gmra.mrb[0].mxu0 %v1037
  %v1191 = vpop.f32.mrb[0].mxu0
  %v1192 = vadd.f32 0.0, %v1191
  %v1193 = vpop.f32.mrb[0].mxu0
  %1194 = vmatprep.mubr.f32.mxu0 0.0
  %1195 = vmatmul.mubr.f32.gmra.mrb[0].mxu0 %v1040
  %v1196 = vpop.f32.mrb[0].mxu0
  %v1197 = vadd.f32 0.0, %v1196
  %v1198 = vpop.f32.mrb[0].mxu0
  %1199 = vmatprep.mubr.f32.mxu0 0.0
  %1200 = vmatmul.mubr.f32.gmra.mrb[0].mxu0 %v1043
  %v1201 = vpop.f32.mrb[0].mxu0
  %v1202 = vadd.f32 0.0, %v1201
  %v1203 = vpop.f32.mrb[0].mxu0
  %1204 = vmatprep.mubr.f32.mxu0 0.0
  %1205 = vmatmul.mubr.f32.gmra.mrb[0].mxu0 %v1046
  %v1206 = vpop.f32.mrb[0].mxu0
  %v1207 = vadd.f32 0.0, %v1206
  %v1208 = vpop.f32.mrb[0].mxu0
  %1209 = vmatprep.mubr.f32.mxu0 0.0
  %1210 = vmatmul.mubr.f32.gmra.mrb[0].mxu0 %v1049
  %v1211 = vpop.f32.mrb[0].mxu0
  %v1212 = vadd.f32 0.0, %v1211
  %v1213 = vpop.f32.mrb[0].mxu0
  %1214 = vmatprep.mubr.f32.mxu0 0.0
  %1215 = vmatmul.mubr.f32.gmra.mrb[0].mxu0 %v1052
  %v1216 = vpop.f32.mrb[0].mxu0
  %v1217 = vadd.f32 0.0, %v1216
  %v1218 = vpop.f32.mrb[0].mxu0
  %1219 = vmatprep.mubr.f32.mxu0 0.0
  %1220 = vmatmul.mubr.f32.gmra.mrb[0].mxu0 %v1055
  %v1221 = vpop.f32.mrb[0].mxu0
  %v1222 = vadd.f32 0.0, %v1221
  %v1223 = vpop.f32.mrb[0].mxu0
  %1224 = vmatprep.mubr.f32.mxu0 0.0
  %1225 = vmatmul.mubr.f32.gmra.mrb[0].mxu0 %v1058
  %v1226 = vpop.f32.mrb[0].mxu0
  %v1227 = vadd.f32 0.0, %v1226
  %v1228 = vpop.f32.mrb[0].mxu0
  %1229 = vmatprep.mubr.f32.mxu0 0.0
  %1230 = vmatmul.mubr.f32.gmra.mrb[0].mxu0 %v1061
  %v1231 = vpop.f32.mrb[0].mxu0
  %v1232 = vadd.f32 0.0, %v1231
  %v1233 = vpop.f32.mrb[0].mxu0
  %1234 = vmatprep.mubr.f32.mxu0 0.0
  %1235 = vmatmul.mubr.f32.gmra.mrb[0].mxu0 %v1064
  %v1236 = vpop.f32.mrb[0].mxu0
  %v1237 = vadd.f32 0.0, %v1236
  %v1238 = vpop.f32.mrb[0].mxu0
  %1239 = vmatprep.mubr.f32.mxu0 0.0
  %1240 = vmatmul.mubr.f32.gmra.mrb[0].mxu0 %v1067
  %v1241 = vpop.f32.mrb[0].mxu0
  %v1242 = vadd.f32 0.0, %v1241
  %v1243 = vpop.f32.mrb[0].mxu0
  %1244 = vmatprep.mubr.f32.mxu0 0.0
  %1245 = vmatmul.mubr.f32.gmra.mrb[0].mxu0 %v1070
  %v1246 = vpop.f32.mrb[0].mxu0
  %v1247 = vadd.f32 0.0, %v1246
  %v1248 = vpop.f32.mrb[0].mxu0
  %1249 = vmatprep.mubr.f32.mxu0 0.0
  %1250 = vmatmul.mubr.f32.gmra.mrb[0].mxu0 %v1073
  %v1251 = vpop.f32.mrb[0].mxu0
  %v1252 = vadd.f32 0.0, %v1251
  %v1253 = vpop.f32.mrb[0].mxu0
  %1254 = vmatprep.mubr.f32.mxu0 0.0
  %1255 = vmatmul.mubr.f32.gmra.mrb[0].mxu0 %v1076
  %v1256 = vpop.f32.mrb[0].mxu0
  %v1257 = vadd.f32 0.0, %v1256
  %v1258 = vpop.f32.mrb[0].mxu0
  %1259 = vmatprep.mubr.f32.mxu0 0.0
  %1260 = vmatmul.mubr.f32.gmra.mrb[0].mxu0 %v1079
  %v1261 = vpop.f32.mrb[0].mxu0
  %v1262 = vadd.f32 0.0, %v1261
  %v1263 = vpop.f32.mrb[0].mxu0
  %1264 = vmatprep.mubr.f32.mxu0 0.0
  %1265 = vmatmul.mubr.f32.gmra.mrb[0].mxu0 %v1082
  %v1266 = vpop.f32.mrb[0].mxu0
  %v1267 = vadd.f32 0.0, %v1266
  %v1268 = vpop.f32.mrb[0].mxu0
  %1269 = vmatprep.mubr.f32.mxu0 0.0
  %1270 = vmatmul.mubr.f32.gmra.mrb[0].mxu0 %v1085
  %v1271 = vpop.f32.mrb[0].mxu0
  %v1272 = vadd.f32 0.0, %v1271
  %v1273 = vpop.f32.mrb[0].mxu0
  %1274 = vmatprep.mubr.f32.mxu0 0.0
  %1275 = vmatmul.mubr.f32.gmra.mrb[0].mxu0 %v1088
  %v1276 = vpop.f32.mrb[0].mxu0
  %v1277 = vadd.f32 0.0, %v1276
  %v1278 = vpop.f32.mrb[0].mxu0
  %1279 = vdwg.mxu0
  %v1280 = vadd.f32 %v956, %v1157
  %v1281 = vadd.f32 %v957, %v1162
  %v1282 = vadd.f32 %v958, %v1167
  %v1283 = vadd.f32 %v959, %v1172
  %v1284 = vadd.f32 %v960, %v1177
  %v1285 = vadd.f32 %v961, %v1182
  %v1286 = vadd.f32 %v962, %v1187
  %v1287 = vadd.f32 %v963, %v1192
  %v1288 = vadd.f32 %v964, %v1197
  %v1289 = vadd.f32 %v965, %v1202
  %v1290 = vadd.f32 %v966, %v1207
  %v1291 = vadd.f32 %v967, %v1212
  %v1292 = vadd.f32 %v968, %v1217
  %v1293 = vadd.f32 %v969, %v1222
  %v1294 = vadd.f32 %v970, %v1227
  %v1295 = vadd.f32 %v971, %v1232
  %v1296 = vadd.f32 %v972, %v1237
  %v1297 = vadd.f32 %v973, %v1242
  %v1298 = vadd.f32 %v974, %v1247
  %v1299 = vadd.f32 %v975, %v1252
  %v1300 = vadd.f32 %v976, %v1257
  %v1301 = vadd.f32 %v977, %v1262
  %v1302 = vadd.f32 %v978, %v1267
  %v1303 = vadd.f32 %v979, %v1272
  %v1304 = vadd.f32 %v980, %v1277
  %v1305 = vxor.u32 %v1280, 2147483648
  %v1306 = vxor.u32 %v1281, 2147483648
  %v1307 = vxor.u32 %v1282, 2147483648
  %v1308 = vxor.u32 %v1283, 2147483648
  %v1309 = vxor.u32 %v1284, 2147483648
  %v1310 = vxor.u32 %v1285, 2147483648
  %v1311 = vxor.u32 %v1286, 2147483648
  %v1312 = vxor.u32 %v1287, 2147483648
  %v1313 = vxor.u32 %v1288, 2147483648
  %v1314 = vxor.u32 %v1289, 2147483648
  %v1315 = vxor.u32 %v1290, 2147483648
  %v1316 = vxor.u32 %v1291, 2147483648
  %v1317 = vxor.u32 %v1292, 2147483648
  %v1318 = vxor.u32 %v1293, 2147483648
  %v1319 = vxor.u32 %v1294, 2147483648
  %v1320 = vxor.u32 %v1295, 2147483648
  %v1321 = vxor.u32 %v1296, 2147483648
  %v1322 = vxor.u32 %v1297, 2147483648
  %v1323 = vxor.u32 %v1298, 2147483648
  %v1324 = vxor.u32 %v1299, 2147483648
  %v1325 = vxor.u32 %v1300, 2147483648
  %v1326 = vxor.u32 %v1301, 2147483648
  %v1327 = vxor.u32 %v1302, 2147483648
  %v1328 = vxor.u32 %v1303, 2147483648
  %v1329 = vxor.u32 %v1304, 2147483648
  %v1330 = vmul.f32 %v1305, 1.442695
  %v1331 = vpow.pop %v1330
  %v1332 = vmul.f32 %v1306, 1.442695
  %v1333 = vpow.pop %v1332
  %v1334 = vmul.f32 %v1307, 1.442695
  %v1335 = vpow.pop %v1334
  %v1336 = vmul.f32 %v1308, 1.442695
  %v1337 = vpow.pop %v1336
  %v1338 = vmul.f32 %v1309, 1.442695
  %v1339 = vpow.pop %v1338
  %v1340 = vmul.f32 %v1310, 1.442695
  %v1341 = vpow.pop %v1340
  %v1342 = vmul.f32 %v1311, 1.442695
  %v1343 = vpow.pop %v1342
  %v1344 = vmul.f32 %v1312, 1.442695
  %v1345 = vpow.pop %v1344
  %v1346 = vmul.f32 %v1313, 1.442695
  %v1347 = vpow.pop %v1346
  %v1348 = vmul.f32 %v1314, 1.442695
  %v1349 = vpow.pop %v1348
  %v1350 = vmul.f32 %v1315, 1.442695
  %v1351 = vpow.pop %v1350
  %v1352 = vmul.f32 %v1316, 1.442695
  %v1353 = vpow.pop %v1352
  %v1354 = vmul.f32 %v1317, 1.442695
  %v1355 = vpow.pop %v1354
  %v1356 = vmul.f32 %v1318, 1.442695
  %v1357 = vpow.pop %v1356
  %v1358 = vmul.f32 %v1319, 1.442695
  %v1359 = vpow.pop %v1358
  %v1360 = vmul.f32 %v1320, 1.442695
  %v1361 = vpow.pop %v1360
  %v1362 = vmul.f32 %v1321, 1.442695
  %v1363 = vpow.pop %v1362
  %v1364 = vmul.f32 %v1322, 1.442695
  %v1365 = vpow.pop %v1364
  %v1366 = vmul.f32 %v1323, 1.442695
  %v1367 = vpow.pop %v1366
  %v1368 = vmul.f32 %v1324, 1.442695
  %v1369 = vpow.pop %v1368
  %v1370 = vmul.f32 %v1325, 1.442695
  %v1371 = vpow.pop %v1370
  %v1372 = vmul.f32 %v1326, 1.442695
  %v1373 = vpow.pop %v1372
  %v1374 = vmul.f32 %v1327, 1.442695
  %v1375 = vpow.pop %v1374
  %v1376 = vmul.f32 %v1328, 1.442695
  %v1377 = vpow.pop %v1376
  %v1378 = vmul.f32 %v1329, 1.442695
  %v1379 = vpow.pop %v1378
  %v1380 = vadd.f32 %v1331, 1.0
  %v1381 = vadd.f32 %v1333, 1.0
  %v1382 = vadd.f32 %v1335, 1.0
  %v1383 = vadd.f32 %v1337, 1.0
  %v1384 = vadd.f32 %v1339, 1.0
  %v1385 = vadd.f32 %v1341, 1.0
  %v1386 = vadd.f32 %v1343, 1.0
  %v1387 = vadd.f32 %v1345, 1.0
  %v1388 = vadd.f32 %v1347, 1.0
  %v1389 = vadd.f32 %v1349, 1.0
  %v1390 = vadd.f32 %v1351, 1.0
  %v1391 = vadd.f32 %v1353, 1.0
  %v1392 = vadd.f32 %v1355, 1.0
  %v1393 = vadd.f32 %v1357, 1.0
  %v1394 = vadd.f32 %v1359, 1.0
  %v1395 = vadd.f32 %v1361, 1.0
  %v1396 = vadd.f32 %v1363, 1.0
  %v1397 = vadd.f32 %v1365, 1.0
  %v1398 = vadd.f32 %v1367, 1.0
  %v1399 = vadd.f32 %v1369, 1.0
  %v1400 = vadd.f32 %v1371, 1.0
  %v1401 = vadd.f32 %v1373, 1.0
  %v1402 = vadd.f32 %v1375, 1.0
  %v1403 = vadd.f32 %v1377, 1.0
  %v1404 = vadd.f32 %v1379, 1.0
  %v1405 = vrcp.pop %v1380
  %v1406 = vmul.f32 1.0, %v1405
  %v1407 = vrcp.pop %v1381
  %v1408 = vmul.f32 1.0, %v1407
  %v1409 = vrcp.pop %v1382
  %v1410 = vmul.f32 1.0, %v1409
  %v1411 = vrcp.pop %v1383
  %v1412 = vmul.f32 1.0, %v1411
  %v1413 = vrcp.pop %v1384
  %v1414 = vmul.f32 1.0, %v1413
  %v1415 = vrcp.pop %v1385
  %v1416 = vmul.f32 1.0, %v1415
  %v1417 = vrcp.pop %v1386
  %v1418 = vmul.f32 1.0, %v1417
  %v1419 = vrcp.pop %v1387
  %v1420 = vmul.f32 1.0, %v1419
  %v1421 = vrcp.pop %v1388
  %v1422 = vmul.f32 1.0, %v1421
  %v1423 = vrcp.pop %v1389
  %v1424 = vmul.f32 1.0, %v1423
  %v1425 = vrcp.pop %v1390
  %v1426 = vmul.f32 1.0, %v1425
  %v1427 = vrcp.pop %v1391
  %v1428 = vmul.f32 1.0, %v1427
  %v1429 = vrcp.pop %v1392
  %v1430 = vmul.f32 1.0, %v1429
  %v1431 = vrcp.pop %v1393
  %v1432 = vmul.f32 1.0, %v1431
  %v1433 = vrcp.pop %v1394
  %v1434 = vmul.f32 1.0, %v1433
  %v1435 = vrcp.pop %v1395
  %v1436 = vmul.f32 1.0, %v1435
  %v1437 = vrcp.pop %v1396
  %v1438 = vmul.f32 1.0, %v1437
  %v1439 = vrcp.pop %v1397
  %v1440 = vmul.f32 1.0, %v1439
  %v1441 = vrcp.pop %v1398
  %v1442 = vmul.f32 1.0, %v1441
  %v1443 = vrcp.pop %v1399
  %v1444 = vmul.f32 1.0, %v1443
  %v1445 = vrcp.pop %v1400
  %v1446 = vmul.f32 1.0, %v1445
  %v1447 = vrcp.pop %v1401
  %v1448 = vmul.f32 1.0, %v1447
  %v1449 = vrcp.pop %v1402
  %v1450 = vmul.f32 1.0, %v1449
  %v1451 = vrcp.pop %v1403
  %v1452 = vmul.f32 1.0, %v1451
  %v1453 = vrcp.pop %v1404
  %v1454 = vmul.f32 1.0, %v1453
  %v1455 = vmul.f32 %v1280, %v1406
  %v1456 = vmul.f32 %v1281, %v1408
  %v1457 = vmul.f32 %v1282, %v1410
  %v1458 = vmul.f32 %v1283, %v1412
  %v1459 = vmul.f32 %v1284, %v1414
  %v1460 = vmul.f32 %v1285, %v1416
  %v1461 = vmul.f32 %v1286, %v1418
  %v1462 = vmul.f32 %v1287, %v1420
  %v1463 = vmul.f32 %v1288, %v1422
  %v1464 = vmul.f32 %v1289, %v1424
  %v1465 = vmul.f32 %v1290, %v1426
  %v1466 = vmul.f32 %v1291, %v1428
  %v1467 = vmul.f32 %v1292, %v1430
  %v1468 = vmul.f32 %v1293, %v1432
  %v1469 = vmul.f32 %v1294, %v1434
  %v1470 = vmul.f32 %v1295, %v1436
  %v1471 = vmul.f32 %v1296, %v1438
  %v1472 = vmul.f32 %v1297, %v1440
  %v1473 = vmul.f32 %v1298, %v1442
  %v1474 = vmul.f32 %v1299, %v1444
  %v1475 = vmul.f32 %v1300, %v1446
  %v1476 = vmul.f32 %v1301, %v1448
  %v1477 = vmul.f32 %v1302, %v1450
  %v1478 = vmul.f32 %v1303, %v1452
  %v1479 = vmul.f32 %v1304, %v1454
  %v1480 = vld [vmem:[%s9] sm:$0xff]
  %v1481 = vld [vmem:[%s9 + $0x8] sm:$0xff]
  %v1482 = vld [vmem:[%s9 + $0x10] sm:$0xff]
  %v1483 = vld [vmem:[%s9 + $0x18] sm:$0xff]
  %v1484 = vld [vmem:[%s10] sm:$0x1]
  %v1486 = vlaneseq
  %v1487 = vshrl.u32 %v1486, 7
  %v1488 = vsub.s32 0, %v1487
  %v1489 = vrot.slane %v1484, %v1488
  %vm1491 = vcmask 261120
  %v1493 = vsel %vm1491, %v1455, 0
  %v1496 = vsel %vm1491, %v1456, 0
  %v1499 = vsel %vm1491, %v1457, 0
  %v1502 = vsel %vm1491, %v1458, 0
  %v1505 = vsel %vm1491, %v1459, 0
  %v1508 = vsel %vm1491, %v1460, 0
  %v1511 = vsel %vm1491, %v1461, 0
  %v1514 = vsel %vm1491, %v1462, 0
  %v1517 = vsel %vm1491, %v1463, 0
  %v1520 = vsel %vm1491, %v1464, 0
  %v1523 = vsel %vm1491, %v1465, 0
  %v1526 = vsel %vm1491, %v1466, 0
  %v1529 = vsel %vm1491, %v1467, 0
  %v1532 = vsel %vm1491, %v1468, 0
  %v1535 = vsel %vm1491, %v1469, 0
  %v1538 = vsel %vm1491, %v1470, 0
  %v1541 = vsel %vm1491, %v1471, 0
  %v1544 = vsel %vm1491, %v1472, 0
  %v1547 = vsel %vm1491, %v1473, 0
  %v1550 = vsel %vm1491, %v1474, 0
  %v1553 = vsel %vm1491, %v1475, 0
  %v1556 = vsel %vm1491, %v1476, 0
  %v1559 = vsel %vm1491, %v1477, 0
  %v1562 = vsel %vm1491, %v1478, 0
  %v1565 = vsel %vm1491, %v1479, 0
  %1567 = vmatprep.subr.mxu0 0.0
  %1568 = vmatpush1.msra.mxu0 %v1480
  %1569 = vmatprep.subr.mxu0 0.0
  %1570 = vmatpush1.msra.mxu0 %v1481
  %1571 = vmatprep.subr.mxu0 0.0
  %1572 = vmatpush1.msra.mxu0 %v1482
  %1573 = vmatprep.subr.mxu0 0.0
  %1574 = vmatpush1.msra.mxu0 %v1483
  %1575 = vmatprep.subr.mxu0 0.0
  %1576 = vmatpush1.msra.mxu0 0.0
  %1577 = vmatprep.subr.mxu0 0.0
  %1578 = vmatpush1.msra.mxu0 0.0
  %1579 = vmatprep.subr.mxu0 0.0
  %1580 = vmatpush1.msra.mxu0 0.0
  %1581 = vmatprep.subr.mxu0 0.0
  %1582 = vmatpush1.msra.mxu0 0.0
  %1583 = vmatprep.subr.mxu0 0.0
  %1584 = vmatpush1.msra.mxu0 0.0
  %1585 = vmatprep.subr.mxu0 0.0
  %1586 = vmatpush1.msra.mxu0 0.0
  %1587 = vmatprep.subr.mxu0 0.0
  %1588 = vmatpush1.msra.mxu0 0.0
  %1589 = vmatprep.subr.mxu0 0.0
  %1590 = vmatpush1.msra.mxu0 0.0
  %1591 = vmatprep.subr.mxu0 0.0
  %1592 = vmatpush1.msra.mxu0 0.0
  %1593 = vmatprep.subr.mxu0 0.0
  %1594 = vmatpush1.msra.mxu0 0.0
  %1595 = vmatprep.subr.mxu0 0.0
  %1596 = vmatpush1.msra.mxu0 0.0
  %1597 = vmatprep.subr.mxu0 0.0
  %1598 = vmatpush1.msra.mxu0 0.0
  %1599 = vmatprep.subr.mxu0 0.0
  %1600 = vmatpush1.msra.mxu0 0.0
  %1601 = vmatprep.subr.mxu0 0.0
  %1602 = vmatpush1.msra.mxu0 0.0
  %1603 = vmatprep.subr.mxu0 0.0
  %1604 = vmatpush1.msra.mxu0 0.0
  %1605 = vmatprep.subr.mxu0 0.0
  %1606 = vmatpush1.msra.mxu0 0.0
  %1607 = vmatprep.subr.mxu0 0.0
  %1608 = vmatpush1.msra.mxu0 0.0
  %1609 = vmatprep.subr.mxu0 0.0
  %1610 = vmatpush1.msra.mxu0 0.0
  %1611 = vmatprep.subr.mxu0 0.0
  %1612 = vmatpush1.msra.mxu0 0.0
  %1613 = vmatprep.subr.mxu0 0.0
  %1614 = vmatpush1.msra.mxu0 0.0
  %1615 = vmatprep.subr.mxu0 0.0
  %1616 = vmatpush1.msra.mxu0 0.0
  %1617 = vmatprep.subr.mxu0 0.0
  %1618 = vmatpush1.msra.mxu0 0.0
  %1619 = vmatprep.subr.mxu0 0.0
  %1620 = vmatpush1.msra.mxu0 0.0
  %1621 = vmatprep.subr.mxu0 0.0
  %1622 = vmatpush1.msra.mxu0 0.0
  %1623 = vmatprep.subr.mxu0 0.0
  %1624 = vmatpush1.msra.mxu0 0.0
  %1625 = vmatprep.subr.mxu0 0.0
  %1626 = vmatpush1.msra.mxu0 0.0
  %1627 = vmatprep.subr.mxu0 0.0
  %1628 = vmatpush1.msra.mxu0 0.0
  %1629 = vmatprep.subr.mxu0 0.0
  %1630 = vmatpush1.msra.mxu0 0.0
  %1631 = vmatprep.mubr.f32.mxu0 0.0
  %1632 = vmatmul.mubr.f32.gmra.mrb[0].mxu0 %v1493
  %v1633 = vpop.f32.mrb[0].mxu0
  %v1634 = vadd.f32 %v1489, %v1633
  %v1635 = vpop.f32.mrb[0].mxu0
  %1636 = vmatprep.mubr.f32.mxu0 0.0
  %1637 = vmatmul.mubr.f32.gmra.mrb[0].mxu0 %v1496
  %v1638 = vpop.f32.mrb[0].mxu0
  %v1639 = vadd.f32 %v1489, %v1638
  %v1640 = vpop.f32.mrb[0].mxu0
  %1641 = vmatprep.mubr.f32.mxu0 0.0
  %1642 = vmatmul.mubr.f32.gmra.mrb[0].mxu0 %v1499
  %v1643 = vpop.f32.mrb[0].mxu0
  %v1644 = vadd.f32 %v1489, %v1643
  %v1645 = vpop.f32.mrb[0].mxu0
  %1646 = vmatprep.mubr.f32.mxu0 0.0
  %1647 = vmatmul.mubr.f32.gmra.mrb[0].mxu0 %v1502
  %v1648 = vpop.f32.mrb[0].mxu0
  %v1649 = vadd.f32 %v1489, %v1648
  %v1650 = vpop.f32.mrb[0].mxu0
  %1651 = vmatprep.mubr.f32.mxu0 0.0
  %1652 = vmatmul.mubr.f32.gmra.mrb[0].mxu0 %v1505
  %v1653 = vpop.f32.mrb[0].mxu0
  %v1654 = vadd.f32 %v1489, %v1653
  %v1655 = vpop.f32.mrb[0].mxu0
  %1656 = vmatprep.mubr.f32.mxu0 0.0
  %1657 = vmatmul.mubr.f32.gmra.mrb[0].mxu0 %v1508
  %v1658 = vpop.f32.mrb[0].mxu0
  %v1659 = vadd.f32 %v1489, %v1658
  %v1660 = vpop.f32.mrb[0].mxu0
  %1661 = vmatprep.mubr.f32.mxu0 0.0
  %1662 = vmatmul.mubr.f32.gmra.mrb[0].mxu0 %v1511
  %v1663 = vpop.f32.mrb[0].mxu0
  %v1664 = vadd.f32 %v1489, %v1663
  %v1665 = vpop.f32.mrb[0].mxu0
  %1666 = vmatprep.mubr.f32.mxu0 0.0
  %1667 = vmatmul.mubr.f32.gmra.mrb[0].mxu0 %v1514
  %v1668 = vpop.f32.mrb[0].mxu0
  %v1669 = vadd.f32 %v1489, %v1668
  %v1670 = vpop.f32.mrb[0].mxu0
  %1671 = vmatprep.mubr.f32.mxu0 0.0
  %1672 = vmatmul.mubr.f32.gmra.mrb[0].mxu0 %v1517
  %v1673 = vpop.f32.mrb[0].mxu0
  %v1674 = vadd.f32 %v1489, %v1673
  %v1675 = vpop.f32.mrb[0].mxu0
  %1676 = vmatprep.mubr.f32.mxu0 0.0
  %1677 = vmatmul.mubr.f32.gmra.mrb[0].mxu0 %v1520
  %v1678 = vpop.f32.mrb[0].mxu0
  %v1679 = vadd.f32 %v1489, %v1678
  %v1680 = vpop.f32.mrb[0].mxu0
  %1681 = vmatprep.mubr.f32.mxu0 0.0
  %1682 = vmatmul.mubr.f32.gmra.mrb[0].mxu0 %v1523
  %v1683 = vpop.f32.mrb[0].mxu0
  %v1684 = vadd.f32 %v1489, %v1683
  %v1685 = vpop.f32.mrb[0].mxu0
  %1686 = vmatprep.mubr.f32.mxu0 0.0
  %1687 = vmatmul.mubr.f32.gmra.mrb[0].mxu0 %v1526
  %v1688 = vpop.f32.mrb[0].mxu0
  %v1689 = vadd.f32 %v1489, %v1688
  %v1690 = vpop.f32.mrb[0].mxu0
  %1691 = vmatprep.mubr.f32.mxu0 0.0
  %1692 = vmatmul.mubr.f32.gmra.mrb[0].mxu0 %v1529
  %v1693 = vpop.f32.mrb[0].mxu0
  %v1694 = vadd.f32 %v1489, %v1693
  %v1695 = vpop.f32.mrb[0].mxu0
  %1696 = vmatprep.mubr.f32.mxu0 0.0
  %1697 = vmatmul.mubr.f32.gmra.mrb[0].mxu0 %v1532
  %v1698 = vpop.f32.mrb[0].mxu0
  %v1699 = vadd.f32 %v1489, %v1698
  %v1700 = vpop.f32.mrb[0].mxu0
  %1701 = vmatprep.mubr.f32.mxu0 0.0
  %1702 = vmatmul.mubr.f32.gmra.mrb[0].mxu0 %v1535
  %v1703 = vpop.f32.mrb[0].mxu0
  %v1704 = vadd.f32 %v1489, %v1703
  %v1705 = vpop.f32.mrb[0].mxu0
  %1706 = vmatprep.mubr.f32.mxu0 0.0
  %1707 = vmatmul.mubr.f32.gmra.mrb[0].mxu0 %v1538
  %v1708 = vpop.f32.mrb[0].mxu0
  %v1709 = vadd.f32 %v1489, %v1708
  %v1710 = vpop.f32.mrb[0].mxu0
  %1711 = vmatprep.mubr.f32.mxu0 0.0
  %1712 = vmatmul.mubr.f32.gmra.mrb[0].mxu0 %v1541
  %v1713 = vpop.f32.mrb[0].mxu0
  %v1714 = vadd.f32 %v1489, %v1713
  %v1715 = vpop.f32.mrb[0].mxu0
  %1716 = vmatprep.mubr.f32.mxu0 0.0
  %1717 = vmatmul.mubr.f32.gmra.mrb[0].mxu0 %v1544
  %v1718 = vpop.f32.mrb[0].mxu0
  %v1719 = vadd.f32 %v1489, %v1718
  %v1720 = vpop.f32.mrb[0].mxu0
  %1721 = vmatprep.mubr.f32.mxu0 0.0
  %1722 = vmatmul.mubr.f32.gmra.mrb[0].mxu0 %v1547
  %v1723 = vpop.f32.mrb[0].mxu0
  %v1724 = vadd.f32 %v1489, %v1723
  %v1725 = vpop.f32.mrb[0].mxu0
  %1726 = vmatprep.mubr.f32.mxu0 0.0
  %1727 = vmatmul.mubr.f32.gmra.mrb[0].mxu0 %v1550
  %v1728 = vpop.f32.mrb[0].mxu0
  %v1729 = vadd.f32 %v1489, %v1728
  %v1730 = vpop.f32.mrb[0].mxu0
  %1731 = vmatprep.mubr.f32.mxu0 0.0
  %1732 = vmatmul.mubr.f32.gmra.mrb[0].mxu0 %v1553
  %v1733 = vpop.f32.mrb[0].mxu0
  %v1734 = vadd.f32 %v1489, %v1733
  %v1735 = vpop.f32.mrb[0].mxu0
  %1736 = vmatprep.mubr.f32.mxu0 0.0
  %1737 = vmatmul.mubr.f32.gmra.mrb[0].mxu0 %v1556
  %v1738 = vpop.f32.mrb[0].mxu0
  %v1739 = vadd.f32 %v1489, %v1738
  %v1740 = vpop.f32.mrb[0].mxu0
  %1741 = vmatprep.mubr.f32.mxu0 0.0
  %1742 = vmatmul.mubr.f32.gmra.mrb[0].mxu0 %v1559
  %v1743 = vpop.f32.mrb[0].mxu0
  %v1744 = vadd.f32 %v1489, %v1743
  %v1745 = vpop.f32.mrb[0].mxu0
  %1746 = vmatprep.mubr.f32.mxu0 0.0
  %1747 = vmatmul.mubr.f32.gmra.mrb[0].mxu0 %v1562
  %v1748 = vpop.f32.mrb[0].mxu0
  %v1749 = vadd.f32 %v1489, %v1748
  %v1750 = vpop.f32.mrb[0].mxu0
  %1751 = vmatprep.mubr.f32.mxu0 0.0
  %1752 = vmatmul.mubr.f32.gmra.mrb[0].mxu0 %v1565
  %v1753 = vpop.f32.mrb[0].mxu0
  %v1754 = vadd.f32 %v1489, %v1753
  %v1755 = vpop.f32.mrb[0].mxu0
  %1756 = vdwg.mxu0
  %v1757 = vld [vmem:[%s11] sm:$0x1]
  %v1758 = vld [vmem:[%s12] sm:$0x1]
  %v1759 = vsel %vm1491, %v1634, 0.0
  %1760 = vadd.xlane.f32.xlu0 %v1759
  %v1761 = vpop.xlane.xlu0 %1760
  %v1762 = vsel %vm1491, %v1639, 0.0
  %1763 = vadd.xlane.f32.xlu0 %v1762
  %v1764 = vpop.xlane.xlu0 %1763
  %v1765 = vsel %vm1491, %v1644, 0.0
  %1766 = vadd.xlane.f32.xlu0 %v1765
  %v1767 = vpop.xlane.xlu0 %1766
  %v1768 = vsel %vm1491, %v1649, 0.0
  %1769 = vadd.xlane.f32.xlu0 %v1768
  %v1770 = vpop.xlane.xlu0 %1769
  %v1771 = vsel %vm1491, %v1654, 0.0
  %1772 = vadd.xlane.f32.xlu0 %v1771
  %v1773 = vpop.xlane.xlu0 %1772
  %v1774 = vsel %vm1491, %v1659, 0.0
  %1775 = vadd.xlane.f32.xlu0 %v1774
  %v1776 = vpop.xlane.xlu0 %1775
  %v1777 = vsel %vm1491, %v1664, 0.0
  %1778 = vadd.xlane.f32.xlu0 %v1777
  %v1779 = vpop.xlane.xlu0 %1778
  %v1780 = vsel %vm1491, %v1669, 0.0
  %1781 = vadd.xlane.f32.xlu0 %v1780
  %v1782 = vpop.xlane.xlu0 %1781
  %v1783 = vsel %vm1491, %v1674, 0.0
  %1784 = vadd.xlane.f32.xlu0 %v1783
  %v1785 = vpop.xlane.xlu0 %1784
  %v1786 = vsel %vm1491, %v1679, 0.0
  %1787 = vadd.xlane.f32.xlu0 %v1786
  %v1788 = vpop.xlane.xlu0 %1787
  %v1789 = vsel %vm1491, %v1684, 0.0
  %1790 = vadd.xlane.f32.xlu0 %v1789
  %v1791 = vpop.xlane.xlu0 %1790
  %v1792 = vsel %vm1491, %v1689, 0.0
  %1793 = vadd.xlane.f32.xlu0 %v1792
  %v1794 = vpop.xlane.xlu0 %1793
  %v1795 = vsel %vm1491, %v1694, 0.0
  %1796 = vadd.xlane.f32.xlu0 %v1795
  %v1797 = vpop.xlane.xlu0 %1796
  %v1798 = vsel %vm1491, %v1699, 0.0
  %1799 = vadd.xlane.f32.xlu0 %v1798
  %v1800 = vpop.xlane.xlu0 %1799
  %v1801 = vsel %vm1491, %v1704, 0.0
  %1802 = vadd.xlane.f32.xlu0 %v1801
  %v1803 = vpop.xlane.xlu0 %1802
  %v1804 = vsel %vm1491, %v1709, 0.0
  %1805 = vadd.xlane.f32.xlu0 %v1804
  %v1806 = vpop.xlane.xlu0 %1805
  %v1807 = vsel %vm1491, %v1714, 0.0
  %1808 = vadd.xlane.f32.xlu0 %v1807
  %v1809 = vpop.xlane.xlu0 %1808
  %v1810 = vsel %vm1491, %v1719, 0.0
  %1811 = vadd.xlane.f32.xlu0 %v1810
  %v1812 = vpop.xlane.xlu0 %1811
  %v1813 = vsel %vm1491, %v1724, 0.0
  %1814 = vadd.xlane.f32.xlu0 %v1813
  %v1815 = vpop.xlane.xlu0 %1814
  %v1816 = vsel %vm1491, %v1729, 0.0
  %1817 = vadd.xlane.f32.xlu0 %v1816
  %v1818 = vpop.xlane.xlu0 %1817
  %v1819 = vsel %vm1491, %v1734, 0.0
  %1820 = vadd.xlane.f32.xlu0 %v1819
  %v1821 = vpop.xlane.xlu0 %1820
  %v1822 = vsel %vm1491, %v1739, 0.0
  %1823 = vadd.xlane.f32.xlu0 %v1822
  %v1824 = vpop.xlane.xlu0 %1823
  %v1825 = vsel %vm1491, %v1744, 0.0
  %1826 = vadd.xlane.f32.xlu0 %v1825
  %v1827 = vpop.xlane.xlu0 %1826
  %v1828 = vsel %vm1491, %v1749, 0.0
  %1829 = vadd.xlane.f32.xlu0 %v1828
  %v1830 = vpop.xlane.xlu0 %1829
  %v1831 = vsel %vm1491, %v1754, 0.0
  %1832 = vadd.xlane.f32.xlu0 %v1831
  %v1833 = vpop.xlane.xlu0 %1832
  %v1834 = vrcp.pop 32.0
  %v1835 = vmul.f32 %v1761, %v1834
  %v1836 = vmul.f32 %v1764, %v1834
  %v1837 = vmul.f32 %v1767, %v1834
  %v1838 = vmul.f32 %v1770, %v1834
  %v1839 = vmul.f32 %v1773, %v1834
  %v1840 = vmul.f32 %v1776, %v1834
  %v1841 = vmul.f32 %v1779, %v1834
  %v1842 = vmul.f32 %v1782, %v1834
  %v1843 = vmul.f32 %v1785, %v1834
  %v1844 = vmul.f32 %v1788, %v1834
  %v1845 = vmul.f32 %v1791, %v1834
  %v1846 = vmul.f32 %v1794, %v1834
  %v1847 = vmul.f32 %v1797, %v1834
  %v1848 = vmul.f32 %v1800, %v1834
  %v1849 = vmul.f32 %v1803, %v1834
  %v1850 = vmul.f32 %v1806, %v1834
  %v1851 = vmul.f32 %v1809, %v1834
  %v1852 = vmul.f32 %v1812, %v1834
  %v1853 = vmul.f32 %v1815, %v1834
  %v1854 = vmul.f32 %v1818, %v1834
  %v1855 = vmul.f32 %v1821, %v1834
  %v1856 = vmul.f32 %v1824, %v1834
  %v1857 = vmul.f32 %v1827, %v1834
  %v1858 = vmul.f32 %v1830, %v1834
  %v1859 = vmul.f32 %v1833, %v1834
  %v1860 = vsub.f32 %v1634, %v1835
  %v1861 = vsub.f32 %v1639, %v1836
  %v1862 = vsub.f32 %v1644, %v1837
  %v1863 = vsub.f32 %v1649, %v1838
  %v1864 = vsub.f32 %v1654, %v1839
  %v1865 = vsub.f32 %v1659, %v1840
  %v1866 = vsub.f32 %v1664, %v1841
  %v1867 = vsub.f32 %v1669, %v1842
  %v1868 = vsub.f32 %v1674, %v1843
  %v1869 = vsub.f32 %v1679, %v1844
  %v1870 = vsub.f32 %v1684, %v1845
  %v1871 = vsub.f32 %v1689, %v1846
  %v1872 = vsub.f32 %v1694, %v1847
  %v1873 = vsub.f32 %v1699, %v1848
  %v1874 = vsub.f32 %v1704, %v1849
  %v1875 = vsub.f32 %v1709, %v1850
  %v1876 = vsub.f32 %v1714, %v1851
  %v1877 = vsub.f32 %v1719, %v1852
  %v1878 = vsub.f32 %v1724, %v1853
  %v1879 = vsub.f32 %v1729, %v1854
  %v1880 = vsub.f32 %v1734, %v1855
  %v1881 = vsub.f32 %v1739, %v1856
  %v1882 = vsub.f32 %v1744, %v1857
  %v1883 = vsub.f32 %v1749, %v1858
  %v1884 = vsub.f32 %v1754, %v1859
  %v1885 = vmul.f32 %v1860, %v1860
  %v1886 = vmul.f32 %v1861, %v1861
  %v1887 = vmul.f32 %v1862, %v1862
  %v1888 = vmul.f32 %v1863, %v1863
  %v1889 = vmul.f32 %v1864, %v1864
  %v1890 = vmul.f32 %v1865, %v1865
  %v1891 = vmul.f32 %v1866, %v1866
  %v1892 = vmul.f32 %v1867, %v1867
  %v1893 = vmul.f32 %v1868, %v1868
  %v1894 = vmul.f32 %v1869, %v1869
  %v1895 = vmul.f32 %v1870, %v1870
  %v1896 = vmul.f32 %v1871, %v1871
  %v1897 = vmul.f32 %v1872, %v1872
  %v1898 = vmul.f32 %v1873, %v1873
  %v1899 = vmul.f32 %v1874, %v1874
  %v1900 = vmul.f32 %v1875, %v1875
  %v1901 = vmul.f32 %v1876, %v1876
  %v1902 = vmul.f32 %v1877, %v1877
  %v1903 = vmul.f32 %v1878, %v1878
  %v1904 = vmul.f32 %v1879, %v1879
  %v1905 = vmul.f32 %v1880, %v1880
  %v1906 = vmul.f32 %v1881, %v1881
  %v1907 = vmul.f32 %v1882, %v1882
  %v1908 = vmul.f32 %v1883, %v1883
  %v1909 = vmul.f32 %v1884, %v1884
  %v1910 = vsel %vm1491, %v1885, 0.0
  %1911 = vadd.xlane.f32.xlu0 %v1910
  %v1912 = vpop.xlane.xlu0 %1911
  %v1913 = vsel %vm1491, %v1886, 0.0
  %1914 = vadd.xlane.f32.xlu0 %v1913
  %v1915 = vpop.xlane.xlu0 %1914
  %v1916 = vsel %vm1491, %v1887, 0.0
  %1917 = vadd.xlane.f32.xlu0 %v1916
  %v1918 = vpop.xlane.xlu0 %1917
  %v1919 = vsel %vm1491, %v1888, 0.0
  %1920 = vadd.xlane.f32.xlu0 %v1919
  %v1921 = vpop.xlane.xlu0 %1920
  %v1922 = vsel %vm1491, %v1889, 0.0
  %1923 = vadd.xlane.f32.xlu0 %v1922
  %v1924 = vpop.xlane.xlu0 %1923
  %v1925 = vsel %vm1491, %v1890, 0.0
  %1926 = vadd.xlane.f32.xlu0 %v1925
  %v1927 = vpop.xlane.xlu0 %1926
  %v1928 = vsel %vm1491, %v1891, 0.0
  %1929 = vadd.xlane.f32.xlu0 %v1928
  %v1930 = vpop.xlane.xlu0 %1929
  %v1931 = vsel %vm1491, %v1892, 0.0
  %1932 = vadd.xlane.f32.xlu0 %v1931
  %v1933 = vpop.xlane.xlu0 %1932
  %v1934 = vsel %vm1491, %v1893, 0.0
  %1935 = vadd.xlane.f32.xlu0 %v1934
  %v1936 = vpop.xlane.xlu0 %1935
  %v1937 = vsel %vm1491, %v1894, 0.0
  %1938 = vadd.xlane.f32.xlu0 %v1937
  %v1939 = vpop.xlane.xlu0 %1938
  %v1940 = vsel %vm1491, %v1895, 0.0
  %1941 = vadd.xlane.f32.xlu0 %v1940
  %v1942 = vpop.xlane.xlu0 %1941
  %v1943 = vsel %vm1491, %v1896, 0.0
  %1944 = vadd.xlane.f32.xlu0 %v1943
  %v1945 = vpop.xlane.xlu0 %1944
  %v1946 = vsel %vm1491, %v1897, 0.0
  %1947 = vadd.xlane.f32.xlu0 %v1946
  %v1948 = vpop.xlane.xlu0 %1947
  %v1949 = vsel %vm1491, %v1898, 0.0
  %1950 = vadd.xlane.f32.xlu0 %v1949
  %v1951 = vpop.xlane.xlu0 %1950
  %v1952 = vsel %vm1491, %v1899, 0.0
  %1953 = vadd.xlane.f32.xlu0 %v1952
  %v1954 = vpop.xlane.xlu0 %1953
  %v1955 = vsel %vm1491, %v1900, 0.0
  %1956 = vadd.xlane.f32.xlu0 %v1955
  %v1957 = vpop.xlane.xlu0 %1956
  %v1958 = vsel %vm1491, %v1901, 0.0
  %1959 = vadd.xlane.f32.xlu0 %v1958
  %v1960 = vpop.xlane.xlu0 %1959
  %v1961 = vsel %vm1491, %v1902, 0.0
  %1962 = vadd.xlane.f32.xlu0 %v1961
  %v1963 = vpop.xlane.xlu0 %1962
  %v1964 = vsel %vm1491, %v1903, 0.0
  %1965 = vadd.xlane.f32.xlu0 %v1964
  %v1966 = vpop.xlane.xlu0 %1965
  %v1967 = vsel %vm1491, %v1904, 0.0
  %1968 = vadd.xlane.f32.xlu0 %v1967
  %v1969 = vpop.xlane.xlu0 %1968
  %v1970 = vsel %vm1491, %v1905, 0.0
  %1971 = vadd.xlane.f32.xlu0 %v1970
  %v1972 = vpop.xlane.xlu0 %1971
  %v1973 = vsel %vm1491, %v1906, 0.0
  %1974 = vadd.xlane.f32.xlu0 %v1973
  %v1975 = vpop.xlane.xlu0 %1974
  %v1976 = vsel %vm1491, %v1907, 0.0
  %1977 = vadd.xlane.f32.xlu0 %v1976
  %v1978 = vpop.xlane.xlu0 %1977
  %v1979 = vsel %vm1491, %v1908, 0.0
  %1980 = vadd.xlane.f32.xlu0 %v1979
  %v1981 = vpop.xlane.xlu0 %1980
  %v1982 = vsel %vm1491, %v1909, 0.0
  %1983 = vadd.xlane.f32.xlu0 %v1982
  %v1984 = vpop.xlane.xlu0 %1983
  %v1985 = vmul.f32 %v1912, %v1834
  %v1986 = vmul.f32 %v1915, %v1834
  %v1987 = vmul.f32 %v1918, %v1834
  %v1988 = vmul.f32 %v1921, %v1834
  %v1989 = vmul.f32 %v1924, %v1834
  %v1990 = vmul.f32 %v1927, %v1834
  %v1991 = vmul.f32 %v1930, %v1834
  %v1992 = vmul.f32 %v1933, %v1834
  %v1993 = vmul.f32 %v1936, %v1834
  %v1994 = vmul.f32 %v1939, %v1834
  %v1995 = vmul.f32 %v1942, %v1834
  %v1996 = vmul.f32 %v1945, %v1834
  %v1997 = vmul.f32 %v1948, %v1834
  %v1998 = vmul.f32 %v1951, %v1834
  %v1999 = vmul.f32 %v1954, %v1834
  %v2000 = vmul.f32 %v1957, %v1834
  %v2001 = vmul.f32 %v1960, %v1834
  %v2002 = vmul.f32 %v1963, %v1834
  %v2003 = vmul.f32 %v1966, %v1834
  %v2004 = vmul.f32 %v1969, %v1834
  %v2005 = vmul.f32 %v1972, %v1834
  %v2006 = vmul.f32 %v1975, %v1834
  %v2007 = vmul.f32 %v1978, %v1834
  %v2008 = vmul.f32 %v1981, %v1834
  %v2009 = vmul.f32 %v1984, %v1834
  %v2010 = vadd.f32 %v1985, 1e-05
  %v2011 = vadd.f32 %v1986, 1e-05
  %v2012 = vadd.f32 %v1987, 1e-05
  %v2013 = vadd.f32 %v1988, 1e-05
  %v2014 = vadd.f32 %v1989, 1e-05
  %v2015 = vadd.f32 %v1990, 1e-05
  %v2016 = vadd.f32 %v1991, 1e-05
  %v2017 = vadd.f32 %v1992, 1e-05
  %v2018 = vadd.f32 %v1993, 1e-05
  %v2019 = vadd.f32 %v1994, 1e-05
  %v2020 = vadd.f32 %v1995, 1e-05
  %v2021 = vadd.f32 %v1996, 1e-05
  %v2022 = vadd.f32 %v1997, 1e-05
  %v2023 = vadd.f32 %v1998, 1e-05
  %v2024 = vadd.f32 %v1999, 1e-05
  %v2025 = vadd.f32 %v2000, 1e-05
  %v2026 = vadd.f32 %v2001, 1e-05
  %v2027 = vadd.f32 %v2002, 1e-05
  %v2028 = vadd.f32 %v2003, 1e-05
  %v2029 = vadd.f32 %v2004, 1e-05
  %v2030 = vadd.f32 %v2005, 1e-05
  %v2031 = vadd.f32 %v2006, 1e-05
  %v2032 = vadd.f32 %v2007, 1e-05
  %v2033 = vadd.f32 %v2008, 1e-05
  %v2034 = vadd.f32 %v2009, 1e-05
  %v2035 = vrsqrt.pop %v2010
  %v2036 = vrsqrt.pop %v2011
  %v2037 = vrsqrt.pop %v2012
  %v2038 = vrsqrt.pop %v2013
  %v2039 = vrsqrt.pop %v2014
  %v2040 = vrsqrt.pop %v2015
  %v2041 = vrsqrt.pop %v2016
  %v2042 = vrsqrt.pop %v2017
  %v2043 = vrsqrt.pop %v2018
  %v2044 = vrsqrt.pop %v2019
  %v2045 = vrsqrt.pop %v2020
  %v2046 = vrsqrt.pop %v2021
  %v2047 = vrsqrt.pop %v2022
  %v2048 = vrsqrt.pop %v2023
  %v2049 = vrsqrt.pop %v2024
  %v2050 = vrsqrt.pop %v2025
  %v2051 = vrsqrt.pop %v2026
  %v2052 = vrsqrt.pop %v2027
  %v2053 = vrsqrt.pop %v2028
  %v2054 = vrsqrt.pop %v2029
  %v2055 = vrsqrt.pop %v2030
  %v2056 = vrsqrt.pop %v2031
  %v2057 = vrsqrt.pop %v2032
  %v2058 = vrsqrt.pop %v2033
  %v2059 = vrsqrt.pop %v2034
  %v2060 = vmul.f32 %v1860, %v2035
  %v2061 = vmul.f32 %v1861, %v2036
  %v2062 = vmul.f32 %v1862, %v2037
  %v2063 = vmul.f32 %v1863, %v2038
  %v2064 = vmul.f32 %v1864, %v2039
  %v2065 = vmul.f32 %v1865, %v2040
  %v2066 = vmul.f32 %v1866, %v2041
  %v2067 = vmul.f32 %v1867, %v2042
  %v2068 = vmul.f32 %v1868, %v2043
  %v2069 = vmul.f32 %v1869, %v2044
  %v2070 = vmul.f32 %v1870, %v2045
  %v2071 = vmul.f32 %v1871, %v2046
  %v2072 = vmul.f32 %v1872, %v2047
  %v2073 = vmul.f32 %v1873, %v2048
  %v2074 = vmul.f32 %v1874, %v2049
  %v2075 = vmul.f32 %v1875, %v2050
  %v2076 = vmul.f32 %v1876, %v2051
  %v2077 = vmul.f32 %v1877, %v2052
  %v2078 = vmul.f32 %v1878, %v2053
  %v2079 = vmul.f32 %v1879, %v2054
  %v2080 = vmul.f32 %v1880, %v2055
  %v2081 = vmul.f32 %v1881, %v2056
  %v2082 = vmul.f32 %v1882, %v2057
  %v2083 = vmul.f32 %v1883, %v2058
  %v2084 = vmul.f32 %v1884, %v2059
  %v2086 = vlaneseq
  %v2087 = vshrl.u32 %v2086, 7
  %v2088 = vsub.s32 0, %v2087
  %v2089 = vrot.slane %v1757, %v2088
  %v2091 = vmul.f32 %v2060, %v2089
  %v2092 = vmul.f32 %v2061, %v2089
  %v2093 = vmul.f32 %v2062, %v2089
  %v2094 = vmul.f32 %v2063, %v2089
  %v2095 = vmul.f32 %v2064, %v2089
  %v2096 = vmul.f32 %v2065, %v2089
  %v2097 = vmul.f32 %v2066, %v2089
  %v2098 = vmul.f32 %v2067, %v2089
  %v2099 = vmul.f32 %v2068, %v2089
  %v2100 = vmul.f32 %v2069, %v2089
  %v2101 = vmul.f32 %v2070, %v2089
  %v2102 = vmul.f32 %v2071, %v2089
  %v2103 = vmul.f32 %v2072, %v2089
  %v2104 = vmul.f32 %v2073, %v2089
  %v2105 = vmul.f32 %v2074, %v2089
  %v2106 = vmul.f32 %v2075, %v2089
  %v2107 = vmul.f32 %v2076, %v2089
  %v2108 = vmul.f32 %v2077, %v2089
  %v2109 = vmul.f32 %v2078, %v2089
  %v2110 = vmul.f32 %v2079, %v2089
  %v2111 = vmul.f32 %v2080, %v2089
  %v2112 = vmul.f32 %v2081, %v2089
  %v2113 = vmul.f32 %v2082, %v2089
  %v2114 = vmul.f32 %v2083, %v2089
  %v2115 = vmul.f32 %v2084, %v2089
  %v2117 = vlaneseq
  %v2118 = vshrl.u32 %v2117, 7
  %v2119 = vsub.s32 0, %v2118
  %v2120 = vrot.slane %v1758, %v2119
  %v2122 = vadd.f32 %v2091, %v2120
  %v2123 = vadd.f32 %v2092, %v2120
  %v2124 = vadd.f32 %v2093, %v2120
  %v2125 = vadd.f32 %v2094, %v2120
  %v2126 = vadd.f32 %v2095, %v2120
  %v2127 = vadd.f32 %v2096, %v2120
  %v2128 = vadd.f32 %v2097, %v2120
  %v2129 = vadd.f32 %v2098, %v2120
  %v2130 = vadd.f32 %v2099, %v2120
  %v2131 = vadd.f32 %v2100, %v2120
  %v2132 = vadd.f32 %v2101, %v2120
  %v2133 = vadd.f32 %v2102, %v2120
  %v2134 = vadd.f32 %v2103, %v2120
  %v2135 = vadd.f32 %v2104, %v2120
  %v2136 = vadd.f32 %v2105, %v2120
  %v2137 = vadd.f32 %v2106, %v2120
  %v2138 = vadd.f32 %v2107, %v2120
  %v2139 = vadd.f32 %v2108, %v2120
  %v2140 = vadd.f32 %v2109, %v2120
  %v2141 = vadd.f32 %v2110, %v2120
  %v2142 = vadd.f32 %v2111, %v2120
  %v2143 = vadd.f32 %v2112, %v2120
  %v2144 = vadd.f32 %v2113, %v2120
  %v2145 = vadd.f32 %v2114, %v2120
  %v2146 = vadd.f32 %v2115, %v2120
  %v2147 = vlaneseq
  %v2148 = vand.u32 %v2147, 127
  %s2149 = smul.u32 0, 64
  %v2150 = vstv %s2149
  %v2151 = vadd.s32 %v2148, %v2150
  %v2152 = vld [vmem:[%s3] sm:$0xff]
  %v2153 = vld [vmem:[%s3 + $0x8] sm:$0xff]
  %v2154 = vld [vmem:[%s3 + $0x10] sm:$0xff]
  %v2155 = vld [vmem:[%s3 + $0x18] sm:$0xff]
  %v2156 = vld [vmem:[%s3 + $0x20] sm:$0xff]
  %v2157 = vld [vmem:[%s3 + $0x28] sm:$0xff]
  %v2158 = vld [vmem:[%s3 + $0x30] sm:$0xff]
  %v2159 = vld [vmem:[%s3 + $0x38] sm:$0xff]
  %v2160 = vld [vmem:[%s3 + $0x40] sm:$0xff]
  %v2161 = vld [vmem:[%s3 + $0x48] sm:$0xff]
  %v2162 = vld [vmem:[%s3 + $0x50] sm:$0xff]
  %v2163 = vld [vmem:[%s3 + $0x58] sm:$0xff]
  %v2164 = vld [vmem:[%s3 + $0x60] sm:$0xff]
  %v2165 = vld [vmem:[%s3 + $0x68] sm:$0xff]
  %v2166 = vld [vmem:[%s3 + $0x70] sm:$0xff]
  %v2167 = vld [vmem:[%s3 + $0x78] sm:$0xff]
  %v2168 = vld [vmem:[%s3 + $0x80] sm:$0xff]
  %v2169 = vld [vmem:[%s3 + $0x88] sm:$0xff]
  %v2170 = vld [vmem:[%s3 + $0x90] sm:$0xff]
  %v2171 = vld [vmem:[%s3 + $0x98] sm:$0xff]
  %v2172 = vld [vmem:[%s3 + $0xa0] sm:$0xff]
  %v2173 = vld [vmem:[%s3 + $0xa8] sm:$0xff]
  %v2174 = vld [vmem:[%s3 + $0xb0] sm:$0xff]
  %v2175 = vld [vmem:[%s3 + $0xb8] sm:$0xff]
  %v2176 = vld [vmem:[%s3 + $0xc0] sm:$0xff]
  %2177 = vset.pattern.permute.xlu0 0
  %2178 = vperm.xlu0 %2177, %v2152
  %v2179 = vpop.permute.xlu0 %2178
  %2180 = vset.pattern.permute.xlu0 0
  %2181 = vperm.xlu0 %2180, %v2153
  %v2182 = vpop.permute.xlu0 %2181
  %2183 = vset.pattern.permute.xlu0 0
  %2184 = vperm.xlu0 %2183, %v2154
  %v2185 = vpop.permute.xlu0 %2184
  %2186 = vset.pattern.permute.xlu0 0
  %2187 = vperm.xlu0 %2186, %v2155
  %v2188 = vpop.permute.xlu0 %2187
  %2189 = vset.pattern.permute.xlu0 0
  %2190 = vperm.xlu0 %2189, %v2156
  %v2191 = vpop.permute.xlu0 %2190
  %2192 = vset.pattern.permute.xlu0 0
  %2193 = vperm.xlu0 %2192, %v2157
  %v2194 = vpop.permute.xlu0 %2193
  %2195 = vset.pattern.permute.xlu0 0
  %2196 = vperm.xlu0 %2195, %v2158
  %v2197 = vpop.permute.xlu0 %2196
  %2198 = vset.pattern.permute.xlu0 0
  %2199 = vperm.xlu0 %2198, %v2159
  %v2200 = vpop.permute.xlu0 %2199
  %2201 = vset.pattern.permute.xlu0 0
  %2202 = vperm.xlu0 %2201, %v2160
  %v2203 = vpop.permute.xlu0 %2202
  %2204 = vset.pattern.permute.xlu0 0
  %2205 = vperm.xlu0 %2204, %v2161
  %v2206 = vpop.permute.xlu0 %2205
  %2207 = vset.pattern.permute.xlu0 0
  %2208 = vperm.xlu0 %2207, %v2162
  %v2209 = vpop.permute.xlu0 %2208
  %2210 = vset.pattern.permute.xlu0 0
  %2211 = vperm.xlu0 %2210, %v2163
  %v2212 = vpop.permute.xlu0 %2211
  %2213 = vset.pattern.permute.xlu0 0
  %2214 = vperm.xlu0 %2213, %v2164
  %v2215 = vpop.permute.xlu0 %2214
  %2216 = vset.pattern.permute.xlu0 0
  %2217 = vperm.xlu0 %2216, %v2165
  %v2218 = vpop.permute.xlu0 %2217
  %2219 = vset.pattern.permute.xlu0 0
  %2220 = vperm.xlu0 %2219, %v2166
  %v2221 = vpop.permute.xlu0 %2220
  %2222 = vset.pattern.permute.xlu0 0
  %2223 = vperm.xlu0 %2222, %v2167
  %v2224 = vpop.permute.xlu0 %2223
  %2225 = vset.pattern.permute.xlu0 0
  %2226 = vperm.xlu0 %2225, %v2168
  %v2227 = vpop.permute.xlu0 %2226
  %2228 = vset.pattern.permute.xlu0 0
  %2229 = vperm.xlu0 %2228, %v2169
  %v2230 = vpop.permute.xlu0 %2229
  %2231 = vset.pattern.permute.xlu0 0
  %2232 = vperm.xlu0 %2231, %v2170
  %v2233 = vpop.permute.xlu0 %2232
  %2234 = vset.pattern.permute.xlu0 0
  %2235 = vperm.xlu0 %2234, %v2171
  %v2236 = vpop.permute.xlu0 %2235
  %2237 = vset.pattern.permute.xlu0 0
  %2238 = vperm.xlu0 %2237, %v2172
  %v2239 = vpop.permute.xlu0 %2238
  %2240 = vset.pattern.permute.xlu0 0
  %2241 = vperm.xlu0 %2240, %v2173
  %v2242 = vpop.permute.xlu0 %2241
  %2243 = vset.pattern.permute.xlu0 0
  %2244 = vperm.xlu0 %2243, %v2174
  %v2245 = vpop.permute.xlu0 %2244
  %2246 = vset.pattern.permute.xlu0 0
  %2247 = vperm.xlu0 %2246, %v2175
  %v2248 = vpop.permute.xlu0 %2247
  %2249 = vset.pattern.permute.xlu0 0
  %2250 = vperm.xlu0 %2249, %v2176
  %v2251 = vpop.permute.xlu0 %2250
  %vm2252 = vcmp.eq.s32.totalorder %v2151, %v2179
  %vm2253 = vcmp.eq.s32.totalorder %v2151, %v2182
  %vm2254 = vcmp.eq.s32.totalorder %v2151, %v2185
  %vm2255 = vcmp.eq.s32.totalorder %v2151, %v2188
  %vm2256 = vcmp.eq.s32.totalorder %v2151, %v2191
  %vm2257 = vcmp.eq.s32.totalorder %v2151, %v2194
  %vm2258 = vcmp.eq.s32.totalorder %v2151, %v2197
  %vm2259 = vcmp.eq.s32.totalorder %v2151, %v2200
  %vm2260 = vcmp.eq.s32.totalorder %v2151, %v2203
  %vm2261 = vcmp.eq.s32.totalorder %v2151, %v2206
  %vm2262 = vcmp.eq.s32.totalorder %v2151, %v2209
  %vm2263 = vcmp.eq.s32.totalorder %v2151, %v2212
  %vm2264 = vcmp.eq.s32.totalorder %v2151, %v2215
  %vm2265 = vcmp.eq.s32.totalorder %v2151, %v2218
  %vm2266 = vcmp.eq.s32.totalorder %v2151, %v2221
  %vm2267 = vcmp.eq.s32.totalorder %v2151, %v2224
  %vm2268 = vcmp.eq.s32.totalorder %v2151, %v2227
  %vm2269 = vcmp.eq.s32.totalorder %v2151, %v2230
  %vm2270 = vcmp.eq.s32.totalorder %v2151, %v2233
  %vm2271 = vcmp.eq.s32.totalorder %v2151, %v2236
  %vm2272 = vcmp.eq.s32.totalorder %v2151, %v2239
  %vm2273 = vcmp.eq.s32.totalorder %v2151, %v2242
  %vm2274 = vcmp.eq.s32.totalorder %v2151, %v2245
  %vm2275 = vcmp.eq.s32.totalorder %v2151, %v2248
  %vm2276 = vcmp.eq.s32.totalorder %v2151, %v2251
  %v2277 = vsel %vm2252, 1, 0
  %v2278 = vsel %vm2253, 1, 0
  %v2279 = vsel %vm2254, 1, 0
  %v2280 = vsel %vm2255, 1, 0
  %v2281 = vsel %vm2256, 1, 0
  %v2282 = vsel %vm2257, 1, 0
  %v2283 = vsel %vm2258, 1, 0
  %v2284 = vsel %vm2259, 1, 0
  %v2285 = vsel %vm2260, 1, 0
  %v2286 = vsel %vm2261, 1, 0
  %v2287 = vsel %vm2262, 1, 0
  %v2288 = vsel %vm2263, 1, 0
  %v2289 = vsel %vm2264, 1, 0
  %v2290 = vsel %vm2265, 1, 0
  %v2291 = vsel %vm2266, 1, 0
  %v2292 = vsel %vm2267, 1, 0
  %v2293 = vsel %vm2268, 1, 0
  %v2294 = vsel %vm2269, 1, 0
  %v2295 = vsel %vm2270, 1, 0
  %v2296 = vsel %vm2271, 1, 0
  %v2297 = vsel %vm2272, 1, 0
  %v2298 = vsel %vm2273, 1, 0
  %v2299 = vsel %vm2274, 1, 0
  %v2300 = vsel %vm2275, 1, 0
  %v2301 = vsel %vm2276, 1, 0
  %v2302 = vcvt.s32.f32 %v2277
  %v2303 = vcvt.s32.f32 %v2278
  %v2304 = vcvt.s32.f32 %v2279
  %v2305 = vcvt.s32.f32 %v2280
  %v2306 = vcvt.s32.f32 %v2281
  %v2307 = vcvt.s32.f32 %v2282
  %v2308 = vcvt.s32.f32 %v2283
  %v2309 = vcvt.s32.f32 %v2284
  %v2310 = vcvt.s32.f32 %v2285
  %v2311 = vcvt.s32.f32 %v2286
  %v2312 = vcvt.s32.f32 %v2287
  %v2313 = vcvt.s32.f32 %v2288
  %v2314 = vcvt.s32.f32 %v2289
  %v2315 = vcvt.s32.f32 %v2290
  %v2316 = vcvt.s32.f32 %v2291
  %v2317 = vcvt.s32.f32 %v2292
  %v2318 = vcvt.s32.f32 %v2293
  %v2319 = vcvt.s32.f32 %v2294
  %v2320 = vcvt.s32.f32 %v2295
  %v2321 = vcvt.s32.f32 %v2296
  %v2322 = vcvt.s32.f32 %v2297
  %v2323 = vcvt.s32.f32 %v2298
  %v2324 = vcvt.s32.f32 %v2299
  %v2325 = vcvt.s32.f32 %v2300
  %v2326 = vcvt.s32.f32 %v2301
  %v2327 = vld [vmem:[#allocation2] sm:$0xff]
  %v2328 = vld [vmem:[#allocation2 + $0x8] sm:$0xff]
  %v2329 = vld [vmem:[#allocation2 + $0x10] sm:$0xff]
  %v2330 = vld [vmem:[#allocation2 + $0x18] sm:$0xff]
  %v2331 = vld [vmem:[#allocation2 + $0x20] sm:$0xff]
  %v2332 = vld [vmem:[#allocation2 + $0x28] sm:$0xff]
  %v2333 = vld [vmem:[#allocation2 + $0x30] sm:$0xff]
  %v2334 = vld [vmem:[#allocation2 + $0x38] sm:$0xff]
  %2335 = vxpose.xlu0.b32.start [1/16] %v2302, 128
  %2336 = vxpose.xlu0.b32.cont [2/16] %v2303, 128
  %2337 = vxpose.xlu0.b32.cont [3/16] %v2304, 128
  %2338 = vxpose.xlu0.b32.cont [4/16] %v2305, 128
  %2339 = vxpose.xlu0.b32.cont [5/16] %v2306, 128
  %2340 = vxpose.xlu0.b32.cont [6/16] %v2307, 128
  %2341 = vxpose.xlu0.b32.cont [7/16] %v2308, 128
  %2342 = vxpose.xlu0.b32.cont [8/16] %v2309, 128
  %2343 = vxpose.xlu0.b32.cont [9/16] %v2310, 128
  %2344 = vxpose.xlu0.b32.cont [10/16] %v2311, 128
  %2345 = vxpose.xlu0.b32.cont [11/16] %v2312, 128
  %2346 = vxpose.xlu0.b32.cont [12/16] %v2313, 128
  %2347 = vxpose.xlu0.b32.cont [13/16] %v2314, 128
  %2348 = vxpose.xlu0.b32.cont [14/16] %v2315, 128
  %2349 = vxpose.xlu0.b32.cont [15/16] %v2316, 128
  %2350 = vxpose.xlu0.b32.end [16/16] %v2317, 128
  %v2351 = vpop.trf.xlu0
  %v2352 = vpop.trf.xlu0
  %v2353 = vpop.trf.xlu0
  %v2354 = vpop.trf.xlu0
  %v2355 = vpop.trf.xlu0
  %v2356 = vpop.trf.xlu0
  %v2357 = vpop.trf.xlu0
  %v2358 = vpop.trf.xlu0
  %v2359 = vpop.trf.xlu0
  %v2360 = vpop.trf.xlu0
  %v2361 = vpop.trf.xlu0
  %v2362 = vpop.trf.xlu0
  %v2363 = vpop.trf.xlu0
  %v2364 = vpop.trf.xlu0
  %v2365 = vpop.trf.xlu0
  %v2366 = vpop.trf.xlu0
  %2367 = vxpose.xlu0.b32.start [1/16] %v2318, 128
  %2368 = vxpose.xlu0.b32.cont [2/16] %v2319, 128
  %2369 = vxpose.xlu0.b32.cont [3/16] %v2320, 128
  %2370 = vxpose.xlu0.b32.cont [4/16] %v2321, 128
  %2371 = vxpose.xlu0.b32.cont [5/16] %v2322, 128
  %2372 = vxpose.xlu0.b32.cont [6/16] %v2323, 128
  %2373 = vxpose.xlu0.b32.cont [7/16] %v2324, 128
  %2374 = vxpose.xlu0.b32.cont [8/16] %v2325, 128
  %2375 = vxpose.xlu0.b32.cont [9/16] %v2326, 128
  %2376 = vxpose.xlu0.b32.cont [10/16] 0.0, 128
  %2377 = vxpose.xlu0.b32.cont [11/16] 0.0, 128
  %2378 = vxpose.xlu0.b32.cont [12/16] 0.0, 128
  %2379 = vxpose.xlu0.b32.cont [13/16] 0.0, 128
  %2380 = vxpose.xlu0.b32.cont [14/16] 0.0, 128
  %2381 = vxpose.xlu0.b32.cont [15/16] 0.0, 128
  %2382 = vxpose.xlu0.b32.end [16/16] 0.0, 128
  %v2383 = vpop.trf.xlu0
  %v2384 = vpop.trf.xlu0
  %v2385 = vpop.trf.xlu0
  %v2386 = vpop.trf.xlu0
  %v2387 = vpop.trf.xlu0
  %v2388 = vpop.trf.xlu0
  %v2389 = vpop.trf.xlu0
  %v2390 = vpop.trf.xlu0
  %v2391 = vpop.trf.xlu0
  %v2392 = vpop.trf.xlu0
  %v2393 = vpop.trf.xlu0
  %v2394 = vpop.trf.xlu0
  %v2395 = vpop.trf.xlu0
  %v2396 = vpop.trf.xlu0
  %v2397 = vpop.trf.xlu0
  %v2398 = vpop.trf.xlu0
  %vm2399 = vcmask 588800
  %v2401 = vsel %vm2399, %v2383, 0
  %v2404 = vsel %vm2399, %v2384, 0
  %v2407 = vsel %vm2399, %v2385, 0
  %v2410 = vsel %vm2399, %v2386, 0
  %v2413 = vsel %vm2399, %v2387, 0
  %v2416 = vsel %vm2399, %v2388, 0
  %v2419 = vsel %vm2399, %v2389, 0
  %v2422 = vsel %vm2399, %v2390, 0
  %2424 = vmatprep.subr.mxu0 0.0
  %2425 = vmatpush1.msra.mxu0 %v2122
  %2426 = vmatprep.subr.mxu0 0.0
  %2427 = vmatpush1.msra.mxu0 %v2123
  %2428 = vmatprep.subr.mxu0 0.0
  %2429 = vmatpush1.msra.mxu0 %v2124
  %2430 = vmatprep.subr.mxu0 0.0
  %2431 = vmatpush1.msra.mxu0 %v2125
  %2432 = vmatprep.subr.mxu0 0.0
  %2433 = vmatpush1.msra.mxu0 %v2126
  %2434 = vmatprep.subr.mxu0 0.0
  %2435 = vmatpush1.msra.mxu0 %v2127
  %2436 = vmatprep.subr.mxu0 0.0
  %2437 = vmatpush1.msra.mxu0 %v2128
  %2438 = vmatprep.subr.mxu0 0.0
  %2439 = vmatpush1.msra.mxu0 %v2129
  %2440 = vmatprep.subr.mxu0 0.0
  %2441 = vmatpush1.msra.mxu0 %v2130
  %2442 = vmatprep.subr.mxu0 0.0
  %2443 = vmatpush1.msra.mxu0 %v2131
  %2444 = vmatprep.subr.mxu0 0.0
  %2445 = vmatpush1.msra.mxu0 %v2132
  %2446 = vmatprep.subr.mxu0 0.0
  %2447 = vmatpush1.msra.mxu0 %v2133
  %2448 = vmatprep.subr.mxu0 0.0
  %2449 = vmatpush1.msra.mxu0 %v2134
  %2450 = vmatprep.subr.mxu0 0.0
  %2451 = vmatpush1.msra.mxu0 %v2135
  %2452 = vmatprep.subr.mxu0 0.0
  %2453 = vmatpush1.msra.mxu0 %v2136
  %2454 = vmatprep.subr.mxu0 0.0
  %2455 = vmatpush1.msra.mxu0 %v2137
  %2456 = vmatprep.subr.mxu0 0.0
  %2457 = vmatpush1.msra.mxu0 %v2138
  %2458 = vmatprep.subr.mxu0 0.0
  %2459 = vmatpush1.msra.mxu0 %v2139
  %2460 = vmatprep.subr.mxu0 0.0
  %2461 = vmatpush1.msra.mxu0 %v2140
  %2462 = vmatprep.subr.mxu0 0.0
  %2463 = vmatpush1.msra.mxu0 %v2141
  %2464 = vmatprep.subr.mxu0 0.0
  %2465 = vmatpush1.msra.mxu0 %v2142
  %2466 = vmatprep.subr.mxu0 0.0
  %2467 = vmatpush1.msra.mxu0 %v2143
  %2468 = vmatprep.subr.mxu0 0.0
  %2469 = vmatpush1.msra.mxu0 %v2144
  %2470 = vmatprep.subr.mxu0 0.0
  %2471 = vmatpush1.msra.mxu0 %v2145
  %2472 = vmatprep.subr.mxu0 0.0
  %2473 = vmatpush1.msra.mxu0 %v2146
  %2474 = vmatprep.subr.mxu0 0.0
  %2475 = vmatpush1.msra.mxu0 0.0
  %2476 = vmatprep.subr.mxu0 0.0
  %2477 = vmatpush1.msra.mxu0 0.0
  %2478 = vmatprep.subr.mxu0 0.0
  %2479 = vmatpush1.msra.mxu0 0.0
  %2480 = vmatprep.subr.mxu0 0.0
  %2481 = vmatpush1.msra.mxu0 0.0
  %2482 = vmatprep.subr.mxu0 0.0
  %2483 = vmatpush1.msra.mxu0 0.0
  %2484 = vmatprep.subr.mxu0 0.0
  %2485 = vmatpush1.msra.mxu0 0.0
  %2486 = vmatprep.subr.mxu0 0.0
  %2487 = vmatpush1.msra.mxu0 0.0
  %2488 = vmatprep.mubr.f32.mxu0 %v2401
  %2489 = vmatmul.mubr.f32.gmra.mrb[0].mxu0 %v2351
  %v2490 = vpop.f32.mrb[0].mxu0
  %v2491 = vadd.f32 0.0, %v2490
  %v2492 = vpop.f32.mrb[0].mxu0
  %2493 = vmatprep.mubr.f32.mxu0 %v2404
  %2494 = vmatmul.mubr.f32.gmra.mrb[0].mxu0 %v2352
  %v2495 = vpop.f32.mrb[0].mxu0
  %v2496 = vadd.f32 0.0, %v2495
  %v2497 = vpop.f32.mrb[0].mxu0
  %2498 = vmatprep.mubr.f32.mxu0 %v2407
  %2499 = vmatmul.mubr.f32.gmra.mrb[0].mxu0 %v2353
  %v2500 = vpop.f32.mrb[0].mxu0
  %v2501 = vadd.f32 0.0, %v2500
  %v2502 = vpop.f32.mrb[0].mxu0
  %2503 = vmatprep.mubr.f32.mxu0 %v2410
  %2504 = vmatmul.mubr.f32.gmra.mrb[0].mxu0 %v2354
  %v2505 = vpop.f32.mrb[0].mxu0
  %v2506 = vadd.f32 0.0, %v2505
  %v2507 = vpop.f32.mrb[0].mxu0
  %2508 = vmatprep.mubr.f32.mxu0 %v2413
  %2509 = vmatmul.mubr.f32.gmra.mrb[0].mxu0 %v2355
  %v2510 = vpop.f32.mrb[0].mxu0
  %v2511 = vadd.f32 0.0, %v2510
  %v2512 = vpop.f32.mrb[0].mxu0
  %2513 = vmatprep.mubr.f32.mxu0 %v2416
  %2514 = vmatmul.mubr.f32.gmra.mrb[0].mxu0 %v2356
  %v2515 = vpop.f32.mrb[0].mxu0
  %v2516 = vadd.f32 0.0, %v2515
  %v2517 = vpop.f32.mrb[0].mxu0
  %2518 = vmatprep.mubr.f32.mxu0 %v2419
  %2519 = vmatmul.mubr.f32.gmra.mrb[0].mxu0 %v2357
  %v2520 = vpop.f32.mrb[0].mxu0
  %v2521 = vadd.f32 0.0, %v2520
  %v2522 = vpop.f32.mrb[0].mxu0
  %2523 = vmatprep.mubr.f32.mxu0 %v2422
  %2524 = vmatmul.mubr.f32.gmra.mrb[0].mxu0 %v2358
  %v2525 = vpop.f32.mrb[0].mxu0
  %v2526 = vadd.f32 0.0, %v2525
  %v2527 = vpop.f32.mrb[0].mxu0
  %2528 = vdwg.mxu0
  %v2529 = vadd.f32 %v2327, %v2491
  %v2530 = vadd.f32 %v2328, %v2496
  %v2531 = vadd.f32 %v2329, %v2501
  %v2532 = vadd.f32 %v2330, %v2506
  %v2533 = vadd.f32 %v2331, %v2511
  %v2534 = vadd.f32 %v2332, %v2516
  %v2535 = vadd.f32 %v2333, %v2521
  %v2536 = vadd.f32 %v2334, %v2526
  %2537 = vst.msk [vmem:[#allocation2] sm:$0xff] %vm1491, %v2529
  %2538 = vst.msk [vmem:[#allocation2 + $0x8] sm:$0xff] %vm1491, %v2530
  %2539 = vst.msk [vmem:[#allocation2 + $0x10] sm:$0xff] %vm1491, %v2531
  %2540 = vst.msk [vmem:[#allocation2 + $0x18] sm:$0xff] %vm1491, %v2532
  %2541 = vst.msk [vmem:[#allocation2 + $0x20] sm:$0xff] %vm1491, %v2533
  %2542 = vst.msk [vmem:[#allocation2 + $0x28] sm:$0xff] %vm1491, %v2534
  %2543 = vst.msk [vmem:[#allocation2 + $0x30] sm:$0xff] %vm1491, %v2535
  %2544 = vst.msk [vmem:[#allocation2 + $0x38] sm:$0xff] %vm1491, %v2536
  // Predicated region
  $region86: #{tpu_custom_call.1} parent=0 // pred_check
    %p2545 = pneg %p65
  $region87: #{tpu_custom_call.1} parent=0 // pred_check_branch
    %2547 = sbr.rel (%p2545) target = $region89
  $region88: #{tpu_custom_call.1} parent=0 // pred_region
    %v2548 = vld [vmem:[%s4] sm:$0xff]
    %v2549 = vld [vmem:[%s4 + $0x8] sm:$0xff]
    %v2550 = vld [vmem:[%s4 + $0x10] sm:$0xff]
    %v2551 = vld [vmem:[%s4 + $0x18] sm:$0xff]
    %v2552 = vld [vmem:[%s4 + $0x20] sm:$0xff]
    %v2553 = vld [vmem:[%s4 + $0x28] sm:$0xff]
    %v2554 = vld [vmem:[%s4 + $0x30] sm:$0xff]
    %v2555 = vld [vmem:[%s4 + $0x38] sm:$0xff]
    %v2556 = vld [vmem:[%s13] sm:$0xff]
    %v2557 = vld [vmem:[%s13 + $0x8] sm:$0xff]
    %v2558 = vld [vmem:[%s13 + $0x10] sm:$0xff]
    %v2559 = vld [vmem:[%s13 + $0x18] sm:$0xff]
    %v2560 = vld [vmem:[#allocation2] sm:$0xff]
    %v2561 = vld [vmem:[#allocation2 + $0x8] sm:$0xff]
    %v2562 = vld [vmem:[#allocation2 + $0x10] sm:$0xff]
    %v2563 = vld [vmem:[#allocation2 + $0x18] sm:$0xff]
    %v2564 = vld [vmem:[#allocation2 + $0x20] sm:$0xff]
    %v2565 = vld [vmem:[#allocation2 + $0x28] sm:$0xff]
    %v2566 = vld [vmem:[#allocation2 + $0x30] sm:$0xff]
    %v2567 = vld [vmem:[#allocation2 + $0x38] sm:$0xff]
    %v2568 = vld [vmem:[%s14] sm:$0xff]
    %v2569 = vld [vmem:[%s14 + $0x8] sm:$0xff]
    %v2570 = vld [vmem:[%s14 + $0x10] sm:$0xff]
    %v2571 = vld [vmem:[%s14 + $0x18] sm:$0xff]
    %v2573 = vsel %vm1491, %v2560, 0
    %v2576 = vsel %vm1491, %v2561, 0
    %v2579 = vsel %vm1491, %v2562, 0
    %v2582 = vsel %vm1491, %v2563, 0
    %v2585 = vsel %vm1491, %v2564, 0
    %v2588 = vsel %vm1491, %v2565, 0
    %v2591 = vsel %vm1491, %v2566, 0
    %v2594 = vsel %vm1491, %v2567, 0
    %2596 = vmatprep.subr.mxu0 0.0
    %2597 = vmatpush1.msra.mxu0 %v2568
    %2598 = vmatprep.subr.mxu0 0.0
    %2599 = vmatpush1.msra.mxu0 %v2569
    %2600 = vmatprep.subr.mxu0 0.0
    %2601 = vmatpush1.msra.mxu0 %v2570
    %2602 = vmatprep.subr.mxu0 0.0
    %2603 = vmatpush1.msra.mxu0 %v2571
    %2604 = vmatprep.subr.mxu0 0.0
    %2605 = vmatpush1.msra.mxu0 0.0
    %2606 = vmatprep.subr.mxu0 0.0
    %2607 = vmatpush1.msra.mxu0 0.0
    %2608 = vmatprep.subr.mxu0 0.0
    %2609 = vmatpush1.msra.mxu0 0.0
    %2610 = vmatprep.subr.mxu0 0.0
    %2611 = vmatpush1.msra.mxu0 0.0
    %2612 = vmatprep.subr.mxu0 0.0
    %2613 = vmatpush1.msra.mxu0 0.0
    %2614 = vmatprep.subr.mxu0 0.0
    %2615 = vmatpush1.msra.mxu0 0.0
    %2616 = vmatprep.subr.mxu0 0.0
    %2617 = vmatpush1.msra.mxu0 0.0
    %2618 = vmatprep.subr.mxu0 0.0
    %2619 = vmatpush1.msra.mxu0 0.0
    %2620 = vmatprep.subr.mxu0 0.0
    %2621 = vmatpush1.msra.mxu0 0.0
    %2622 = vmatprep.subr.mxu0 0.0
    %2623 = vmatpush1.msra.mxu0 0.0
    %2624 = vmatprep.subr.mxu0 0.0
    %2625 = vmatpush1.msra.mxu0 0.0
    %2626 = vmatprep.subr.mxu0 0.0
    %2627 = vmatpush1.msra.mxu0 0.0
    %2628 = vmatprep.subr.mxu0 0.0
    %2629 = vmatpush1.msra.mxu0 0.0
    %2630 = vmatprep.subr.mxu0 0.0
    %2631 = vmatpush1.msra.mxu0 0.0
    %2632 = vmatprep.subr.mxu0 0.0
    %2633 = vmatpush1.msra.mxu0 0.0
    %2634 = vmatprep.subr.mxu0 0.0
    %2635 = vmatpush1.msra.mxu0 0.0
    %2636 = vmatprep.subr.mxu0 0.0
    %2637 = vmatpush1.msra.mxu0 0.0
    %2638 = vmatprep.subr.mxu0 0.0
    %2639 = vmatpush1.msra.mxu0 0.0
    %2640 = vmatprep.subr.mxu0 0.0
    %2641 = vmatpush1.msra.mxu0 0.0
    %2642 = vmatprep.subr.mxu0 0.0
    %2643 = vmatpush1.msra.mxu0 0.0
    %2644 = vmatprep.subr.mxu0 0.0
    %2645 = vmatpush1.msra.mxu0 0.0
    %2646 = vmatprep.subr.mxu0 0.0
    %2647 = vmatpush1.msra.mxu0 0.0
    %2648 = vmatprep.subr.mxu0 0.0
    %2649 = vmatpush1.msra.mxu0 0.0
    %2650 = vmatprep.subr.mxu0 0.0
    %2651 = vmatpush1.msra.mxu0 0.0
    %2652 = vmatprep.subr.mxu0 0.0
    %2653 = vmatpush1.msra.mxu0 0.0
    %2654 = vmatprep.subr.mxu0 0.0
    %2655 = vmatpush1.msra.mxu0 0.0
    %2656 = vmatprep.subr.mxu0 0.0
    %2657 = vmatpush1.msra.mxu0 0.0
    %2658 = vmatprep.subr.mxu0 0.0
    %2659 = vmatpush1.msra.mxu0 0.0
    %2660 = vmatprep.mubr.f32.mxu0 0.0
    %2661 = vmatmul.mubr.f32.gmra.mrb[0].mxu0 %v2573
    %v2662 = vpop.f32.mrb[0].mxu0
    %v2663 = vadd.f32 0.0, %v2662
    %v2664 = vpop.f32.mrb[0].mxu0
    %2665 = vmatprep.mubr.f32.mxu0 0.0
    %2666 = vmatmul.mubr.f32.gmra.mrb[0].mxu0 %v2576
    %v2667 = vpop.f32.mrb[0].mxu0
    %v2668 = vadd.f32 0.0, %v2667
    %v2669 = vpop.f32.mrb[0].mxu0
    %2670 = vmatprep.mubr.f32.mxu0 0.0
    %2671 = vmatmul.mubr.f32.gmra.mrb[0].mxu0 %v2579
    %v2672 = vpop.f32.mrb[0].mxu0
    %v2673 = vadd.f32 0.0, %v2672
    %v2674 = vpop.f32.mrb[0].mxu0
    %2675 = vmatprep.mubr.f32.mxu0 0.0
    %2676 = vmatmul.mubr.f32.gmra.mrb[0].mxu0 %v2582
    %v2677 = vpop.f32.mrb[0].mxu0
    %v2678 = vadd.f32 0.0, %v2677
    %v2679 = vpop.f32.mrb[0].mxu0
    %2680 = vmatprep.mubr.f32.mxu0 0.0
    %2681 = vmatmul.mubr.f32.gmra.mrb[0].mxu0 %v2585
    %v2682 = vpop.f32.mrb[0].mxu0
    %v2683 = vadd.f32 0.0, %v2682
    %v2684 = vpop.f32.mrb[0].mxu0
    %2685 = vmatprep.mubr.f32.mxu0 0.0
    %2686 = vmatmul.mubr.f32.gmra.mrb[0].mxu0 %v2588
    %v2687 = vpop.f32.mrb[0].mxu0
    %v2688 = vadd.f32 0.0, %v2687
    %v2689 = vpop.f32.mrb[0].mxu0
    %2690 = vmatprep.mubr.f32.mxu0 0.0
    %2691 = vmatmul.mubr.f32.gmra.mrb[0].mxu0 %v2591
    %v2692 = vpop.f32.mrb[0].mxu0
    %v2693 = vadd.f32 0.0, %v2692
    %v2694 = vpop.f32.mrb[0].mxu0
    %2695 = vmatprep.mubr.f32.mxu0 0.0
    %2696 = vmatmul.mubr.f32.gmra.mrb[0].mxu0 %v2594
    %v2697 = vpop.f32.mrb[0].mxu0
    %v2698 = vadd.f32 0.0, %v2697
    %v2699 = vpop.f32.mrb[0].mxu0
    %2700 = vdwg.mxu0
    %v2702 = vsel %vm1491, %v2548, 0
    %v2705 = vsel %vm1491, %v2549, 0
    %v2708 = vsel %vm1491, %v2550, 0
    %v2711 = vsel %vm1491, %v2551, 0
    %v2714 = vsel %vm1491, %v2552, 0
    %v2717 = vsel %vm1491, %v2553, 0
    %v2720 = vsel %vm1491, %v2554, 0
    %v2723 = vsel %vm1491, %v2555, 0
    %2725 = vmatprep.subr.mxu0 0.0
    %2726 = vmatpush1.msra.mxu0 %v2556
    %2727 = vmatprep.subr.mxu0 0.0
    %2728 = vmatpush1.msra.mxu0 %v2557
    %2729 = vmatprep.subr.mxu0 0.0
    %2730 = vmatpush1.msra.mxu0 %v2558
    %2731 = vmatprep.subr.mxu0 0.0
    %2732 = vmatpush1.msra.mxu0 %v2559
    %2733 = vmatprep.subr.mxu0 0.0
    %2734 = vmatpush1.msra.mxu0 0.0
    %2735 = vmatprep.subr.mxu0 0.0
    %2736 = vmatpush1.msra.mxu0 0.0
    %2737 = vmatprep.subr.mxu0 0.0
    %2738 = vmatpush1.msra.mxu0 0.0
    %2739 = vmatprep.subr.mxu0 0.0
    %2740 = vmatpush1.msra.mxu0 0.0
    %2741 = vmatprep.subr.mxu0 0.0
    %2742 = vmatpush1.msra.mxu0 0.0
    %2743 = vmatprep.subr.mxu0 0.0
    %2744 = vmatpush1.msra.mxu0 0.0
    %2745 = vmatprep.subr.mxu0 0.0
    %2746 = vmatpush1.msra.mxu0 0.0
    %2747 = vmatprep.subr.mxu0 0.0
    %2748 = vmatpush1.msra.mxu0 0.0
    %2749 = vmatprep.subr.mxu0 0.0
    %2750 = vmatpush1.msra.mxu0 0.0
    %2751 = vmatprep.subr.mxu0 0.0
    %2752 = vmatpush1.msra.mxu0 0.0
    %2753 = vmatprep.subr.mxu0 0.0
    %2754 = vmatpush1.msra.mxu0 0.0
    %2755 = vmatprep.subr.mxu0 0.0
    %2756 = vmatpush1.msra.mxu0 0.0
    %2757 = vmatprep.subr.mxu0 0.0
    %2758 = vmatpush1.msra.mxu0 0.0
    %2759 = vmatprep.subr.mxu0 0.0
    %2760 = vmatpush1.msra.mxu0 0.0
    %2761 = vmatprep.subr.mxu0 0.0
    %2762 = vmatpush1.msra.mxu0 0.0
    %2763 = vmatprep.subr.mxu0 0.0
    %2764 = vmatpush1.msra.mxu0 0.0
    %2765 = vmatprep.subr.mxu0 0.0
    %2766 = vmatpush1.msra.mxu0 0.0
    %2767 = vmatprep.subr.mxu0 0.0
    %2768 = vmatpush1.msra.mxu0 0.0
    %2769 = vmatprep.subr.mxu0 0.0
    %2770 = vmatpush1.msra.mxu0 0.0
    %2771 = vmatprep.subr.mxu0 0.0
    %2772 = vmatpush1.msra.mxu0 0.0
    %2773 = vmatprep.subr.mxu0 0.0
    %2774 = vmatpush1.msra.mxu0 0.0
    %2775 = vmatprep.subr.mxu0 0.0
    %2776 = vmatpush1.msra.mxu0 0.0
    %2777 = vmatprep.subr.mxu0 0.0
    %2778 = vmatpush1.msra.mxu0 0.0
    %2779 = vmatprep.subr.mxu0 0.0
    %2780 = vmatpush1.msra.mxu0 0.0
    %2781 = vmatprep.subr.mxu0 0.0
    %2782 = vmatpush1.msra.mxu0 0.0
    %2783 = vmatprep.subr.mxu0 0.0
    %2784 = vmatpush1.msra.mxu0 0.0
    %2785 = vmatprep.subr.mxu0 0.0
    %2786 = vmatpush1.msra.mxu0 0.0
    %2787 = vmatprep.subr.mxu0 0.0
    %2788 = vmatpush1.msra.mxu0 0.0
    %2789 = vmatprep.mubr.f32.mxu0 0.0
    %2790 = vmatmul.mubr.f32.gmra.mrb[0].mxu0 %v2702
    %v2791 = vpop.f32.mrb[0].mxu0
    %v2792 = vadd.f32 %v2663, %v2791
    %v2793 = vpop.f32.mrb[0].mxu0
    %2794 = vmatprep.mubr.f32.mxu0 0.0
    %2795 = vmatmul.mubr.f32.gmra.mrb[0].mxu0 %v2705
    %v2796 = vpop.f32.mrb[0].mxu0
    %v2797 = vadd.f32 %v2668, %v2796
    %v2798 = vpop.f32.mrb[0].mxu0
    %2799 = vmatprep.mubr.f32.mxu0 0.0
    %2800 = vmatmul.mubr.f32.gmra.mrb[0].mxu0 %v2708
    %v2801 = vpop.f32.mrb[0].mxu0
    %v2802 = vadd.f32 %v2673, %v2801
    %v2803 = vpop.f32.mrb[0].mxu0
    %2804 = vmatprep.mubr.f32.mxu0 0.0
    %2805 = vmatmul.mubr.f32.gmra.mrb[0].mxu0 %v2711
    %v2806 = vpop.f32.mrb[0].mxu0
    %v2807 = vadd.f32 %v2678, %v2806
    %v2808 = vpop.f32.mrb[0].mxu0
    %2809 = vmatprep.mubr.f32.mxu0 0.0
    %2810 = vmatmul.mubr.f32.gmra.mrb[0].mxu0 %v2714
    %v2811 = vpop.f32.mrb[0].mxu0
    %v2812 = vadd.f32 %v2683, %v2811
    %v2813 = vpop.f32.mrb[0].mxu0
    %2814 = vmatprep.mubr.f32.mxu0 0.0
    %2815 = vmatmul.mubr.f32.gmra.mrb[0].mxu0 %v2717
    %v2816 = vpop.f32.mrb[0].mxu0
    %v2817 = vadd.f32 %v2688, %v2816
    %v2818 = vpop.f32.mrb[0].mxu0
    %2819 = vmatprep.mubr.f32.mxu0 0.0
    %2820 = vmatmul.mubr.f32.gmra.mrb[0].mxu0 %v2720
    %v2821 = vpop.f32.mrb[0].mxu0
    %v2822 = vadd.f32 %v2693, %v2821
    %v2823 = vpop.f32.mrb[0].mxu0
    %2824 = vmatprep.mubr.f32.mxu0 0.0
    %2825 = vmatmul.mubr.f32.gmra.mrb[0].mxu0 %v2723
    %v2826 = vpop.f32.mrb[0].mxu0
    %v2827 = vadd.f32 %v2698, %v2826
    %v2828 = vpop.f32.mrb[0].mxu0
    %2829 = vdwg.mxu0
    %v2830 = vld [vmem:[%s15] sm:$0x1]
    %v2832 = vlaneseq
    %v2833 = vshrl.u32 %v2832, 7
    %v2834 = vsub.s32 0, %v2833
    %v2835 = vrot.slane %v2830, %v2834
    %v2837 = vadd.f32 %v2792, %v2835
    %v2838 = vadd.f32 %v2797, %v2835
    %v2839 = vadd.f32 %v2802, %v2835
    %v2840 = vadd.f32 %v2807, %v2835
    %v2841 = vadd.f32 %v2812, %v2835
    %v2842 = vadd.f32 %v2817, %v2835
    %v2843 = vadd.f32 %v2822, %v2835
    %v2844 = vadd.f32 %v2827, %v2835
    %v2845 = vxor.u32 %v2837, 2147483648
    %v2846 = vxor.u32 %v2838, 2147483648
    %v2847 = vxor.u32 %v2839, 2147483648
    %v2848 = vxor.u32 %v2840, 2147483648
    %v2849 = vxor.u32 %v2841, 2147483648
    %v2850 = vxor.u32 %v2842, 2147483648
    %v2851 = vxor.u32 %v2843, 2147483648
    %v2852 = vxor.u32 %v2844, 2147483648
    %v2853 = vmul.f32 %v2845, 1.442695
    %v2854 = vpow.pop %v2853
    %v2855 = vmul.f32 %v2846, 1.442695
    %v2856 = vpow.pop %v2855
    %v2857 = vmul.f32 %v2847, 1.442695
    %v2858 = vpow.pop %v2857
    %v2859 = vmul.f32 %v2848, 1.442695
    %v2860 = vpow.pop %v2859
    %v2861 = vmul.f32 %v2849, 1.442695
    %v2862 = vpow.pop %v2861
    %v2863 = vmul.f32 %v2850, 1.442695
    %v2864 = vpow.pop %v2863
    %v2865 = vmul.f32 %v2851, 1.442695
    %v2866 = vpow.pop %v2865
    %v2867 = vmul.f32 %v2852, 1.442695
    %v2868 = vpow.pop %v2867
    %v2869 = vadd.f32 %v2854, 1.0
    %v2870 = vadd.f32 %v2856, 1.0
    %v2871 = vadd.f32 %v2858, 1.0
    %v2872 = vadd.f32 %v2860, 1.0
    %v2873 = vadd.f32 %v2862, 1.0
    %v2874 = vadd.f32 %v2864, 1.0
    %v2875 = vadd.f32 %v2866, 1.0
    %v2876 = vadd.f32 %v2868, 1.0
    %v2877 = vrcp.pop %v2869
    %v2878 = vmul.f32 1.0, %v2877
    %v2879 = vrcp.pop %v2870
    %v2880 = vmul.f32 1.0, %v2879
    %v2881 = vrcp.pop %v2871
    %v2882 = vmul.f32 1.0, %v2881
    %v2883 = vrcp.pop %v2872
    %v2884 = vmul.f32 1.0, %v2883
    %v2885 = vrcp.pop %v2873
    %v2886 = vmul.f32 1.0, %v2885
    %v2887 = vrcp.pop %v2874
    %v2888 = vmul.f32 1.0, %v2887
    %v2889 = vrcp.pop %v2875
    %v2890 = vmul.f32 1.0, %v2889
    %v2891 = vrcp.pop %v2876
    %v2892 = vmul.f32 1.0, %v2891
    %v2893 = vmul.f32 %v2837, %v2878
    %v2894 = vmul.f32 %v2838, %v2880
    %v2895 = vmul.f32 %v2839, %v2882
    %v2896 = vmul.f32 %v2840, %v2884
    %v2897 = vmul.f32 %v2841, %v2886
    %v2898 = vmul.f32 %v2842, %v2888
    %v2899 = vmul.f32 %v2843, %v2890
    %v2900 = vmul.f32 %v2844, %v2892
    %v2901 = vld [vmem:[%s16] sm:$0xff]
    %v2902 = vld [vmem:[%s16 + $0x8] sm:$0xff]
    %v2903 = vld [vmem:[%s16 + $0x10] sm:$0xff]
    %v2904 = vld [vmem:[%s16 + $0x18] sm:$0xff]
    %v2905 = vld [vmem:[%s17] sm:$0x1]
    %v2907 = vlaneseq
    %v2908 = vshrl.u32 %v2907, 7
    %v2909 = vsub.s32 0, %v2908
    %v2910 = vrot.slane %v2905, %v2909
    %v2913 = vsel %vm1491, %v2893, 0
    %v2916 = vsel %vm1491, %v2894, 0
    %v2919 = vsel %vm1491, %v2895, 0
    %v2922 = vsel %vm1491, %v2896, 0
    %v2925 = vsel %vm1491, %v2897, 0
    %v2928 = vsel %vm1491, %v2898, 0
    %v2931 = vsel %vm1491, %v2899, 0
    %v2934 = vsel %vm1491, %v2900, 0
    %2936 = vmatprep.subr.mxu0 0.0
    %2937 = vmatpush1.msra.mxu0 %v2901
    %2938 = vmatprep.subr.mxu0 0.0
    %2939 = vmatpush1.msra.mxu0 %v2902
    %2940 = vmatprep.subr.mxu0 0.0
    %2941 = vmatpush1.msra.mxu0 %v2903
    %2942 = vmatprep.subr.mxu0 0.0
    %2943 = vmatpush1.msra.mxu0 %v2904
    %2944 = vmatprep.subr.mxu0 0.0
    %2945 = vmatpush1.msra.mxu0 0.0
    %2946 = vmatprep.subr.mxu0 0.0
    %2947 = vmatpush1.msra.mxu0 0.0
    %2948 = vmatprep.subr.mxu0 0.0
    %2949 = vmatpush1.msra.mxu0 0.0
    %2950 = vmatprep.subr.mxu0 0.0
    %2951 = vmatpush1.msra.mxu0 0.0
    %2952 = vmatprep.subr.mxu0 0.0
    %2953 = vmatpush1.msra.mxu0 0.0
    %2954 = vmatprep.subr.mxu0 0.0
    %2955 = vmatpush1.msra.mxu0 0.0
    %2956 = vmatprep.subr.mxu0 0.0
    %2957 = vmatpush1.msra.mxu0 0.0
    %2958 = vmatprep.subr.mxu0 0.0
    %2959 = vmatpush1.msra.mxu0 0.0
    %2960 = vmatprep.subr.mxu0 0.0
    %2961 = vmatpush1.msra.mxu0 0.0
    %2962 = vmatprep.subr.mxu0 0.0
    %2963 = vmatpush1.msra.mxu0 0.0
    %2964 = vmatprep.subr.mxu0 0.0
    %2965 = vmatpush1.msra.mxu0 0.0
    %2966 = vmatprep.subr.mxu0 0.0
    %2967 = vmatpush1.msra.mxu0 0.0
    %2968 = vmatprep.subr.mxu0 0.0
    %2969 = vmatpush1.msra.mxu0 0.0
    %2970 = vmatprep.subr.mxu0 0.0
    %2971 = vmatpush1.msra.mxu0 0.0
    %2972 = vmatprep.subr.mxu0 0.0
    %2973 = vmatpush1.msra.mxu0 0.0
    %2974 = vmatprep.subr.mxu0 0.0
    %2975 = vmatpush1.msra.mxu0 0.0
    %2976 = vmatprep.subr.mxu0 0.0
    %2977 = vmatpush1.msra.mxu0 0.0
    %2978 = vmatprep.subr.mxu0 0.0
    %2979 = vmatpush1.msra.mxu0 0.0
    %2980 = vmatprep.subr.mxu0 0.0
    %2981 = vmatpush1.msra.mxu0 0.0
    %2982 = vmatprep.subr.mxu0 0.0
    %2983 = vmatpush1.msra.mxu0 0.0
    %2984 = vmatprep.subr.mxu0 0.0
    %2985 = vmatpush1.msra.mxu0 0.0
    %2986 = vmatprep.subr.mxu0 0.0
    %2987 = vmatpush1.msra.mxu0 0.0
    %2988 = vmatprep.subr.mxu0 0.0
    %2989 = vmatpush1.msra.mxu0 0.0
    %2990 = vmatprep.subr.mxu0 0.0
    %2991 = vmatpush1.msra.mxu0 0.0
    %2992 = vmatprep.subr.mxu0 0.0
    %2993 = vmatpush1.msra.mxu0 0.0
    %2994 = vmatprep.subr.mxu0 0.0
    %2995 = vmatpush1.msra.mxu0 0.0
    %2996 = vmatprep.subr.mxu0 0.0
    %2997 = vmatpush1.msra.mxu0 0.0
    %2998 = vmatprep.subr.mxu0 0.0
    %2999 = vmatpush1.msra.mxu0 0.0
    %3000 = vmatprep.mubr.f32.mxu0 0.0
    %3001 = vmatmul.mubr.f32.gmra.mrb[0].mxu0 %v2913
    %v3002 = vpop.f32.mrb[0].mxu0
    %v3003 = vadd.f32 %v2910, %v3002
    %v3004 = vpop.f32.mrb[0].mxu0
    %3005 = vmatprep.mubr.f32.mxu0 0.0
    %3006 = vmatmul.mubr.f32.gmra.mrb[0].mxu0 %v2916
    %v3007 = vpop.f32.mrb[0].mxu0
    %v3008 = vadd.f32 %v2910, %v3007
    %v3009 = vpop.f32.mrb[0].mxu0
    %3010 = vmatprep.mubr.f32.mxu0 0.0
    %3011 = vmatmul.mubr.f32.gmra.mrb[0].mxu0 %v2919
    %v3012 = vpop.f32.mrb[0].mxu0
    %v3013 = vadd.f32 %v2910, %v3012
    %v3014 = vpop.f32.mrb[0].mxu0
    %3015 = vmatprep.mubr.f32.mxu0 0.0
    %3016 = vmatmul.mubr.f32.gmra.mrb[0].mxu0 %v2922
    %v3017 = vpop.f32.mrb[0].mxu0
    %v3018 = vadd.f32 %v2910, %v3017
    %v3019 = vpop.f32.mrb[0].mxu0
    %3020 = vmatprep.mubr.f32.mxu0 0.0
    %3021 = vmatmul.mubr.f32.gmra.mrb[0].mxu0 %v2925
    %v3022 = vpop.f32.mrb[0].mxu0
    %v3023 = vadd.f32 %v2910, %v3022
    %v3024 = vpop.f32.mrb[0].mxu0
    %3025 = vmatprep.mubr.f32.mxu0 0.0
    %3026 = vmatmul.mubr.f32.gmra.mrb[0].mxu0 %v2928
    %v3027 = vpop.f32.mrb[0].mxu0
    %v3028 = vadd.f32 %v2910, %v3027
    %v3029 = vpop.f32.mrb[0].mxu0
    %3030 = vmatprep.mubr.f32.mxu0 0.0
    %3031 = vmatmul.mubr.f32.gmra.mrb[0].mxu0 %v2931
    %v3032 = vpop.f32.mrb[0].mxu0
    %v3033 = vadd.f32 %v2910, %v3032
    %v3034 = vpop.f32.mrb[0].mxu0
    %3035 = vmatprep.mubr.f32.mxu0 0.0
    %3036 = vmatmul.mubr.f32.gmra.mrb[0].mxu0 %v2934
    %v3037 = vpop.f32.mrb[0].mxu0
    %v3038 = vadd.f32 %v2910, %v3037
    %v3039 = vpop.f32.mrb[0].mxu0
    %3040 = vdwg.mxu0
    %v3041 = vld [vmem:[%s18] sm:$0x1]
    %v3042 = vld [vmem:[%s19] sm:$0x1]
    %v3043 = vsel %vm1491, %v3003, 0.0
    %3044 = vadd.xlane.f32.xlu0 %v3043
    %v3045 = vpop.xlane.xlu0 %3044
    %v3046 = vsel %vm1491, %v3008, 0.0
    %3047 = vadd.xlane.f32.xlu0 %v3046
    %v3048 = vpop.xlane.xlu0 %3047
    %v3049 = vsel %vm1491, %v3013, 0.0
    %3050 = vadd.xlane.f32.xlu0 %v3049
    %v3051 = vpop.xlane.xlu0 %3050
    %v3052 = vsel %vm1491, %v3018, 0.0
    %3053 = vadd.xlane.f32.xlu0 %v3052
    %v3054 = vpop.xlane.xlu0 %3053
    %v3055 = vsel %vm1491, %v3023, 0.0
    %3056 = vadd.xlane.f32.xlu0 %v3055
    %v3057 = vpop.xlane.xlu0 %3056
    %v3058 = vsel %vm1491, %v3028, 0.0
    %3059 = vadd.xlane.f32.xlu0 %v3058
    %v3060 = vpop.xlane.xlu0 %3059
    %v3061 = vsel %vm1491, %v3033, 0.0
    %3062 = vadd.xlane.f32.xlu0 %v3061
    %v3063 = vpop.xlane.xlu0 %3062
    %v3064 = vsel %vm1491, %v3038, 0.0
    %3065 = vadd.xlane.f32.xlu0 %v3064
    %v3066 = vpop.xlane.xlu0 %3065
    %v3067 = vmul.f32 %v3045, %v1834
    %v3068 = vmul.f32 %v3048, %v1834
    %v3069 = vmul.f32 %v3051, %v1834
    %v3070 = vmul.f32 %v3054, %v1834
    %v3071 = vmul.f32 %v3057, %v1834
    %v3072 = vmul.f32 %v3060, %v1834
    %v3073 = vmul.f32 %v3063, %v1834
    %v3074 = vmul.f32 %v3066, %v1834
    %v3075 = vsub.f32 %v3003, %v3067
    %v3076 = vsub.f32 %v3008, %v3068
    %v3077 = vsub.f32 %v3013, %v3069
    %v3078 = vsub.f32 %v3018, %v3070
    %v3079 = vsub.f32 %v3023, %v3071
    %v3080 = vsub.f32 %v3028, %v3072
    %v3081 = vsub.f32 %v3033, %v3073
    %v3082 = vsub.f32 %v3038, %v3074
    %v3083 = vmul.f32 %v3075, %v3075
    %v3084 = vmul.f32 %v3076, %v3076
    %v3085 = vmul.f32 %v3077, %v3077
    %v3086 = vmul.f32 %v3078, %v3078
    %v3087 = vmul.f32 %v3079, %v3079
    %v3088 = vmul.f32 %v3080, %v3080
    %v3089 = vmul.f32 %v3081, %v3081
    %v3090 = vmul.f32 %v3082, %v3082
    %v3091 = vsel %vm1491, %v3083, 0.0
    %3092 = vadd.xlane.f32.xlu0 %v3091
    %v3093 = vpop.xlane.xlu0 %3092
    %v3094 = vsel %vm1491, %v3084, 0.0
    %3095 = vadd.xlane.f32.xlu0 %v3094
    %v3096 = vpop.xlane.xlu0 %3095
    %v3097 = vsel %vm1491, %v3085, 0.0
    %3098 = vadd.xlane.f32.xlu0 %v3097
    %v3099 = vpop.xlane.xlu0 %3098
    %v3100 = vsel %vm1491, %v3086, 0.0
    %3101 = vadd.xlane.f32.xlu0 %v3100
    %v3102 = vpop.xlane.xlu0 %3101
    %v3103 = vsel %vm1491, %v3087, 0.0
    %3104 = vadd.xlane.f32.xlu0 %v3103
    %v3105 = vpop.xlane.xlu0 %3104
    %v3106 = vsel %vm1491, %v3088, 0.0
    %3107 = vadd.xlane.f32.xlu0 %v3106
    %v3108 = vpop.xlane.xlu0 %3107
    %v3109 = vsel %vm1491, %v3089, 0.0
    %3110 = vadd.xlane.f32.xlu0 %v3109
    %v3111 = vpop.xlane.xlu0 %3110
    %v3112 = vsel %vm1491, %v3090, 0.0
    %3113 = vadd.xlane.f32.xlu0 %v3112
    %v3114 = vpop.xlane.xlu0 %3113
    %v3115 = vmul.f32 %v3093, %v1834
    %v3116 = vmul.f32 %v3096, %v1834
    %v3117 = vmul.f32 %v3099, %v1834
    %v3118 = vmul.f32 %v3102, %v1834
    %v3119 = vmul.f32 %v3105, %v1834
    %v3120 = vmul.f32 %v3108, %v1834
    %v3121 = vmul.f32 %v3111, %v1834
    %v3122 = vmul.f32 %v3114, %v1834
    %v3123 = vadd.f32 %v3115, 1e-05
    %v3124 = vadd.f32 %v3116, 1e-05
    %v3125 = vadd.f32 %v3117, 1e-05
    %v3126 = vadd.f32 %v3118, 1e-05
    %v3127 = vadd.f32 %v3119, 1e-05
    %v3128 = vadd.f32 %v3120, 1e-05
    %v3129 = vadd.f32 %v3121, 1e-05
    %v3130 = vadd.f32 %v3122, 1e-05
    %v3131 = vrsqrt.pop %v3123
    %v3132 = vrsqrt.pop %v3124
    %v3133 = vrsqrt.pop %v3125
    %v3134 = vrsqrt.pop %v3126
    %v3135 = vrsqrt.pop %v3127
    %v3136 = vrsqrt.pop %v3128
    %v3137 = vrsqrt.pop %v3129
    %v3138 = vrsqrt.pop %v3130
    %v3139 = vmul.f32 %v3075, %v3131
    %v3140 = vmul.f32 %v3076, %v3132
    %v3141 = vmul.f32 %v3077, %v3133
    %v3142 = vmul.f32 %v3078, %v3134
    %v3143 = vmul.f32 %v3079, %v3135
    %v3144 = vmul.f32 %v3080, %v3136
    %v3145 = vmul.f32 %v3081, %v3137
    %v3146 = vmul.f32 %v3082, %v3138
    %v3148 = vlaneseq
    %v3149 = vshrl.u32 %v3148, 7
    %v3150 = vsub.s32 0, %v3149
    %v3151 = vrot.slane %v3041, %v3150
    %v3153 = vmul.f32 %v3139, %v3151
    %v3154 = vmul.f32 %v3140, %v3151
    %v3155 = vmul.f32 %v3141, %v3151
    %v3156 = vmul.f32 %v3142, %v3151
    %v3157 = vmul.f32 %v3143, %v3151
    %v3158 = vmul.f32 %v3144, %v3151
    %v3159 = vmul.f32 %v3145, %v3151
    %v3160 = vmul.f32 %v3146, %v3151
    %v3162 = vlaneseq
    %v3163 = vshrl.u32 %v3162, 7
    %v3164 = vsub.s32 0, %v3163
    %v3165 = vrot.slane %v3042, %v3164
    %v3167 = vadd.f32 %v3153, %v3165
    %v3168 = vadd.f32 %v3154, %v3165
    %v3169 = vadd.f32 %v3155, %v3165
    %v3170 = vadd.f32 %v3156, %v3165
    %v3171 = vadd.f32 %v3157, %v3165
    %v3172 = vadd.f32 %v3158, %v3165
    %v3173 = vadd.f32 %v3159, %v3165
    %v3174 = vadd.f32 %v3160, %v3165
    %v3175 = vadd.f32 %v3167, %v2548
    %v3176 = vadd.f32 %v3168, %v2549
    %v3177 = vadd.f32 %v3169, %v2550
    %v3178 = vadd.f32 %v3170, %v2551
    %v3179 = vadd.f32 %v3171, %v2552
    %v3180 = vadd.f32 %v3172, %v2553
    %v3181 = vadd.f32 %v3173, %v2554
    %v3182 = vadd.f32 %v3174, %v2555
    %3183 = vst.msk [vmem:[%s20] sm:$0xff] %vm1491, %v3175
    %3184 = vst.msk [vmem:[%s20 + $0x8] sm:$0xff] %vm1491, %v3176
    %3185 = vst.msk [vmem:[%s20 + $0x10] sm:$0xff] %vm1491, %v3177
    %3186 = vst.msk [vmem:[%s20 + $0x18] sm:$0xff] %vm1491, %v3178
    %3187 = vst.msk [vmem:[%s20 + $0x20] sm:$0xff] %vm1491, %v3179
    %3188 = vst.msk [vmem:[%s20 + $0x28] sm:$0xff] %vm1491, %v3180
    %3189 = vst.msk [vmem:[%s20 + $0x30] sm:$0xff] %vm1491, %v3181
    %3190 = vst.msk [vmem:[%s20 + $0x38] sm:$0xff] %vm1491, %v3182
  $region89: #{tpu_custom_call.1} parent=0 // pred_fallthru
    _
  // Predicated region
  $region90: #{tpu_custom_call.1} parent=0 // pred_check
    _
  $region91: #{tpu_custom_call.1} parent=0 // pred_check_branch
    %3192 = sbr.rel (0) target = $region93
  $region92: #{tpu_custom_call.1} parent=0 // pred_region
    _
  $region93: #{tpu_custom_call.1} parent=0 // pred_fallthru
    _
  // Predicated region
  $region94: #{tpu_custom_call.1} parent=0 // pred_check
    _
  $region95: #{tpu_custom_call.1} parent=0 // pred_check_branch
    %3194 = sbr.rel (0) target = $region97
  $region96: #{tpu_custom_call.1} parent=0 // pred_region
    _
  $region97: #{tpu_custom_call.1} parent=0 // pred_fallthru
    _

</llo_original>
